<compile_context>
chip_gen: v7x
topology: tpu7x:2x2x1
jax: 0.10.0
libtpu: 0.0.40
codegen_flags: <defaults>
</compile_context>

<pallas_src>
import functools

import jax
import jax.numpy as jnp
from jax.experimental import pallas as pl
from jax.experimental.pallas import tpu as pltpu


_VMEM_LIMIT = 32 * 1024 * 1024  # scoped-VMEM budget, safe on v5e/v6e/v7x (64 MiB/TC)
_ROW_ALIGN = 16                 # bf16 sublane packing: row tiles kept multiples of 16
_APPROX_SOFTMAX_RECIP = True    # set False for tight numerical-parity validation


# ------------------------------- helpers ------------------------------------

def _round_up(x, m):
    return ((x + m - 1) // m) * m


def _choose_row_tile(M, limit):
    """Row (sublane) tile, multiple of _ROW_ALIGN and <= limit.

    No silent full-dimension fallback: if M has no suitable divisor the caller pads
    the row count up to a multiple of the returned tile and slices the result back.
    """
    if M <= limit:
        return _round_up(M, _ROW_ALIGN)
    t = (limit // _ROW_ALIGN) * _ROW_ALIGN
    while t >= _ROW_ALIGN:
        if M % t == 0:
            return t
        t -= _ROW_ALIGN
    return (limit // _ROW_ALIGN) * _ROW_ALIGN   # pad-to-multiple handled by caller


def _pad_rows(a, rows):
    if a.shape[0] == rows:
        return a
    return jnp.pad(a, ((0, rows - a.shape[0]), (0, 0)))


def _apply_activation(y, activation):
    if activation == "relu":
        return jnp.maximum(y, 0.0)
    if activation == "gelu":  # exact erf-GELU (HF BERT default)
        return 0.5 * y * (1.0 + jax.lax.erf(y * jnp.float32(0.7071067811865476)))
    return y


# ----------------------------- Pallas kernels -------------------------------

def _linear_kernel(x_ref, w_ref, b_ref, o_ref, *, activation):
    """y = act(x @ w + b); bf16 operands, f32 accumulation, resident weight."""
    y = jnp.dot(x_ref[...], w_ref[...], preferred_element_type=jnp.float32)
    y = _apply_activation(y + b_ref[...], activation)
    o_ref[...] = y.astype(o_ref.dtype)


def _linear_res_ln_kernel(x_ref, w_ref, b_ref, res_ref, g_ref, beta_ref,
                          o_ref, *, activation, eps):
    """y = LayerNorm(act(x @ w + b) + residual) fused into the matmul epilogue."""
    y = jnp.dot(x_ref[...], w_ref[...], preferred_element_type=jnp.float32)
    y = _apply_activation(y + b_ref[...], activation)
    y = y + res_ref[...].astype(jnp.float32)
    mu = jnp.mean(y, axis=-1, keepdims=True)
    var = jnp.mean((y - mu) ** 2, axis=-1, keepdims=True)
    y = (y - mu) * jax.lax.rsqrt(var + eps)
    o_ref[...] = (y * g_ref[...] + beta_ref[...]).astype(o_ref.dtype)


def linear(x, w, b, *, activation=None, residual=None,
           ln_gamma=None, ln_beta=None, eps=1e-12,
           m_tile_limit=256, out_dtype=jnp.bfloat16):
    """act(x @ w + b) with optional fused residual-add + LayerNorm.

    x:(M,K) bf16, w:(K,N) bf16, b:(N,).  Grid over M only; the full weight has a
    constant index map so it stays resident in VMEM (fetched from HBM once).  The
    output keeps whole rows so the fused LN sees the full feature axis.
    """
    M, K = x.shape
    N = w.shape[1]
    tm = _choose_row_tile(M, m_tile_limit)
    Mp = _round_up(M, tm)
    xp = _pad_rows(x, Mp)

    x_spec = pl.BlockSpec((tm, K), lambda i: (i, 0))
    w_spec = pl.BlockSpec((K, N), lambda i: (0, 0))      # resident weight, DMA'd once
    vec_spec = pl.BlockSpec((1, N), lambda i: (0, 0))
    row_spec = pl.BlockSpec((tm, N), lambda i: (i, 0))

    fuse_ln = residual is not None
    if fuse_ln:
        resp = _pad_rows(residual.astype(out_dtype), Mp)
        kernel = functools.partial(_linear_res_ln_kernel,
                                   activation=activation, eps=eps)
        in_specs = [x_spec, w_spec, vec_spec, row_spec, vec_spec, vec_spec]
        args = (xp, w, b.reshape(1, N).astype(jnp.float32), resp,
                ln_gamma.reshape(1, N).astype(jnp.float32),
                ln_beta.reshape(1, N).astype(jnp.float32))
        io_aliases = {3: 0}   # residual buffer reused for the output (same row map)
    else:
        kernel = functools.partial(_linear_kernel, activation=activation)
        in_specs = [x_spec, w_spec, vec_spec]
        args = (xp, w, b.reshape(1, N).astype(jnp.float32))
        io_aliases = {}

    out = pl.pallas_call(
        kernel,
        out_shape=jax.ShapeDtypeStruct((Mp, N), out_dtype),
        grid=(Mp // tm,),
        in_specs=in_specs,
        out_specs=row_spec,
        input_output_aliases=io_aliases,
        compiler_params=pltpu.CompilerParams(
            dimension_semantics=("parallel",),
            vmem_limit_bytes=_VMEM_LIMIT),
    )(*args)
    return out[:M] if Mp != M else out


def _layernorm_kernel(x_ref, g_ref, b_ref, o_ref, *, eps):
    x = x_ref[...].astype(jnp.float32)
    mu = jnp.mean(x, axis=-1, keepdims=True)
    var = jnp.mean((x - mu) ** 2, axis=-1, keepdims=True)
    y = (x - mu) * jax.lax.rsqrt(var + eps)
    o_ref[...] = (y * g_ref[...] + b_ref[...]).astype(o_ref.dtype)


def layernorm(x, gamma, beta, eps=1e-12, m_tile_limit=512, out_dtype=jnp.bfloat16):
    """Standalone LN (only used after the embedding gather — no residual)."""
    M, D = x.shape
    tm = _choose_row_tile(M, m_tile_limit)
    Mp = _round_up(M, tm)
    xp = _pad_rows(x, Mp)
    out = pl.pallas_call(
        functools.partial(_layernorm_kernel, eps=eps),
        out_shape=jax.ShapeDtypeStruct((Mp, D), out_dtype),
        grid=(Mp // tm,),
        in_specs=[
            pl.BlockSpec((tm, D), lambda i: (i, 0)),
            pl.BlockSpec((1, D), lambda i: (0, 0)),
            pl.BlockSpec((1, D), lambda i: (0, 0)),
        ],
        out_specs=pl.BlockSpec((tm, D), lambda i: (i, 0)),
        compiler_params=pltpu.CompilerParams(
            dimension_semantics=("parallel",),
            vmem_limit_bytes=_VMEM_LIMIT),
    )(xp, gamma.reshape(1, D).astype(jnp.float32),
      beta.reshape(1, D).astype(jnp.float32))
    return out[:M] if Mp != M else out


def _attention_kernel(q_ref, k_ref, v_ref, m_ref, o_ref, *,
                      num_heads, scale, approx_recip):
    """All heads of one batch element per grid step, fed from the fused QKV buffer.

    The 1/sqrt(dh) scale is folded into q (one (S, D) multiply), the mask bias is
    computed in-kernel from the (1, S) attention mask, and each head's context is
    written directly into its output column slice (no concat)."""
    q = q_ref[0] * scale       # (S, D) bf16
    k = k_ref[0]               # (S, D) bf16
    v = v_ref[0]               # (S, D) bf16
    bias = (1.0 - m_ref[0]) * jnp.float32(-10000.0)     # (1, S) f32, broadcast

    S, D = q.shape
    dh = D // num_heads
    for h in range(num_heads):
        lo = h * dh
        qh = q[:, lo:lo + dh]
        kh = k[:, lo:lo + dh]
        vh = v[:, lo:lo + dh]
        s = jnp.dot(qh, kh.T, preferred_element_type=jnp.float32) + bias
        s = s - jnp.max(s, axis=-1, keepdims=True)
        p = jnp.exp(s)
        l = jnp.sum(p, axis=-1, keepdims=True)
        ctx = jnp.dot(p.astype(vh.dtype), vh, preferred_element_type=jnp.float32)
        inv = pl.reciprocal(l, approx=approx_recip)
        o_ref[0, :, lo:lo + dh] = (ctx * inv).astype(o_ref.dtype)


def attention(qkv, mask, num_heads, scale, approx_recip=_APPROX_SOFTMAX_RECIP):
    """qkv: (B, S, 3D) fused QKV activations (bf16); mask: (B, 1, S) float in {0,1}.

    q/k/v are never materialized in HBM — the same qkv array is passed three times
    with lane-aligned column-block index maps (requires D % 128 == 0)."""
    B, S, D3 = qkv.shape
    D = D3 // 3

    def qkv_spec(blk):
        return pl.BlockSpec((1, S, D), lambda b: (b, 0, blk))

    return pl.pallas_call(
        functools.partial(_attention_kernel, num_heads=num_heads, scale=scale,
                          approx_recip=approx_recip),
        out_shape=jax.ShapeDtypeStruct((B, S, D), qkv.dtype),
        grid=(B,),
        in_specs=[qkv_spec(0), qkv_spec(1), qkv_spec(2),
                  pl.BlockSpec((1, 1, S), lambda b: (b, 0, 0))],
        out_specs=pl.BlockSpec((1, S, D), lambda b: (b, 0, 0)),
        compiler_params=pltpu.CompilerParams(
            dimension_semantics=("parallel",),
            vmem_limit_bytes=_VMEM_LIMIT),
    )(qkv, qkv, qkv, mask)


def _head_kernel(seq_ref, gen_ref,
                 gw1_ref, gb1_ref, gw2_ref, gb2_ref,
                 cw1s_ref, cw1g_ref, cb1_ref,
                 cw2_ref, cb2_ref, cw3_ref, cb3_ref,
                 o_ref):
    """genomic_proj (2 linears+ReLU) + classifier (3 linears, 2 ReLU) in ONE kernel.

    concat([seq, genomic], dim=1) @ W1 == seq @ W1[:D] + genomic @ W1[D:].
    All matmuls run with bf16 operands and f32 accumulation."""
    bf16 = jnp.bfloat16
    relu = lambda t: jnp.maximum(t, 0.0)

    def mm(a, w_ref):
        return jnp.dot(a.astype(bf16), w_ref[...], preferred_element_type=jnp.float32)

    seq = seq_ref[...]
    gen = gen_ref[...]

    g = relu(mm(gen, gw1_ref) + gb1_ref[...])
    g = relu(mm(g, gw2_ref) + gb2_ref[...])

    h = relu(mm(seq, cw1s_ref) + mm(g, cw1g_ref) + cb1_ref[...])
    h = relu(mm(h, cw2_ref) + cb2_ref[...])
    o_ref[...] = (mm(h, cw3_ref) + cb3_ref[...]).astype(o_ref.dtype)


def fused_head(seq_feat, gen_feat, gp, cl, dnabert_dim):
    """Run genomic_proj + classifier in a single pallas_call (tiny tensors)."""
    B = seq_feat.shape[0]
    cw1_seq = cl["w1"][:dnabert_dim]        # (D, CH)
    cw1_gen = cl["w1"][dnabert_dim:]        # (128, CH)
    num_classes = cl["w3"].shape[1]

    def full(arr):
        shp = arr.shape
        return pl.BlockSpec(shp, lambda i, _n=len(shp): (0,) * _n)

    args = (seq_feat.astype(jnp.bfloat16), gen_feat.astype(jnp.bfloat16),
            gp["w1"], gp["b1"].reshape(1, -1).astype(jnp.float32),
            gp["w2"], gp["b2"].reshape(1, -1).astype(jnp.float32),
            cw1_seq, cw1_gen, cl["b1"].reshape(1, -1).astype(jnp.float32),
            cl["w2"], cl["b2"].reshape(1, -1).astype(jnp.float32),
            cl["w3"], cl["b3"].reshape(1, -1).astype(jnp.float32))

    return pl.pallas_call(
        _head_kernel,
        out_shape=jax.ShapeDtypeStruct((B, num_classes), jnp.float32),
        grid=(1,),
        in_specs=[full(a) for a in args],
        out_specs=pl.BlockSpec((B, num_classes), lambda i: (0, 0)),
        compiler_params=pltpu.CompilerParams(vmem_limit_bytes=_VMEM_LIMIT),
    )(*args)


# ----------------------------- model forward --------------------------------

def bert_encoder(bp, input_ids, attention_mask, cfg):
    B, S = input_ids.shape
    D, H = cfg["hidden"], cfg["heads"]
    dh = D // H
    scale = float(1.0 / (dh ** 0.5))

    # Embeddings (gather is glue in plain JAX), then LN (no residual). bf16 out.
    x = (bp["word_emb"][input_ids]
         + bp["pos_emb"][jnp.arange(S)][None, :, :]
         + bp["tok_emb"][0][None, None, :])
    x = x.reshape(B * S, D)
    x = layernorm(x, bp["emb_ln_g"], bp["emb_ln_b"])

    # Attention mask kept tiny: (B, 1, S) floats; bias is computed in-kernel.
    mask = attention_mask.astype(jnp.float32).reshape(B, 1, S)

    for lp in bp["layers"]:
        # Fused QKV projection: one (D, 3D) bf16 matmul; attention reads the fused
        # buffer directly (free reshape, no q/k/v materialization).
        qkv = linear(x, lp["wqkv"], lp["bqkv"])                        # (B*S, 3D)
        ctx = attention(qkv.reshape(B, S, 3 * D), mask, H, scale).reshape(B * S, D)

        # Output projection with fused residual + LayerNorm (residual aliased out).
        x = linear(ctx, lp["wo"], lp["bo"],
                   residual=x, ln_gamma=lp["ln1_g"], ln_beta=lp["ln1_b"])

        # FFN: up-proj + GELU, then down-proj with fused residual + LayerNorm.
        h = linear(x, lp["w1"], lp["b1"], activation="gelu")
        x = linear(h, lp["w2"], lp["b2"],
                   residual=x, ln_gamma=lp["ln2_g"], ln_beta=lp["ln2_b"])

    return x.reshape(B, S, D)


def dnabert2_conservation_forward(params, input_ids, attention_mask,
                                  genomic_features, cfg):
    hidden = bert_encoder(params["bert"], input_ids, attention_mask, cfg)
    sequence_features = hidden[:, 0, :]                    # [CLS] token, (B, D)
    logits = fused_head(sequence_features, genomic_features,
                        params["genomic_proj"], params["classifier"],
                        cfg["hidden"])
    return logits


# ----------------------------- parameter setup -------------------------------

def _dense(key, fan_in, fan_out):
    # Weights stored bf16 (MXU-native); biases kept f32 (added to the f32 accum).
    w = (jax.random.normal(key, (fan_in, fan_out), jnp.float32) * 0.02)
    return w.astype(jnp.bfloat16), jnp.zeros((fan_out,), jnp.float32)


def init_params(key, cfg):
    D, H, L, I, V = (cfg["hidden"], cfg["heads"], cfg["layers"],
                     cfg["intermediate"], cfg["vocab"])
    G, CH, NC = cfg["genomic_dim"], cfg["cls_hidden"], cfg["num_classes"]
    keys = iter(jax.random.split(key, 8 + 8 * L + 10))

    def emb(k, shape):
        return (jax.random.normal(k, shape, jnp.float32) * 0.02).astype(jnp.bfloat16)

    bert = {
        "word_emb": emb(next(keys), (V, D)),
        "pos_emb": emb(next(keys), (cfg["max_pos"], D)),
        "tok_emb": emb(next(keys), (2, D)),
        "emb_ln_g": jnp.ones((D,), jnp.float32),
        "emb_ln_b": jnp.zeros((D,), jnp.float32),
        "layers": [],
    }
    for _ in range(L):
        wqkv, bqkv = _dense(next(keys), D, 3 * D)     # fused Q|K|V weight
        wo, bo = _dense(next(keys), D, D)
        w1, b1 = _dense(next(keys), D, I)
        w2, b2 = _dense(next(keys), I, D)
        bert["layers"].append({
            "wqkv": wqkv, "bqkv": bqkv,
            "wo": wo, "bo": bo,
            "ln1_g": jnp.ones((D,), jnp.float32), "ln1_b": jnp.zeros((D,), jnp.float32),
            "w1": w1, "b1": b1, "w2": w2, "b2": b2,
            "ln2_g": jnp.ones((D,), jnp.float32), "ln2_b": jnp.zeros((D,), jnp.float32),
        })

    gp_hidden = max(64, G * 16)
    gw1, gb1 = _dense(next(keys), G, gp_hidden)
    gw2, gb2 = _dense(next(keys), gp_hidden, 128)
    genomic_proj = {"w1": gw1, "b1": gb1, "w2": gw2, "b2": gb2}

    fusion_dim = D + 128
    cw1, cb1 = _dense(next(keys), fusion_dim, CH)
    cw2, cb2 = _dense(next(keys), CH, CH // 2)
    cw3, cb3 = _dense(next(keys), CH // 2, NC)
    classifier = {"w1": cw1, "b1": cb1, "w2": cw2, "b2": cb2, "w3": cw3, "b3": cb3}

    return {"bert": bert, "genomic_proj": genomic_proj, "classifier": classifier}


# ----------------------------------- main ------------------------------------

if __name__ == "__main__":
    cfg = {
        "vocab": 32,
        "max_pos": 16,
        "hidden": 128,        # dnabert2_dim (small synthetic config; multiple of 128)
        "heads": 2,
        "layers": 2,
        "intermediate": 256,
        "genomic_dim": 4,
        "cls_hidden": 256,    # hidden_dim of the classifier head
        "num_classes": 2,
    }
    B, S = 2, 8

    key = jax.random.PRNGKey(0)
    k_par, k_ids, k_gen = jax.random.split(key, 3)

    params = init_params(k_par, cfg)
    input_ids = jax.random.randint(k_ids, (B, S), 0, cfg["vocab"], dtype=jnp.int32)
    attention_mask = jnp.ones((B, S), jnp.int32)
    genomic_features = jax.random.normal(k_gen, (B, cfg["genomic_dim"]), jnp.float32)

    fwd = jax.jit(functools.partial(dnabert2_conservation_forward, cfg=cfg))
    logits = fwd(params, input_ids, attention_mask, genomic_features)
    logits = jax.block_until_ready(logits)

    assert logits.shape == (B, cfg["num_classes"]), logits.shape
    assert logits.dtype == jnp.float32
    assert bool(jnp.all(jnp.isfinite(logits)))
    print("KERNEL_OK")
</pallas_src>

<mosaic_0001>
module attributes {stable_mosaic.version = 11 : i64} {
  func.func @_layernorm_kernel(%arg0: i32, %arg1: memref<16x128xbf16, #tpu.memory_space<vmem>>, %arg2: memref<1x128xf32, #tpu.memory_space<vmem>>, %arg3: memref<1x128xf32, #tpu.memory_space<vmem>>, %arg4: memref<16x128xbf16, #tpu.memory_space<vmem>>) attributes {dimension_semantics = [#tpu.dimension_semantics<parallel>], iteration_bounds = array<i64: 1>, scalar_prefetch = 0 : i64, scratch_operands = 0 : i64, tpu.core_type = #tpu.core_type<tc>, window_params = [{transform_indices = @transform_0, window_bounds = array<i64: 16, 128>}, {pipeline_mode = #tpu.pipeline_mode<synchronous>, transform_indices = @transform_1, window_bounds = array<i64: 1, 128>}, {pipeline_mode = #tpu.pipeline_mode<synchronous>, transform_indices = @transform_2, window_bounds = array<i64: 1, 128>}, {transform_indices = @transform_3, window_bounds = array<i64: 16, 128>}]} {
    %c0 = arith.constant 0 : index
    %c0_0 = arith.constant 0 : index
    %0 = vector.load %arg1[%c0, %c0_0] : memref<16x128xbf16, #tpu.memory_space<vmem>>, vector<16x128xbf16>
    %1 = arith.extf %0 : vector<16x128xbf16> to vector<16x128xf32>
    %cst = arith.constant dense<0.000000e+00> : vector<16xf32>
    %2 = vector.multi_reduction <add>, %1, %cst [1] : vector<16x128xf32> to vector<16xf32>
    %3 = vector.shape_cast %2 : vector<16xf32> to vector<16x1xf32>
    %cst_1 = arith.constant 1.280000e+02 : f32
    %4 = vector.broadcast %cst_1 : f32 to vector<16x1xf32>
    %5 = arith.divf %3, %4 : vector<16x1xf32>
    %6 = vector.broadcast %5 : vector<16x1xf32> to vector<16x128xf32>
    %7 = arith.subf %1, %6 : vector<16x128xf32>
    %8 = arith.mulf %7, %7 : vector<16x128xf32>
    %cst_2 = arith.constant dense<0.000000e+00> : vector<16xf32>
    %9 = vector.multi_reduction <add>, %8, %cst_2 [1] : vector<16x128xf32> to vector<16xf32>
    %10 = vector.shape_cast %9 : vector<16xf32> to vector<16x1xf32>
    %cst_3 = arith.constant 1.280000e+02 : f32
    %11 = vector.broadcast %cst_3 : f32 to vector<16x1xf32>
    %12 = arith.divf %10, %11 : vector<16x1xf32>
    %13 = vector.broadcast %5 : vector<16x1xf32> to vector<16x128xf32>
    %14 = arith.subf %1, %13 : vector<16x128xf32>
    %cst_4 = arith.constant 9.99999996E-13 : f32
    %15 = vector.broadcast %cst_4 : f32 to vector<16x1xf32>
    %16 = arith.addf %12, %15 : vector<16x1xf32>
    %17 = math.rsqrt %16 : vector<16x1xf32>
    %18 = vector.broadcast %17 : vector<16x1xf32> to vector<16x128xf32>
    %19 = arith.mulf %14, %18 : vector<16x128xf32>
    %c0_5 = arith.constant 0 : index
    %c0_6 = arith.constant 0 : index
    %20 = vector.load %arg2[%c0_5, %c0_6] : memref<1x128xf32, #tpu.memory_space<vmem>>, vector<1x128xf32>
    %21 = vector.broadcast %20 : vector<1x128xf32> to vector<16x128xf32>
    %22 = arith.mulf %19, %21 : vector<16x128xf32>
    %c0_7 = arith.constant 0 : index
    %c0_8 = arith.constant 0 : index
    %23 = vector.load %arg3[%c0_7, %c0_8] : memref<1x128xf32, #tpu.memory_space<vmem>>, vector<1x128xf32>
    %24 = vector.broadcast %23 : vector<1x128xf32> to vector<16x128xf32>
    %25 = arith.addf %22, %24 : vector<16x128xf32>
    %26 = arith.truncf %25 : vector<16x128xf32> to vector<16x128xbf16>
    %c0_9 = arith.constant 0 : index
    %c0_10 = arith.constant 0 : index
    %27 = vector.load %arg4[%c0_9, %c0_10] : memref<16x128xbf16, #tpu.memory_space<vmem>>, vector<16x128xbf16>
    tpu.vector_store %arg4[%c0_9, %c0_10], %26 {strides = array<i32>} : memref<16x128xbf16, #tpu.memory_space<vmem>>, vector<16x128xbf16>,
    return
  }
  func.func @transform_0(%arg0: i32) -> (i32, i32) {
    %c0_i32 = arith.constant 0 : i32
    %c0_i32_0 = arith.constant 0 : i32
    return %arg0, %c0_i32 : i32, i32
  }
  func.func @transform_1(%arg0: i32) -> (i32, i32) {
    %c0_i32 = arith.constant 0 : i32
    %c0_i32_0 = arith.constant 0 : i32
    %c0_i32_1 = arith.constant 0 : i32
    return %c0_i32, %c0_i32_0 : i32, i32
  }
  func.func @transform_2(%arg0: i32) -> (i32, i32) {
    %c0_i32 = arith.constant 0 : i32
    %c0_i32_0 = arith.constant 0 : i32
    %c0_i32_1 = arith.constant 0 : i32
    return %c0_i32, %c0_i32_0 : i32, i32
  }
  func.func @transform_3(%arg0: i32) -> (i32, i32) {
    %c0_i32 = arith.constant 0 : i32
    %c0_i32_0 = arith.constant 0 : i32
    return %arg0, %c0_i32 : i32, i32
  }
}

module attributes {stable_mosaic.version = 11 : i64} {
  func.func @_linear_kernel(%arg0: i32, %arg1: memref<16x128xbf16, #tpu.memory_space<vmem>>, %arg2: memref<128x384xbf16, #tpu.memory_space<vmem>>, %arg3: memref<1x384xf32, #tpu.memory_space<vmem>>, %arg4: memref<16x384xbf16, #tpu.memory_space<vmem>>) attributes {dimension_semantics = [#tpu.dimension_semantics<parallel>], iteration_bounds = array<i64: 1>, scalar_prefetch = 0 : i64, scratch_operands = 0 : i64, tpu.core_type = #tpu.core_type<tc>, window_params = [{transform_indices = @transform_0, window_bounds = array<i64: 16, 128>}, {pipeline_mode = #tpu.pipeline_mode<synchronous>, transform_indices = @transform_1, window_bounds = array<i64: 128, 384>}, {pipeline_mode = #tpu.pipeline_mode<synchronous>, transform_indices = @transform_2, window_bounds = array<i64: 1, 384>}, {transform_indices = @transform_3, window_bounds = array<i64: 16, 384>}]} {
    %c0 = arith.constant 0 : index
    %c0_0 = arith.constant 0 : index
    %0 = vector.load %arg1[%c0, %c0_0] : memref<16x128xbf16, #tpu.memory_space<vmem>>, vector<16x128xbf16>
    %c0_1 = arith.constant 0 : index
    %c0_2 = arith.constant 0 : index
    %1 = vector.load %arg2[%c0_1, %c0_2] : memref<128x384xbf16, #tpu.memory_space<vmem>>, vector<128x384xbf16>
    %cst = arith.constant dense<0.000000e+00> : vector<16x384xf32>
    %2 = tpu.matmul %0, %1, %cst {dimension_numbers = #tpu.dot_dimension_numbers<[1], [0], [0], [1], [0, 0, 1, 1], [], []>} : vector<16x128xbf16>, vector<128x384xbf16>, vector<16x384xf32> -> vector<16x384xf32>
    %c0_3 = arith.constant 0 : index
    %c0_4 = arith.constant 0 : index
    %3 = vector.load %arg3[%c0_3, %c0_4] : memref<1x384xf32, #tpu.memory_space<vmem>>, vector<1x384xf32>
    %4 = vector.broadcast %3 : vector<1x384xf32> to vector<16x384xf32>
    %5 = arith.addf %2, %4 : vector<16x384xf32>
    %6 = arith.truncf %5 : vector<16x384xf32> to vector<16x384xbf16>
    %c0_5 = arith.constant 0 : index
    %c0_6 = arith.constant 0 : index
    %7 = vector.load %arg4[%c0_5, %c0_6] : memref<16x384xbf16, #tpu.memory_space<vmem>>, vector<16x384xbf16>
    tpu.vector_store %arg4[%c0_5, %c0_6], %6 {strides = array<i32>} : memref<16x384xbf16, #tpu.memory_space<vmem>>, vector<16x384xbf16>,
    return
  }
  func.func @transform_0(%arg0: i32) -> (i32, i32) {
    %c0_i32 = arith.constant 0 : i32
    %c0_i32_0 = arith.constant 0 : i32
    return %arg0, %c0_i32 : i32, i32
  }
  func.func @transform_1(%arg0: i32) -> (i32, i32) {
    %c0_i32 = arith.constant 0 : i32
    %c0_i32_0 = arith.constant 0 : i32
    %c0_i32_1 = arith.constant 0 : i32
    return %c0_i32, %c0_i32_0 : i32, i32
  }
  func.func @transform_2(%arg0: i32) -> (i32, i32) {
    %c0_i32 = arith.constant 0 : i32
    %c0_i32_0 = arith.constant 0 : i32
    %c0_i32_1 = arith.constant 0 : i32
    return %c0_i32, %c0_i32_0 : i32, i32
  }
  func.func @transform_3(%arg0: i32) -> (i32, i32) {
    %c0_i32 = arith.constant 0 : i32
    %c0_i32_0 = arith.constant 0 : i32
    return %arg0, %c0_i32 : i32, i32
  }
}

module attributes {stable_mosaic.version = 11 : i64} {
  func.func @_attention_kernel(%arg0: i32, %arg1: memref<1x8x128xbf16, #tpu.memory_space<vmem>>, %arg2: memref<1x8x128xbf16, #tpu.memory_space<vmem>>, %arg3: memref<1x8x128xbf16, #tpu.memory_space<vmem>>, %arg4: memref<1x1x8xf32, #tpu.memory_space<vmem>>, %arg5: memref<1x8x128xbf16, #tpu.memory_space<vmem>>) attributes {dimension_semantics = [#tpu.dimension_semantics<parallel>], iteration_bounds = array<i64: 2>, scalar_prefetch = 0 : i64, scratch_operands = 0 : i64, tpu.core_type = #tpu.core_type<tc>, window_params = [{transform_indices = @transform_0, window_bounds = array<i64: 1, 8, 128>}, {transform_indices = @transform_1, window_bounds = array<i64: 1, 8, 128>}, {transform_indices = @transform_2, window_bounds = array<i64: 1, 8, 128>}, {transform_indices = @transform_3, window_bounds = array<i64: 1, 1, 8>}, {transform_indices = @transform_4, window_bounds = array<i64: 1, 8, 128>}]} {
    %c0 = arith.constant 0 : index
    %c0_0 = arith.constant 0 : index
    %c0_1 = arith.constant 0 : index
    %0 = vector.load %arg1[%c0, %c0_0, %c0_1] : memref<1x8x128xbf16, #tpu.memory_space<vmem>>, vector<1x8x128xbf16>
    %1 = vector.shape_cast %0 : vector<1x8x128xbf16> to vector<8x128xbf16>
    %cst = arith.constant 1.250000e-01 : bf16
    %2 = vector.broadcast %cst : bf16 to vector<8x128xbf16>
    %3 = arith.mulf %1, %2 : vector<8x128xbf16>
    %c0_2 = arith.constant 0 : index
    %c0_3 = arith.constant 0 : index
    %c0_4 = arith.constant 0 : index
    %4 = vector.load %arg2[%c0_2, %c0_3, %c0_4] : memref<1x8x128xbf16, #tpu.memory_space<vmem>>, vector<1x8x128xbf16>
    %5 = vector.shape_cast %4 : vector<1x8x128xbf16> to vector<8x128xbf16>
    %c0_5 = arith.constant 0 : index
    %c0_6 = arith.constant 0 : index
    %c0_7 = arith.constant 0 : index
    %6 = vector.load %arg3[%c0_5, %c0_6, %c0_7] : memref<1x8x128xbf16, #tpu.memory_space<vmem>>, vector<1x8x128xbf16>
    %7 = vector.shape_cast %6 : vector<1x8x128xbf16> to vector<8x128xbf16>
    %c0_8 = arith.constant 0 : index
    %c0_9 = arith.constant 0 : index
    %c0_10 = arith.constant 0 : index
    %8 = vector.load %arg4[%c0_8, %c0_9, %c0_10] : memref<1x1x8xf32, #tpu.memory_space<vmem>>, vector<1x1x8xf32>
    %9 = vector.shape_cast %8 : vector<1x1x8xf32> to vector<1x8xf32>
    %cst_11 = arith.constant 1.000000e+00 : f32
    %10 = vector.broadcast %cst_11 : f32 to vector<1x8xf32>
    %11 = arith.subf %10, %9 : vector<1x8xf32>
    %cst_12 = arith.constant -1.000000e+04 : f32
    %12 = vector.broadcast %cst_12 : f32 to vector<1x8xf32>
    %13 = arith.mulf %11, %12 : vector<1x8xf32>
    %14 = vector.extract_strided_slice %3 {offsets = [0, 0], sizes = [8, 64], strides = [1, 1]} : vector<8x128xbf16> to vector<8x64xbf16>
    %15 = vector.extract_strided_slice %5 {offsets = [0, 0], sizes = [8, 64], strides = [1, 1]} : vector<8x128xbf16> to vector<8x64xbf16>
    %16 = vector.extract_strided_slice %7 {offsets = [0, 0], sizes = [8, 64], strides = [1, 1]} : vector<8x128xbf16> to vector<8x64xbf16>
    %17 = tpu.transpose %15, [1, 0] : vector<8x64xbf16> -> vector<64x8xbf16>
    %cst_13 = arith.constant dense<0.000000e+00> : vector<8x8xf32>
    %18 = tpu.matmul %14, %17, %cst_13 {dimension_numbers = #tpu.dot_dimension_numbers<[1], [0], [0], [1], [0, 0, 1, 1], [], []>} : vector<8x64xbf16>, vector<64x8xbf16>, vector<8x8xf32> -> vector<8x8xf32>
    %19 = vector.broadcast %13 : vector<1x8xf32> to vector<8x8xf32>
    %20 = arith.addf %18, %19 : vector<8x8xf32>
    %cst_14 = arith.constant dense<0xFF800000> : vector<8xf32>
    %21 = vector.multi_reduction <maximumf>, %20, %cst_14 [1] : vector<8x8xf32> to vector<8xf32>
    %22 = vector.shape_cast %21 : vector<8xf32> to vector<8x1xf32>
    %23 = vector.broadcast %22 : vector<8x1xf32> to vector<8x8xf32>
    %24 = arith.subf %20, %23 : vector<8x8xf32>
    %25 = math.exp %24 : vector<8x8xf32>
    %cst_15 = arith.constant dense<0.000000e+00> : vector<8xf32>
    %26 = vector.multi_reduction <add>, %25, %cst_15 [1] : vector<8x8xf32> to vector<8xf32>
    %27 = vector.shape_cast %26 : vector<8xf32> to vector<8x1xf32>
    %28 = arith.truncf %25 : vector<8x8xf32> to vector<8x8xbf16>
    %cst_16 = arith.constant dense<0.000000e+00> : vector<8x64xf32>
    %29 = tpu.matmul %28, %16, %cst_16 {dimension_numbers = #tpu.dot_dimension_numbers<[1], [0], [0], [1], [0, 0, 1, 1], [], []>} : vector<8x8xbf16>, vector<8x64xbf16>, vector<8x64xf32> -> vector<8x64xf32>
    %30 = tpu.reciprocal %27 {approx = true} : vector<8x1xf32> -> vector<8x1xf32>
    %31 = vector.broadcast %30 : vector<8x1xf32> to vector<8x64xf32>
    %32 = arith.mulf %29, %31 : vector<8x64xf32>
    %33 = arith.truncf %32 : vector<8x64xf32> to vector<8x64xbf16>
    %c0_17 = arith.constant 0 : index
    %c0_18 = arith.constant 0 : index
    %c0_19 = arith.constant 0 : index
    %34 = vector.load %arg5[%c0_17, %c0_18, %c0_19] : memref<1x8x128xbf16, #tpu.memory_space<vmem>>, vector<1x8x64xbf16>
    %35 = vector.shape_cast %34 : vector<1x8x64xbf16> to vector<8x64xbf16>
    %36 = vector.shape_cast %33 : vector<8x64xbf16> to vector<1x8x64xbf16>
    tpu.vector_store %arg5[%c0_17, %c0_18, %c0_19], %36 {strides = array<i32>} : memref<1x8x128xbf16, #tpu.memory_space<vmem>>, vector<1x8x64xbf16>,
    %37 = vector.extract_strided_slice %3 {offsets = [0, 64], sizes = [8, 64], strides = [1, 1]} : vector<8x128xbf16> to vector<8x64xbf16>
    %38 = vector.extract_strided_slice %5 {offsets = [0, 64], sizes = [8, 64], strides = [1, 1]} : vector<8x128xbf16> to vector<8x64xbf16>
    %39 = vector.extract_strided_slice %7 {offsets = [0, 64], sizes = [8, 64], strides = [1, 1]} : vector<8x128xbf16> to vector<8x64xbf16>
    %40 = tpu.transpose %38, [1, 0] : vector<8x64xbf16> -> vector<64x8xbf16>
    %cst_20 = arith.constant dense<0.000000e+00> : vector<8x8xf32>
    %41 = tpu.matmul %37, %40, %cst_20 {dimension_numbers = #tpu.dot_dimension_numbers<[1], [0], [0], [1], [0, 0, 1, 1], [], []>} : vector<8x64xbf16>, vector<64x8xbf16>, vector<8x8xf32> -> vector<8x8xf32>
    %42 = vector.broadcast %13 : vector<1x8xf32> to vector<8x8xf32>
    %43 = arith.addf %41, %42 : vector<8x8xf32>
    %cst_21 = arith.constant dense<0xFF800000> : vector<8xf32>
    %44 = vector.multi_reduction <maximumf>, %43, %cst_21 [1] : vector<8x8xf32> to vector<8xf32>
    %45 = vector.shape_cast %44 : vector<8xf32> to vector<8x1xf32>
    %46 = vector.broadcast %45 : vector<8x1xf32> to vector<8x8xf32>
    %47 = arith.subf %43, %46 : vector<8x8xf32>
    %48 = math.exp %47 : vector<8x8xf32>
    %cst_22 = arith.constant dense<0.000000e+00> : vector<8xf32>
    %49 = vector.multi_reduction <add>, %48, %cst_22 [1] : vector<8x8xf32> to vector<8xf32>
    %50 = vector.shape_cast %49 : vector<8xf32> to vector<8x1xf32>
    %51 = arith.truncf %48 : vector<8x8xf32> to vector<8x8xbf16>
    %cst_23 = arith.constant dense<0.000000e+00> : vector<8x64xf32>
    %52 = tpu.matmul %51, %39, %cst_23 {dimension_numbers = #tpu.dot_dimension_numbers<[1], [0], [0], [1], [0, 0, 1, 1], [], []>} : vector<8x8xbf16>, vector<8x64xbf16>, vector<8x64xf32> -> vector<8x64xf32>
    %53 = tpu.reciprocal %50 {approx = true} : vector<8x1xf32> -> vector<8x1xf32>
    %54 = vector.broadcast %53 : vector<8x1xf32> to vector<8x64xf32>
    %55 = arith.mulf %52, %54 : vector<8x64xf32>
    %56 = arith.truncf %55 : vector<8x64xf32> to vector<8x64xbf16>
    %c0_24 = arith.constant 0 : index
    %c0_25 = arith.constant 0 : index
    %c64 = arith.constant 64 : index
    %57 = vector.load %arg5[%c0_24, %c0_25, %c64] : memref<1x8x128xbf16, #tpu.memory_space<vmem>>, vector<1x8x64xbf16>
    %58 = vector.shape_cast %57 : vector<1x8x64xbf16> to vector<8x64xbf16>
    %59 = vector.shape_cast %56 : vector<8x64xbf16> to vector<1x8x64xbf16>
    tpu.vector_store %arg5[%c0_24, %c0_25, %c64], %59 {strides = array<i32>} : memref<1x8x128xbf16, #tpu.memory_space<vmem>>, vector<1x8x64xbf16>,
    return
  }
  func.func @transform_0(%arg0: i32) -> (i32, i32, i32) {
    %c0_i32 = arith.constant 0 : i32
    %c0_i32_0 = arith.constant 0 : i32
    %c0_i32_1 = arith.constant 0 : i32
    return %arg0, %c0_i32, %c0_i32_0 : i32, i32, i32
  }
  func.func @transform_1(%arg0: i32) -> (i32, i32, i32) {
    %c0_i32 = arith.constant 0 : i32
    %c1_i32 = arith.constant 1 : i32
    %c0_i32_0 = arith.constant 0 : i32
    return %arg0, %c0_i32, %c1_i32 : i32, i32, i32
  }
  func.func @transform_2(%arg0: i32) -> (i32, i32, i32) {
    %c0_i32 = arith.constant 0 : i32
    %c2_i32 = arith.constant 2 : i32
    %c0_i32_0 = arith.constant 0 : i32
    return %arg0, %c0_i32, %c2_i32 : i32, i32, i32
  }
  func.func @transform_3(%arg0: i32) -> (i32, i32, i32) {
    %c0_i32 = arith.constant 0 : i32
    %c0_i32_0 = arith.constant 0 : i32
    %c0_i32_1 = arith.constant 0 : i32
    return %arg0, %c0_i32, %c0_i32_0 : i32, i32, i32
  }
  func.func @transform_4(%arg0: i32) -> (i32, i32, i32) {
    %c0_i32 = arith.constant 0 : i32
    %c0_i32_0 = arith.constant 0 : i32
    %c0_i32_1 = arith.constant 0 : i32
    return %arg0, %c0_i32, %c0_i32_0 : i32, i32, i32
  }
}

module attributes {stable_mosaic.version = 11 : i64} {
  func.func @_linear_res_ln_kernel(%arg0: i32, %arg1: memref<16x128xbf16, #tpu.memory_space<vmem>>, %arg2: memref<128x128xbf16, #tpu.memory_space<vmem>>, %arg3: memref<1x128xf32, #tpu.memory_space<vmem>>, %arg4: memref<16x128xbf16, #tpu.memory_space<vmem>>, %arg5: memref<1x128xf32, #tpu.memory_space<vmem>>, %arg6: memref<1x128xf32, #tpu.memory_space<vmem>>, %arg7: memref<16x128xbf16, #tpu.memory_space<vmem>>) attributes {dimension_semantics = [#tpu.dimension_semantics<parallel>], iteration_bounds = array<i64: 1>, scalar_prefetch = 0 : i64, scratch_operands = 0 : i64, tpu.core_type = #tpu.core_type<tc>, window_params = [{transform_indices = @transform_0, window_bounds = array<i64: 16, 128>}, {pipeline_mode = #tpu.pipeline_mode<synchronous>, transform_indices = @transform_1, window_bounds = array<i64: 128, 128>}, {pipeline_mode = #tpu.pipeline_mode<synchronous>, transform_indices = @transform_2, window_bounds = array<i64: 1, 128>}, {transform_indices = @transform_3, window_bounds = array<i64: 16, 128>}, {pipeline_mode = #tpu.pipeline_mode<synchronous>, transform_indices = @transform_4, window_bounds = array<i64: 1, 128>}, {pipeline_mode = #tpu.pipeline_mode<synchronous>, transform_indices = @transform_5, window_bounds = array<i64: 1, 128>}, {transform_indices = @transform_6, window_bounds = array<i64: 16, 128>}]} {
    %c0 = arith.constant 0 : index
    %c0_0 = arith.constant 0 : index
    %0 = vector.load %arg1[%c0, %c0_0] : memref<16x128xbf16, #tpu.memory_space<vmem>>, vector<16x128xbf16>
    %c0_1 = arith.constant 0 : index
    %c0_2 = arith.constant 0 : index
    %1 = vector.load %arg2[%c0_1, %c0_2] : memref<128x128xbf16, #tpu.memory_space<vmem>>, vector<128x128xbf16>
    %cst = arith.constant dense<0.000000e+00> : vector<16x128xf32>
    %2 = tpu.matmul %0, %1, %cst {dimension_numbers = #tpu.dot_dimension_numbers<[1], [0], [0], [1], [0, 0, 1, 1], [], []>} : vector<16x128xbf16>, vector<128x128xbf16>, vector<16x128xf32> -> vector<16x128xf32>
    %c0_3 = arith.constant 0 : index
    %c0_4 = arith.constant 0 : index
    %3 = vector.load %arg3[%c0_3, %c0_4] : memref<1x128xf32, #tpu.memory_space<vmem>>, vector<1x128xf32>
    %4 = vector.broadcast %3 : vector<1x128xf32> to vector<16x128xf32>
    %5 = arith.addf %2, %4 : vector<16x128xf32>
    %c0_5 = arith.constant 0 : index
    %c0_6 = arith.constant 0 : index
    %6 = vector.load %arg4[%c0_5, %c0_6] : memref<16x128xbf16, #tpu.memory_space<vmem>>, vector<16x128xbf16>
    %7 = arith.extf %6 : vector<16x128xbf16> to vector<16x128xf32>
    %8 = arith.addf %5, %7 : vector<16x128xf32>
    %cst_7 = arith.constant dense<0.000000e+00> : vector<16xf32>
    %9 = vector.multi_reduction <add>, %8, %cst_7 [1] : vector<16x128xf32> to vector<16xf32>
    %10 = vector.shape_cast %9 : vector<16xf32> to vector<16x1xf32>
    %cst_8 = arith.constant 1.280000e+02 : f32
    %11 = vector.broadcast %cst_8 : f32 to vector<16x1xf32>
    %12 = arith.divf %10, %11 : vector<16x1xf32>
    %13 = vector.broadcast %12 : vector<16x1xf32> to vector<16x128xf32>
    %14 = arith.subf %8, %13 : vector<16x128xf32>
    %15 = arith.mulf %14, %14 : vector<16x128xf32>
    %cst_9 = arith.constant dense<0.000000e+00> : vector<16xf32>
    %16 = vector.multi_reduction <add>, %15, %cst_9 [1] : vector<16x128xf32> to vector<16xf32>
    %17 = vector.shape_cast %16 : vector<16xf32> to vector<16x1xf32>
    %cst_10 = arith.constant 1.280000e+02 : f32
    %18 = vector.broadcast %cst_10 : f32 to vector<16x1xf32>
    %19 = arith.divf %17, %18 : vector<16x1xf32>
    %20 = vector.broadcast %12 : vector<16x1xf32> to vector<16x128xf32>
    %21 = arith.subf %8, %20 : vector<16x128xf32>
    %cst_11 = arith.constant 9.99999996E-13 : f32
    %22 = vector.broadcast %cst_11 : f32 to vector<16x1xf32>
    %23 = arith.addf %19, %22 : vector<16x1xf32>
    %24 = math.rsqrt %23 : vector<16x1xf32>
    %25 = vector.broadcast %24 : vector<16x1xf32> to vector<16x128xf32>
    %26 = arith.mulf %21, %25 : vector<16x128xf32>
    %c0_12 = arith.constant 0 : index
    %c0_13 = arith.constant 0 : index
    %27 = vector.load %arg5[%c0_12, %c0_13] : memref<1x128xf32, #tpu.memory_space<vmem>>, vector<1x128xf32>
    %28 = vector.broadcast %27 : vector<1x128xf32> to vector<16x128xf32>
    %29 = arith.mulf %26, %28 : vector<16x128xf32>
    %c0_14 = arith.constant 0 : index
    %c0_15 = arith.constant 0 : index
    %30 = vector.load %arg6[%c0_14, %c0_15] : memref<1x128xf32, #tpu.memory_space<vmem>>, vector<1x128xf32>
    %31 = vector.broadcast %30 : vector<1x128xf32> to vector<16x128xf32>
    %32 = arith.addf %29, %31 : vector<16x128xf32>
    %33 = arith.truncf %32 : vector<16x128xf32> to vector<16x128xbf16>
    %c0_16 = arith.constant 0 : index
    %c0_17 = arith.constant 0 : index
    %34 = vector.load %arg7[%c0_16, %c0_17] : memref<16x128xbf16, #tpu.memory_space<vmem>>, vector<16x128xbf16>
    tpu.vector_store %arg7[%c0_16, %c0_17], %33 {strides = array<i32>} : memref<16x128xbf16, #tpu.memory_space<vmem>>, vector<16x128xbf16>,
    return
  }
  func.func @transform_0(%arg0: i32) -> (i32, i32) {
    %c0_i32 = arith.constant 0 : i32
    %c0_i32_0 = arith.constant 0 : i32
    return %arg0, %c0_i32 : i32, i32
  }
  func.func @transform_1(%arg0: i32) -> (i32, i32) {
    %c0_i32 = arith.constant 0 : i32
    %c0_i32_0 = arith.constant 0 : i32
    %c0_i32_1 = arith.constant 0 : i32
    return %c0_i32, %c0_i32_0 : i32, i32
  }
  func.func @transform_2(%arg0: i32) -> (i32, i32) {
    %c0_i32 = arith.constant 0 : i32
    %c0_i32_0 = arith.constant 0 : i32
    %c0_i32_1 = arith.constant 0 : i32
    return %c0_i32, %c0_i32_0 : i32, i32
  }
  func.func @transform_3(%arg0: i32) -> (i32, i32) {
    %c0_i32 = arith.constant 0 : i32
    %c0_i32_0 = arith.constant 0 : i32
    return %arg0, %c0_i32 : i32, i32
  }
  func.func @transform_4(%arg0: i32) -> (i32, i32) {
    %c0_i32 = arith.constant 0 : i32
    %c0_i32_0 = arith.constant 0 : i32
    %c0_i32_1 = arith.constant 0 : i32
    return %c0_i32, %c0_i32_0 : i32, i32
  }
  func.func @transform_5(%arg0: i32) -> (i32, i32) {
    %c0_i32 = arith.constant 0 : i32
    %c0_i32_0 = arith.constant 0 : i32
    %c0_i32_1 = arith.constant 0 : i32
    return %c0_i32, %c0_i32_0 : i32, i32
  }
  func.func @transform_6(%arg0: i32) -> (i32, i32) {
    %c0_i32 = arith.constant 0 : i32
    %c0_i32_0 = arith.constant 0 : i32
    return %arg0, %c0_i32 : i32, i32
  }
}

module attributes {stable_mosaic.version = 11 : i64} {
  func.func @_linear_kernel(%arg0: i32, %arg1: memref<16x128xbf16, #tpu.memory_space<vmem>>, %arg2: memref<128x256xbf16, #tpu.memory_space<vmem>>, %arg3: memref<1x256xf32, #tpu.memory_space<vmem>>, %arg4: memref<16x256xbf16, #tpu.memory_space<vmem>>) attributes {dimension_semantics = [#tpu.dimension_semantics<parallel>], iteration_bounds = array<i64: 1>, scalar_prefetch = 0 : i64, scratch_operands = 0 : i64, tpu.core_type = #tpu.core_type<tc>, window_params = [{transform_indices = @transform_0, window_bounds = array<i64: 16, 128>}, {pipeline_mode = #tpu.pipeline_mode<synchronous>, transform_indices = @transform_1, window_bounds = array<i64: 128, 256>}, {pipeline_mode = #tpu.pipeline_mode<synchronous>, transform_indices = @transform_2, window_bounds = array<i64: 1, 256>}, {transform_indices = @transform_3, window_bounds = array<i64: 16, 256>}]} {
    %c0 = arith.constant 0 : index
    %c0_0 = arith.constant 0 : index
    %0 = vector.load %arg1[%c0, %c0_0] : memref<16x128xbf16, #tpu.memory_space<vmem>>, vector<16x128xbf16>
    %c0_1 = arith.constant 0 : index
    %c0_2 = arith.constant 0 : index
    %1 = vector.load %arg2[%c0_1, %c0_2] : memref<128x256xbf16, #tpu.memory_space<vmem>>, vector<128x256xbf16>
    %cst = arith.constant dense<0.000000e+00> : vector<16x256xf32>
    %2 = tpu.matmul %0, %1, %cst {dimension_numbers = #tpu.dot_dimension_numbers<[1], [0], [0], [1], [0, 0, 1, 1], [], []>} : vector<16x128xbf16>, vector<128x256xbf16>, vector<16x256xf32> -> vector<16x256xf32>
    %c0_3 = arith.constant 0 : index
    %c0_4 = arith.constant 0 : index
    %3 = vector.load %arg3[%c0_3, %c0_4] : memref<1x256xf32, #tpu.memory_space<vmem>>, vector<1x256xf32>
    %4 = vector.broadcast %3 : vector<1x256xf32> to vector<16x256xf32>
    %5 = arith.addf %2, %4 : vector<16x256xf32>
    %cst_5 = arith.constant 5.000000e-01 : f32
    %6 = vector.broadcast %cst_5 : f32 to vector<16x256xf32>
    %7 = arith.mulf %6, %5 : vector<16x256xf32>
    %cst_6 = arith.constant 0.707106769 : f32
    %8 = vector.broadcast %cst_6 : f32 to vector<16x256xf32>
    %9 = arith.mulf %5, %8 : vector<16x256xf32>
    %10 = math.erf %9 : vector<16x256xf32>
    %cst_7 = arith.constant 1.000000e+00 : f32
    %11 = vector.broadcast %cst_7 : f32 to vector<16x256xf32>
    %12 = arith.addf %11, %10 : vector<16x256xf32>
    %13 = arith.mulf %7, %12 : vector<16x256xf32>
    %14 = arith.truncf %13 : vector<16x256xf32> to vector<16x256xbf16>
    %c0_8 = arith.constant 0 : index
    %c0_9 = arith.constant 0 : index
    %15 = vector.load %arg4[%c0_8, %c0_9] : memref<16x256xbf16, #tpu.memory_space<vmem>>, vector<16x256xbf16>
    tpu.vector_store %arg4[%c0_8, %c0_9], %14 {strides = array<i32>} : memref<16x256xbf16, #tpu.memory_space<vmem>>, vector<16x256xbf16>,
    return
  }
  func.func @transform_0(%arg0: i32) -> (i32, i32) {
    %c0_i32 = arith.constant 0 : i32
    %c0_i32_0 = arith.constant 0 : i32
    return %arg0, %c0_i32 : i32, i32
  }
  func.func @transform_1(%arg0: i32) -> (i32, i32) {
    %c0_i32 = arith.constant 0 : i32
    %c0_i32_0 = arith.constant 0 : i32
    %c0_i32_1 = arith.constant 0 : i32
    return %c0_i32, %c0_i32_0 : i32, i32
  }
  func.func @transform_2(%arg0: i32) -> (i32, i32) {
    %c0_i32 = arith.constant 0 : i32
    %c0_i32_0 = arith.constant 0 : i32
    %c0_i32_1 = arith.constant 0 : i32
    return %c0_i32, %c0_i32_0 : i32, i32
  }
  func.func @transform_3(%arg0: i32) -> (i32, i32) {
    %c0_i32 = arith.constant 0 : i32
    %c0_i32_0 = arith.constant 0 : i32
    return %arg0, %c0_i32 : i32, i32
  }
}

module attributes {stable_mosaic.version = 11 : i64} {
  func.func @_linear_res_ln_kernel(%arg0: i32, %arg1: memref<16x256xbf16, #tpu.memory_space<vmem>>, %arg2: memref<256x128xbf16, #tpu.memory_space<vmem>>, %arg3: memref<1x128xf32, #tpu.memory_space<vmem>>, %arg4: memref<16x128xbf16, #tpu.memory_space<vmem>>, %arg5: memref<1x128xf32, #tpu.memory_space<vmem>>, %arg6: memref<1x128xf32, #tpu.memory_space<vmem>>, %arg7: memref<16x128xbf16, #tpu.memory_space<vmem>>) attributes {dimension_semantics = [#tpu.dimension_semantics<parallel>], iteration_bounds = array<i64: 1>, scalar_prefetch = 0 : i64, scratch_operands = 0 : i64, tpu.core_type = #tpu.core_type<tc>, window_params = [{transform_indices = @transform_0, window_bounds = array<i64: 16, 256>}, {pipeline_mode = #tpu.pipeline_mode<synchronous>, transform_indices = @transform_1, window_bounds = array<i64: 256, 128>}, {pipeline_mode = #tpu.pipeline_mode<synchronous>, transform_indices = @transform_2, window_bounds = array<i64: 1, 128>}, {transform_indices = @transform_3, window_bounds = array<i64: 16, 128>}, {pipeline_mode = #tpu.pipeline_mode<synchronous>, transform_indices = @transform_4, window_bounds = array<i64: 1, 128>}, {pipeline_mode = #tpu.pipeline_mode<synchronous>, transform_indices = @transform_5, window_bounds = array<i64: 1, 128>}, {transform_indices = @transform_6, window_bounds = array<i64: 16, 128>}]} {
    %c0 = arith.constant 0 : index
    %c0_0 = arith.constant 0 : index
    %0 = vector.load %arg1[%c0, %c0_0] : memref<16x256xbf16, #tpu.memory_space<vmem>>, vector<16x256xbf16>
    %c0_1 = arith.constant 0 : index
    %c0_2 = arith.constant 0 : index
    %1 = vector.load %arg2[%c0_1, %c0_2] : memref<256x128xbf16, #tpu.memory_space<vmem>>, vector<256x128xbf16>
    %cst = arith.constant dense<0.000000e+00> : vector<16x128xf32>
    %2 = tpu.matmul %0, %1, %cst {dimension_numbers = #tpu.dot_dimension_numbers<[1], [0], [0], [1], [0, 0, 1, 1], [], []>} : vector<16x256xbf16>, vector<256x128xbf16>, vector<16x128xf32> -> vector<16x128xf32>
    %c0_3 = arith.constant 0 : index
    %c0_4 = arith.constant 0 : index
    %3 = vector.load %arg3[%c0_3, %c0_4] : memref<1x128xf32, #tpu.memory_space<vmem>>, vector<1x128xf32>
    %4 = vector.broadcast %3 : vector<1x128xf32> to vector<16x128xf32>
    %5 = arith.addf %2, %4 : vector<16x128xf32>
    %c0_5 = arith.constant 0 : index
    %c0_6 = arith.constant 0 : index
    %6 = vector.load %arg4[%c0_5, %c0_6] : memref<16x128xbf16, #tpu.memory_space<vmem>>, vector<16x128xbf16>
    %7 = arith.extf %6 : vector<16x128xbf16> to vector<16x128xf32>
    %8 = arith.addf %5, %7 : vector<16x128xf32>
    %cst_7 = arith.constant dense<0.000000e+00> : vector<16xf32>
    %9 = vector.multi_reduction <add>, %8, %cst_7 [1] : vector<16x128xf32> to vector<16xf32>
    %10 = vector.shape_cast %9 : vector<16xf32> to vector<16x1xf32>
    %cst_8 = arith.constant 1.280000e+02 : f32
    %11 = vector.broadcast %cst_8 : f32 to vector<16x1xf32>
    %12 = arith.divf %10, %11 : vector<16x1xf32>
    %13 = vector.broadcast %12 : vector<16x1xf32> to vector<16x128xf32>
    %14 = arith.subf %8, %13 : vector<16x128xf32>
    %15 = arith.mulf %14, %14 : vector<16x128xf32>
    %cst_9 = arith.constant dense<0.000000e+00> : vector<16xf32>
    %16 = vector.multi_reduction <add>, %15, %cst_9 [1] : vector<16x128xf32> to vector<16xf32>
    %17 = vector.shape_cast %16 : vector<16xf32> to vector<16x1xf32>
    %cst_10 = arith.constant 1.280000e+02 : f32
    %18 = vector.broadcast %cst_10 : f32 to vector<16x1xf32>
    %19 = arith.divf %17, %18 : vector<16x1xf32>
    %20 = vector.broadcast %12 : vector<16x1xf32> to vector<16x128xf32>
    %21 = arith.subf %8, %20 : vector<16x128xf32>
    %cst_11 = arith.constant 9.99999996E-13 : f32
    %22 = vector.broadcast %cst_11 : f32 to vector<16x1xf32>
    %23 = arith.addf %19, %22 : vector<16x1xf32>
    %24 = math.rsqrt %23 : vector<16x1xf32>
    %25 = vector.broadcast %24 : vector<16x1xf32> to vector<16x128xf32>
    %26 = arith.mulf %21, %25 : vector<16x128xf32>
    %c0_12 = arith.constant 0 : index
    %c0_13 = arith.constant 0 : index
    %27 = vector.load %arg5[%c0_12, %c0_13] : memref<1x128xf32, #tpu.memory_space<vmem>>, vector<1x128xf32>
    %28 = vector.broadcast %27 : vector<1x128xf32> to vector<16x128xf32>
    %29 = arith.mulf %26, %28 : vector<16x128xf32>
    %c0_14 = arith.constant 0 : index
    %c0_15 = arith.constant 0 : index
    %30 = vector.load %arg6[%c0_14, %c0_15] : memref<1x128xf32, #tpu.memory_space<vmem>>, vector<1x128xf32>
    %31 = vector.broadcast %30 : vector<1x128xf32> to vector<16x128xf32>
    %32 = arith.addf %29, %31 : vector<16x128xf32>
    %33 = arith.truncf %32 : vector<16x128xf32> to vector<16x128xbf16>
    %c0_16 = arith.constant 0 : index
    %c0_17 = arith.constant 0 : index
    %34 = vector.load %arg7[%c0_16, %c0_17] : memref<16x128xbf16, #tpu.memory_space<vmem>>, vector<16x128xbf16>
    tpu.vector_store %arg7[%c0_16, %c0_17], %33 {strides = array<i32>} : memref<16x128xbf16, #tpu.memory_space<vmem>>, vector<16x128xbf16>,
    return
  }
  func.func @transform_0(%arg0: i32) -> (i32, i32) {
    %c0_i32 = arith.constant 0 : i32
    %c0_i32_0 = arith.constant 0 : i32
    return %arg0, %c0_i32 : i32, i32
  }
  func.func @transform_1(%arg0: i32) -> (i32, i32) {
    %c0_i32 = arith.constant 0 : i32
    %c0_i32_0 = arith.constant 0 : i32
    %c0_i32_1 = arith.constant 0 : i32
    return %c0_i32, %c0_i32_0 : i32, i32
  }
  func.func @transform_2(%arg0: i32) -> (i32, i32) {
    %c0_i32 = arith.constant 0 : i32
    %c0_i32_0 = arith.constant 0 : i32
    %c0_i32_1 = arith.constant 0 : i32
    return %c0_i32, %c0_i32_0 : i32, i32
  }
  func.func @transform_3(%arg0: i32) -> (i32, i32) {
    %c0_i32 = arith.constant 0 : i32
    %c0_i32_0 = arith.constant 0 : i32
    return %arg0, %c0_i32 : i32, i32
  }
  func.func @transform_4(%arg0: i32) -> (i32, i32) {
    %c0_i32 = arith.constant 0 : i32
    %c0_i32_0 = arith.constant 0 : i32
    %c0_i32_1 = arith.constant 0 : i32
    return %c0_i32, %c0_i32_0 : i32, i32
  }
  func.func @transform_5(%arg0: i32) -> (i32, i32) {
    %c0_i32 = arith.constant 0 : i32
    %c0_i32_0 = arith.constant 0 : i32
    %c0_i32_1 = arith.constant 0 : i32
    return %c0_i32, %c0_i32_0 : i32, i32
  }
  func.func @transform_6(%arg0: i32) -> (i32, i32) {
    %c0_i32 = arith.constant 0 : i32
    %c0_i32_0 = arith.constant 0 : i32
    return %arg0, %c0_i32 : i32, i32
  }
}

module attributes {stable_mosaic.version = 11 : i64} {
  func.func @_head_kernel(%arg0: i32, %arg1: memref<2x128xbf16, #tpu.memory_space<vmem>>, %arg2: memref<2x4xbf16, #tpu.memory_space<vmem>>, %arg3: memref<4x64xbf16, #tpu.memory_space<vmem>>, %arg4: memref<1x64xf32, #tpu.memory_space<vmem>>, %arg5: memref<64x128xbf16, #tpu.memory_space<vmem>>, %arg6: memref<1x128xf32, #tpu.memory_space<vmem>>, %arg7: memref<128x256xbf16, #tpu.memory_space<vmem>>, %arg8: memref<128x256xbf16, #tpu.memory_space<vmem>>, %arg9: memref<1x256xf32, #tpu.memory_space<vmem>>, %arg10: memref<256x128xbf16, #tpu.memory_space<vmem>>, %arg11: memref<1x128xf32, #tpu.memory_space<vmem>>, %arg12: memref<128x2xbf16, #tpu.memory_space<vmem>>, %arg13: memref<1x2xf32, #tpu.memory_space<vmem>>, %arg14: memref<2x2xf32, #tpu.memory_space<vmem>>) attributes {dimension_semantics = [#tpu.dimension_semantics<arbitrary>], iteration_bounds = array<i64: 1>, scalar_prefetch = 0 : i64, scratch_operands = 0 : i64, tpu.core_type = #tpu.core_type<tc>, window_params = [{pipeline_mode = #tpu.pipeline_mode<synchronous>, transform_indices = @transform_0, window_bounds = array<i64: 2, 128>}, {pipeline_mode = #tpu.pipeline_mode<synchronous>, transform_indices = @transform_1, window_bounds = array<i64: 2, 4>}, {pipeline_mode = #tpu.pipeline_mode<synchronous>, transform_indices = @transform_2, window_bounds = array<i64: 4, 64>}, {pipeline_mode = #tpu.pipeline_mode<synchronous>, transform_indices = @transform_3, window_bounds = array<i64: 1, 64>}, {pipeline_mode = #tpu.pipeline_mode<synchronous>, transform_indices = @transform_4, window_bounds = array<i64: 64, 128>}, {pipeline_mode = #tpu.pipeline_mode<synchronous>, transform_indices = @transform_5, window_bounds = array<i64: 1, 128>}, {pipeline_mode = #tpu.pipeline_mode<synchronous>, transform_indices = @transform_6, window_bounds = array<i64: 128, 256>}, {pipeline_mode = #tpu.pipeline_mode<synchronous>, transform_indices = @transform_7, window_bounds = array<i64: 128, 256>}, {pipeline_mode = #tpu.pipeline_mode<synchronous>, transform_indices = @transform_8, window_bounds = array<i64: 1, 256>}, {pipeline_mode = #tpu.pipeline_mode<synchronous>, transform_indices = @transform_9, window_bounds = array<i64: 256, 128>}, {pipeline_mode = #tpu.pipeline_mode<synchronous>, transform_indices = @transform_10, window_bounds = array<i64: 1, 128>}, {pipeline_mode = #tpu.pipeline_mode<synchronous>, transform_indices = @transform_11, window_bounds = array<i64: 128, 2>}, {pipeline_mode = #tpu.pipeline_mode<synchronous>, transform_indices = @transform_12, window_bounds = array<i64: 1, 2>}, {pipeline_mode = #tpu.pipeline_mode<synchronous>, transform_indices = @transform_13, window_bounds = array<i64: 2, 2>}]} {
    %c0 = arith.constant 0 : index
    %c0_0 = arith.constant 0 : index
    %0 = vector.load %arg1[%c0, %c0_0] : memref<2x128xbf16, #tpu.memory_space<vmem>>, vector<2x128xbf16>
    %c0_1 = arith.constant 0 : index
    %c0_2 = arith.constant 0 : index
    %1 = vector.load %arg2[%c0_1, %c0_2] : memref<2x4xbf16, #tpu.memory_space<vmem>>, vector<2x4xbf16>
    %c0_3 = arith.constant 0 : index
    %c0_4 = arith.constant 0 : index
    %2 = vector.load %arg3[%c0_3, %c0_4] : memref<4x64xbf16, #tpu.memory_space<vmem>>, vector<4x64xbf16>
    %cst = arith.constant dense<0.000000e+00> : vector<2x64xf32>
    %3 = tpu.matmul %1, %2, %cst {dimension_numbers = #tpu.dot_dimension_numbers<[1], [0], [0], [1], [0, 0, 1, 1], [], []>} : vector<2x4xbf16>, vector<4x64xbf16>, vector<2x64xf32> -> vector<2x64xf32>
    %c0_5 = arith.constant 0 : index
    %c0_6 = arith.constant 0 : index
    %4 = vector.load %arg4[%c0_5, %c0_6] : memref<1x64xf32, #tpu.memory_space<vmem>>, vector<1x64xf32>
    %5 = vector.broadcast %4 : vector<1x64xf32> to vector<2x64xf32>
    %6 = arith.addf %3, %5 : vector<2x64xf32>
    %cst_7 = arith.constant 0.000000e+00 : f32
    %7 = vector.broadcast %cst_7 : f32 to vector<2x64xf32>
    %8 = arith.maximumf %6, %7 : vector<2x64xf32>
    %9 = arith.truncf %8 : vector<2x64xf32> to vector<2x64xbf16>
    %c0_8 = arith.constant 0 : index
    %c0_9 = arith.constant 0 : index
    %10 = vector.load %arg5[%c0_8, %c0_9] : memref<64x128xbf16, #tpu.memory_space<vmem>>, vector<64x128xbf16>
    %cst_10 = arith.constant dense<0.000000e+00> : vector<2x128xf32>
    %11 = tpu.matmul %9, %10, %cst_10 {dimension_numbers = #tpu.dot_dimension_numbers<[1], [0], [0], [1], [0, 0, 1, 1], [], []>} : vector<2x64xbf16>, vector<64x128xbf16>, vector<2x128xf32> -> vector<2x128xf32>
    %c0_11 = arith.constant 0 : index
    %c0_12 = arith.constant 0 : index
    %12 = vector.load %arg6[%c0_11, %c0_12] : memref<1x128xf32, #tpu.memory_space<vmem>>, vector<1x128xf32>
    %13 = vector.broadcast %12 : vector<1x128xf32> to vector<2x128xf32>
    %14 = arith.addf %11, %13 : vector<2x128xf32>
    %cst_13 = arith.constant 0.000000e+00 : f32
    %15 = vector.broadcast %cst_13 : f32 to vector<2x128xf32>
    %16 = arith.maximumf %14, %15 : vector<2x128xf32>
    %c0_14 = arith.constant 0 : index
    %c0_15 = arith.constant 0 : index
    %17 = vector.load %arg7[%c0_14, %c0_15] : memref<128x256xbf16, #tpu.memory_space<vmem>>, vector<128x256xbf16>
    %cst_16 = arith.constant dense<0.000000e+00> : vector<2x256xf32>
    %18 = tpu.matmul %0, %17, %cst_16 {dimension_numbers = #tpu.dot_dimension_numbers<[1], [0], [0], [1], [0, 0, 1, 1], [], []>} : vector<2x128xbf16>, vector<128x256xbf16>, vector<2x256xf32> -> vector<2x256xf32>
    %19 = arith.truncf %16 : vector<2x128xf32> to vector<2x128xbf16>
    %c0_17 = arith.constant 0 : index
    %c0_18 = arith.constant 0 : index
    %20 = vector.load %arg8[%c0_17, %c0_18] : memref<128x256xbf16, #tpu.memory_space<vmem>>, vector<128x256xbf16>
    %cst_19 = arith.constant dense<0.000000e+00> : vector<2x256xf32>
    %21 = tpu.matmul %19, %20, %cst_19 {dimension_numbers = #tpu.dot_dimension_numbers<[1], [0], [0], [1], [0, 0, 1, 1], [], []>} : vector<2x128xbf16>, vector<128x256xbf16>, vector<2x256xf32> -> vector<2x256xf32>
    %22 = arith.addf %18, %21 : vector<2x256xf32>
    %c0_20 = arith.constant 0 : index
    %c0_21 = arith.constant 0 : index
    %23 = vector.load %arg9[%c0_20, %c0_21] : memref<1x256xf32, #tpu.memory_space<vmem>>, vector<1x256xf32>
    %24 = vector.broadcast %23 : vector<1x256xf32> to vector<2x256xf32>
    %25 = arith.addf %22, %24 : vector<2x256xf32>
    %cst_22 = arith.constant 0.000000e+00 : f32
    %26 = vector.broadcast %cst_22 : f32 to vector<2x256xf32>
    %27 = arith.maximumf %25, %26 : vector<2x256xf32>
    %28 = arith.truncf %27 : vector<2x256xf32> to vector<2x256xbf16>
    %c0_23 = arith.constant 0 : index
    %c0_24 = arith.constant 0 : index
    %29 = vector.load %arg10[%c0_23, %c0_24] : memref<256x128xbf16, #tpu.memory_space<vmem>>, vector<256x128xbf16>
    %cst_25 = arith.constant dense<0.000000e+00> : vector<2x128xf32>
    %30 = tpu.matmul %28, %29, %cst_25 {dimension_numbers = #tpu.dot_dimension_numbers<[1], [0], [0], [1], [0, 0, 1, 1], [], []>} : vector<2x256xbf16>, vector<256x128xbf16>, vector<2x128xf32> -> vector<2x128xf32>
    %c0_26 = arith.constant 0 : index
    %c0_27 = arith.constant 0 : index
    %31 = vector.load %arg11[%c0_26, %c0_27] : memref<1x128xf32, #tpu.memory_space<vmem>>, vector<1x128xf32>
    %32 = vector.broadcast %31 : vector<1x128xf32> to vector<2x128xf32>
    %33 = arith.addf %30, %32 : vector<2x128xf32>
    %cst_28 = arith.constant 0.000000e+00 : f32
    %34 = vector.broadcast %cst_28 : f32 to vector<2x128xf32>
    %35 = arith.maximumf %33, %34 : vector<2x128xf32>
    %36 = arith.truncf %35 : vector<2x128xf32> to vector<2x128xbf16>
    %c0_29 = arith.constant 0 : index
    %c0_30 = arith.constant 0 : index
    %37 = vector.load %arg12[%c0_29, %c0_30] : memref<128x2xbf16, #tpu.memory_space<vmem>>, vector<128x2xbf16>
    %cst_31 = arith.constant dense<0.000000e+00> : vector<2x2xf32>
    %38 = tpu.matmul %36, %37, %cst_31 {dimension_numbers = #tpu.dot_dimension_numbers<[1], [0], [0], [1], [0, 0, 1, 1], [], []>} : vector<2x128xbf16>, vector<128x2xbf16>, vector<2x2xf32> -> vector<2x2xf32>
    %c0_32 = arith.constant 0 : index
    %c0_33 = arith.constant 0 : index
    %39 = vector.load %arg13[%c0_32, %c0_33] : memref<1x2xf32, #tpu.memory_space<vmem>>, vector<1x2xf32>
    %40 = vector.broadcast %39 : vector<1x2xf32> to vector<2x2xf32>
    %41 = arith.addf %38, %40 : vector<2x2xf32>
    %c0_34 = arith.constant 0 : index
    %c0_35 = arith.constant 0 : index
    %42 = vector.load %arg14[%c0_34, %c0_35] : memref<2x2xf32, #tpu.memory_space<vmem>>, vector<2x2xf32>
    tpu.vector_store %arg14[%c0_34, %c0_35], %41 {strides = array<i32>} : memref<2x2xf32, #tpu.memory_space<vmem>>, vector<2x2xf32>,
    return
  }
  func.func @transform_0(%arg0: i32) -> (i32, i32) {
    %c0_i32 = arith.constant 0 : i32
    %c0_i32_0 = arith.constant 0 : i32
    %c0_i32_1 = arith.constant 0 : i32
    return %c0_i32, %c0_i32_0 : i32, i32
  }
  func.func @transform_1(%arg0: i32) -> (i32, i32) {
    %c0_i32 = arith.constant 0 : i32
    %c0_i32_0 = arith.constant 0 : i32
    %c0_i32_1 = arith.constant 0 : i32
    return %c0_i32, %c0_i32_0 : i32, i32
  }
  func.func @transform_2(%arg0: i32) -> (i32, i32) {
    %c0_i32 = arith.constant 0 : i32
    %c0_i32_0 = arith.constant 0 : i32
    %c0_i32_1 = arith.constant 0 : i32
    return %c0_i32, %c0_i32_0 : i32, i32
  }
  func.func @transform_3(%arg0: i32) -> (i32, i32) {
    %c0_i32 = arith.constant 0 : i32
    %c0_i32_0 = arith.constant 0 : i32
    %c0_i32_1 = arith.constant 0 : i32
    return %c0_i32, %c0_i32_0 : i32, i32
  }
  func.func @transform_4(%arg0: i32) -> (i32, i32) {
    %c0_i32 = arith.constant 0 : i32
    %c0_i32_0 = arith.constant 0 : i32
    %c0_i32_1 = arith.constant 0 : i32
    return %c0_i32, %c0_i32_0 : i32, i32
  }
  func.func @transform_5(%arg0: i32) -> (i32, i32) {
    %c0_i32 = arith.constant 0 : i32
    %c0_i32_0 = arith.constant 0 : i32
    %c0_i32_1 = arith.constant 0 : i32
    return %c0_i32, %c0_i32_0 : i32, i32
  }
  func.func @transform_6(%arg0: i32) -> (i32, i32) {
    %c0_i32 = arith.constant 0 : i32
    %c0_i32_0 = arith.constant 0 : i32
    %c0_i32_1 = arith.constant 0 : i32
    return %c0_i32, %c0_i32_0 : i32, i32
  }
  func.func @transform_7(%arg0: i32) -> (i32, i32) {
    %c0_i32 = arith.constant 0 : i32
    %c0_i32_0 = arith.constant 0 : i32
    %c0_i32_1 = arith.constant 0 : i32
    return %c0_i32, %c0_i32_0 : i32, i32
  }
  func.func @transform_8(%arg0: i32) -> (i32, i32) {
    %c0_i32 = arith.constant 0 : i32
    %c0_i32_0 = arith.constant 0 : i32
    %c0_i32_1 = arith.constant 0 : i32
    return %c0_i32, %c0_i32_0 : i32, i32
  }
  func.func @transform_9(%arg0: i32) -> (i32, i32) {
    %c0_i32 = arith.constant 0 : i32
    %c0_i32_0 = arith.constant 0 : i32
    %c0_i32_1 = arith.constant 0 : i32
    return %c0_i32, %c0_i32_0 : i32, i32
  }
  func.func @transform_10(%arg0: i32) -> (i32, i32) {
    %c0_i32 = arith.constant 0 : i32
    %c0_i32_0 = arith.constant 0 : i32
    %c0_i32_1 = arith.constant 0 : i32
    return %c0_i32, %c0_i32_0 : i32, i32
  }
  func.func @transform_11(%arg0: i32) -> (i32, i32) {
    %c0_i32 = arith.constant 0 : i32
    %c0_i32_0 = arith.constant 0 : i32
    %c0_i32_1 = arith.constant 0 : i32
    return %c0_i32, %c0_i32_0 : i32, i32
  }
  func.func @transform_12(%arg0: i32) -> (i32, i32) {
    %c0_i32 = arith.constant 0 : i32
    %c0_i32_0 = arith.constant 0 : i32
    %c0_i32_1 = arith.constant 0 : i32
    return %c0_i32, %c0_i32_0 : i32, i32
  }
  func.func @transform_13(%arg0: i32) -> (i32, i32) {
    %c0_i32 = arith.constant 0 : i32
    %c0_i32_0 = arith.constant 0 : i32
    %c0_i32_1 = arith.constant 0 : i32
    return %c0_i32, %c0_i32_0 : i32, i32
  }
}

</mosaic_0001>

<llo_original>
// kernel: dnabert2_conservation_forward.12
$region0: #{dnabert2_conservation_forward.12}
  #allocation0 [shape = 'u32[]', space=smem, size = 0x4, offset = 0x4, fixed_abs, tag = 'smem constant byte address 0x4 - core index']
  #allocation1 [shape = 'u32[144,128]{1,0:T(1,128)}', space=vmem, size = 0x12000, scoped, tag = 'internal scratch']
  %s0 = inlined_call_operand.vmem [shape: bf16[16,128], index: 0, kind: input, shape index: {}]
  %s1 = inlined_call_operand.vmem [shape: f32[1,128], index: 1, kind: input, shape index: {}]
  %s2 = inlined_call_operand.vmem [shape: f32[1,128], index: 2, kind: input, shape index: {}]
  %s3 = inlined_call_operand.vmem [shape: bf16[16,128], index: 3, kind: output, shape index: {}]
  %s4 = sld [smem:[#allocation0]]
  $region22: #{dnabert2_conservation_forward.12} parent=0
    _
  %s6 = ssub.s32 1, %s4
  %s7 = scalar_select 0, %s6, %s4
  // Predicated region
  $region2: #{dnabert2_conservation_forward.12} parent=0 // pred_check
    _
  $region3: #{dnabert2_conservation_forward.12} parent=0 // pred_check_branch
    %9 = sbr.rel (0) target = $region5
  $region4: #{dnabert2_conservation_forward.12} parent=0 // pred_region
    _
  $region5: #{dnabert2_conservation_forward.12} parent=0 // pred_fallthru
    _
  // Predicated region
  $region6: #{dnabert2_conservation_forward.12} parent=0 // pred_check
    _
  $region7: #{dnabert2_conservation_forward.12} parent=0 // pred_check_branch
    %11 = sbr.rel (0) target = $region9
  $region8: #{dnabert2_conservation_forward.12} parent=0 // pred_region
    _
  $region9: #{dnabert2_conservation_forward.12} parent=0 // pred_fallthru
    _
  // Predicated region
  $region10: #{dnabert2_conservation_forward.12} parent=0 // pred_check
    _
  $region11: #{dnabert2_conservation_forward.12} parent=0 // pred_check_branch
    %13 = sbr.rel (0) target = $region13
  $region12: #{dnabert2_conservation_forward.12} parent=0 // pred_region
    _
  $region13: #{dnabert2_conservation_forward.12} parent=0 // pred_fallthru
    _
  %v14 = vld [vmem:[%s0] sm:$0xf]
  %v15 = vld [vmem:[%s0 + $0x4] sm:$0xf]
  %v16 = vunpack.c.l.bf16 %v14
  %v17 = vunpack.c.l.bf16 %v15
  %18 = vadd.xlane.f32.xlu0 %v16
  %v19 = vpop.xlane.xlu0 %18
  %20 = vadd.xlane.f32.xlu0 %v17
  %v21 = vpop.xlane.xlu0 %20
  %v22 = vrcp.pop 128.0
  %v23 = vmul.f32 %v19, %v22
  %v24 = vmul.f32 %v21, %v22
  %v25 = vsub.f32 %v16, %v23
  %v26 = vsub.f32 %v17, %v24
  %v27 = vmul.f32 %v25, %v25
  %v28 = vmul.f32 %v26, %v26
  %29 = vadd.xlane.f32.xlu0 %v27
  %v30 = vpop.xlane.xlu0 %29
  %31 = vadd.xlane.f32.xlu0 %v28
  %v32 = vpop.xlane.xlu0 %31
  %v33 = vmul.f32 %v30, %v22
  %v34 = vmul.f32 %v32, %v22
  %v35 = vadd.f32 %v33, 1e-12
  %v36 = vadd.f32 %v34, 1e-12
  %v37 = vrsqrt.pop %v35
  %v38 = vrsqrt.pop %v36
  %v39 = vmul.f32 %v25, %v37
  %v40 = vmul.f32 %v26, %v38
  %v41 = vld [vmem:[%s1] sm:$0x1]
  %v43 = vlaneseq
  %v44 = vshrl.u32 %v43, 7
  %v45 = vsub.s32 0, %v44
  %v46 = vrot.slane %v41, %v45
  %v48 = vmul.f32 %v39, %v46
  %v49 = vmul.f32 %v40, %v46
  %v50 = vld [vmem:[%s2] sm:$0x1]
  %v52 = vlaneseq
  %v53 = vshrl.u32 %v52, 7
  %v54 = vsub.s32 0, %v53
  %v55 = vrot.slane %v50, %v54
  %v57 = vadd.f32 %v48, %v55
  %v58 = vadd.f32 %v49, %v55
  %v59 = vpack.c.bf16 %v58, %v57
  %v61 = vunpack.c.l.b16 %v59
  %v62 = vunpack.c.h.b16 %v59
  %v63 = vpack.c.b16 %v61, %v61
  %v64 = vpack.c.b16 %v62, %v62
  %67 = vst [vmem:[%s3] sm:$0xf] %v63
  %68 = vst [vmem:[%s3 + $0x4] sm:$0xf] %v64
  // Predicated region
  $region14: #{dnabert2_conservation_forward.12} parent=0 // pred_check
    _
  $region15: #{dnabert2_conservation_forward.12} parent=0 // pred_check_branch
    %70 = sbr.rel (0) target = $region17
  $region16: #{dnabert2_conservation_forward.12} parent=0 // pred_region
    _
  $region17: #{dnabert2_conservation_forward.12} parent=0 // pred_fallthru
    _
  // Predicated region
  $region18: #{dnabert2_conservation_forward.12} parent=0 // pred_check
    _
  $region19: #{dnabert2_conservation_forward.12} parent=0 // pred_check_branch
    %72 = sbr.rel (0) target = $region21
  $region20: #{dnabert2_conservation_forward.12} parent=0 // pred_region
    _
  $region21: #{dnabert2_conservation_forward.12} parent=0 // pred_fallthru
    _

// kernel: dnabert2_conservation_forward.13
$region0: #{dnabert2_conservation_forward.13}
  #allocation0 [shape = 'u32[]', space=smem, size = 0x4, offset = 0x4, fixed_abs, tag = 'smem constant byte address 0x4 - core index']
  #allocation1 [shape = 'u32[144,128]{1,0:T(1,128)}', space=vmem, size = 0x12000, scoped, tag = 'internal scratch']
  %s0 = inlined_call_operand.vmem [shape: bf16[16,128], index: 0, kind: input, shape index: {}]
  %s1 = inlined_call_operand.vmem [shape: bf16[128,384], index: 1, kind: input, shape index: {}]
  %s2 = inlined_call_operand.vmem [shape: f32[1,384], index: 2, kind: input, shape index: {}]
  %s3 = inlined_call_operand.vmem [shape: bf16[16,384], index: 3, kind: output, shape index: {}]
  %s4 = sld [smem:[#allocation0]]
  $region22: #{dnabert2_conservation_forward.13} parent=0
    _
  %s6 = ssub.s32 1, %s4
  %s7 = scalar_select 0, %s6, %s4
  // Predicated region
  $region2: #{dnabert2_conservation_forward.13} parent=0 // pred_check
    _
  $region3: #{dnabert2_conservation_forward.13} parent=0 // pred_check_branch
    %9 = sbr.rel (0) target = $region5
  $region4: #{dnabert2_conservation_forward.13} parent=0 // pred_region
    _
  $region5: #{dnabert2_conservation_forward.13} parent=0 // pred_fallthru
    _
  // Predicated region
  $region6: #{dnabert2_conservation_forward.13} parent=0 // pred_check
    _
  $region7: #{dnabert2_conservation_forward.13} parent=0 // pred_check_branch
    %11 = sbr.rel (0) target = $region9
  $region8: #{dnabert2_conservation_forward.13} parent=0 // pred_region
    _
  $region9: #{dnabert2_conservation_forward.13} parent=0 // pred_fallthru
    _
  // Predicated region
  $region10: #{dnabert2_conservation_forward.13} parent=0 // pred_check
    _
  $region11: #{dnabert2_conservation_forward.13} parent=0 // pred_check_branch
    %13 = sbr.rel (0) target = $region13
  $region12: #{dnabert2_conservation_forward.13} parent=0 // pred_region
    _
  $region13: #{dnabert2_conservation_forward.13} parent=0 // pred_fallthru
    _
  %v15 = vld [vmem:[%s0] sm:$0xf]
  %v16 = vld [vmem:[%s0 + $0x4] sm:$0xf]
  %v17 = vld [vmem:[%s1] sm:$0xff]
  %v18 = vld [vmem:[%s1 + $0x8] sm:$0xf]
  %v19 = vld [vmem:[%s1 + $0xc] sm:$0xff]
  %v20 = vld [vmem:[%s1 + $0x14] sm:$0xf]
  %v21 = vld [vmem:[%s1 + $0x18] sm:$0xff]
  %v22 = vld [vmem:[%s1 + $0x20] sm:$0xf]
  %v23 = vld [vmem:[%s1 + $0x24] sm:$0xff]
  %v24 = vld [vmem:[%s1 + $0x2c] sm:$0xf]
  %v25 = vld [vmem:[%s1 + $0x30] sm:$0xff]
  %v26 = vld [vmem:[%s1 + $0x38] sm:$0xf]
  %v27 = vld [vmem:[%s1 + $0x3c] sm:$0xff]
  %v28 = vld [vmem:[%s1 + $0x44] sm:$0xf]
  %v29 = vld [vmem:[%s1 + $0x48] sm:$0xff]
  %v30 = vld [vmem:[%s1 + $0x50] sm:$0xf]
  %v31 = vld [vmem:[%s1 + $0x54] sm:$0xff]
  %v32 = vld [vmem:[%s1 + $0x5c] sm:$0xf]
  %v33 = vld [vmem:[%s1 + $0x60] sm:$0xff]
  %v34 = vld [vmem:[%s1 + $0x68] sm:$0xf]
  %v35 = vld [vmem:[%s1 + $0x6c] sm:$0xff]
  %v36 = vld [vmem:[%s1 + $0x74] sm:$0xf]
  %v37 = vld [vmem:[%s1 + $0x78] sm:$0xff]
  %v38 = vld [vmem:[%s1 + $0x80] sm:$0xf]
  %v39 = vld [vmem:[%s1 + $0x84] sm:$0xff]
  %v40 = vld [vmem:[%s1 + $0x8c] sm:$0xf]
  %v41 = vld [vmem:[%s1 + $0x90] sm:$0xff]
  %v42 = vld [vmem:[%s1 + $0x98] sm:$0xf]
  %v43 = vld [vmem:[%s1 + $0x9c] sm:$0xff]
  %v44 = vld [vmem:[%s1 + $0xa4] sm:$0xf]
  %v45 = vld [vmem:[%s1 + $0xa8] sm:$0xff]
  %v46 = vld [vmem:[%s1 + $0xb0] sm:$0xf]
  %v47 = vld [vmem:[%s1 + $0xb4] sm:$0xff]
  %v48 = vld [vmem:[%s1 + $0xbc] sm:$0xf]
  %v49 = vld [vmem:[%s2] sm:$0x7]
  %v51 = vlaneseq
  %v52 = vshrl.u32 %v51, 7
  %v53 = vsub.s32 0, %v52
  %v54 = vrot.slane %v49, %v53
  %v55 = vlaneseq
  %v56 = vshrl.u32 %v55, 7
  %v57 = vsub.s32 1, %v56
  %v58 = vrot.slane %v49, %v57
  %v59 = vlaneseq
  %v60 = vshrl.u32 %v59, 7
  %v61 = vsub.s32 2, %v60
  %v62 = vrot.slane %v49, %v61
  %v68 = vunpack.c.l.b16 %v15
  %v69 = vunpack.c.l.b16 %v16
  %v70 = vpack.c.b16 %v69, %v68
  %v104 = vunpack.c.l.b16 %v17
  %v105 = vunpack.c.h.b16 %v17
  %v106 = vunpack.c.l.b16 %v18
  %v107 = vunpack.c.l.b16 %v19
  %v108 = vunpack.c.h.b16 %v19
  %v109 = vunpack.c.l.b16 %v20
  %v110 = vunpack.c.l.b16 %v21
  %v111 = vunpack.c.h.b16 %v21
  %v112 = vunpack.c.l.b16 %v22
  %v113 = vunpack.c.l.b16 %v23
  %v114 = vunpack.c.h.b16 %v23
  %v115 = vunpack.c.l.b16 %v24
  %v116 = vunpack.c.l.b16 %v25
  %v117 = vunpack.c.h.b16 %v25
  %v118 = vunpack.c.l.b16 %v26
  %v119 = vunpack.c.l.b16 %v27
  %v120 = vunpack.c.h.b16 %v27
  %v121 = vunpack.c.l.b16 %v28
  %v122 = vunpack.c.l.b16 %v29
  %v123 = vunpack.c.h.b16 %v29
  %v124 = vunpack.c.l.b16 %v30
  %v125 = vunpack.c.l.b16 %v31
  %v126 = vunpack.c.h.b16 %v31
  %v127 = vunpack.c.l.b16 %v32
  %v128 = vunpack.c.l.b16 %v33
  %v129 = vunpack.c.h.b16 %v33
  %v130 = vunpack.c.l.b16 %v34
  %v131 = vunpack.c.l.b16 %v35
  %v132 = vunpack.c.h.b16 %v35
  %v133 = vunpack.c.l.b16 %v36
  %v134 = vunpack.c.l.b16 %v37
  %v135 = vunpack.c.h.b16 %v37
  %v136 = vunpack.c.l.b16 %v38
  %v137 = vunpack.c.l.b16 %v39
  %v138 = vunpack.c.h.b16 %v39
  %v139 = vunpack.c.l.b16 %v40
  %v140 = vunpack.c.l.b16 %v41
  %v141 = vunpack.c.h.b16 %v41
  %v142 = vunpack.c.l.b16 %v42
  %v143 = vunpack.c.l.b16 %v43
  %v144 = vunpack.c.h.b16 %v43
  %v145 = vunpack.c.l.b16 %v44
  %v146 = vunpack.c.l.b16 %v45
  %v147 = vunpack.c.h.b16 %v45
  %v148 = vunpack.c.l.b16 %v46
  %v149 = vunpack.c.l.b16 %v47
  %v150 = vunpack.c.h.b16 %v47
  %v151 = vunpack.c.l.b16 %v48
  %v152 = vpack.c.b16 %v107, %v104
  %v153 = vpack.c.b16 %v108, %v105
  %v154 = vpack.c.b16 %v109, %v106
  %v155 = vpack.c.b16 %v113, %v110
  %v156 = vpack.c.b16 %v114, %v111
  %v157 = vpack.c.b16 %v115, %v112
  %v158 = vpack.c.b16 %v119, %v116
  %v159 = vpack.c.b16 %v120, %v117
  %v160 = vpack.c.b16 %v121, %v118
  %v161 = vpack.c.b16 %v125, %v122
  %v162 = vpack.c.b16 %v126, %v123
  %v163 = vpack.c.b16 %v127, %v124
  %v164 = vpack.c.b16 %v131, %v128
  %v165 = vpack.c.b16 %v132, %v129
  %v166 = vpack.c.b16 %v133, %v130
  %v167 = vpack.c.b16 %v137, %v134
  %v168 = vpack.c.b16 %v138, %v135
  %v169 = vpack.c.b16 %v139, %v136
  %v170 = vpack.c.b16 %v143, %v140
  %v171 = vpack.c.b16 %v144, %v141
  %v172 = vpack.c.b16 %v145, %v142
  %v173 = vpack.c.b16 %v149, %v146
  %v174 = vpack.c.b16 %v150, %v147
  %v175 = vpack.c.b16 %v151, %v148
  %200 = vmatprep.subr.bf16.mxu0 %v153
  %201 = vmatpush1.bf16.msra.mxu0 %v152
  %202 = vmatprep.subr.bf16.mxu0 %v156
  %203 = vmatpush1.bf16.msra.mxu0 %v155
  %204 = vmatprep.subr.bf16.mxu0 %v159
  %205 = vmatpush1.bf16.msra.mxu0 %v158
  %206 = vmatprep.subr.bf16.mxu0 %v162
  %207 = vmatpush1.bf16.msra.mxu0 %v161
  %208 = vmatprep.subr.bf16.mxu0 %v165
  %209 = vmatpush1.bf16.msra.mxu0 %v164
  %210 = vmatprep.subr.bf16.mxu0 %v168
  %211 = vmatpush1.bf16.msra.mxu0 %v167
  %212 = vmatprep.subr.bf16.mxu0 %v171
  %213 = vmatpush1.bf16.msra.mxu0 %v170
  %214 = vmatprep.subr.bf16.mxu0 %v174
  %215 = vmatpush1.bf16.msra.mxu0 %v173
  %216 = vmatprep.subr.bf16.mxu0 0
  %217 = vmatpush1.bf16.msra.mxu0 0
  %218 = vmatprep.subr.bf16.mxu0 0
  %219 = vmatpush1.bf16.msra.mxu0 0
  %220 = vmatprep.subr.bf16.mxu0 0
  %221 = vmatpush1.bf16.msra.mxu0 0
  %222 = vmatprep.subr.bf16.mxu0 0
  %223 = vmatpush1.bf16.msra.mxu0 0
  %224 = vmatprep.subr.bf16.mxu0 0
  %225 = vmatpush1.bf16.msra.mxu0 0
  %226 = vmatprep.subr.bf16.mxu0 0
  %227 = vmatpush1.bf16.msra.mxu0 0
  %228 = vmatprep.subr.bf16.mxu0 0
  %229 = vmatpush1.bf16.msra.mxu0 0
  %230 = vmatprep.subr.bf16.mxu0 0
  %231 = vmatpush1.bf16.msra.mxu0 0
  %232 = vmatprep.mubr.bf16.mxu0 0
  %233 = vmatmul.mubr.bf16.gmra.mrb[0].mxu0 %v70
  %v234 = vpop.f32.mrb[0].mxu0
  %v235 = vadd.f32 %v54, %v234
  %v236 = vpop.f32.mrb[0].mxu0
  %v237 = vadd.f32 %v58, %v236
  %v238 = vpop.f32.mrb[0].mxu0
  %v239 = vadd.f32 %v54, %v238
  %v240 = vpop.f32.mrb[0].mxu0
  %v241 = vadd.f32 %v58, %v240
  %242 = vdwg.mxu0
  %243 = vmatprep.subr.bf16.mxu0 0
  %244 = vmatpush1.bf16.msra.mxu0 %v154
  %245 = vmatprep.subr.bf16.mxu0 0
  %246 = vmatpush1.bf16.msra.mxu0 %v157
  %247 = vmatprep.subr.bf16.mxu0 0
  %248 = vmatpush1.bf16.msra.mxu0 %v160
  %249 = vmatprep.subr.bf16.mxu0 0
  %250 = vmatpush1.bf16.msra.mxu0 %v163
  %251 = vmatprep.subr.bf16.mxu0 0
  %252 = vmatpush1.bf16.msra.mxu0 %v166
  %253 = vmatprep.subr.bf16.mxu0 0
  %254 = vmatpush1.bf16.msra.mxu0 %v169
  %255 = vmatprep.subr.bf16.mxu0 0
  %256 = vmatpush1.bf16.msra.mxu0 %v172
  %257 = vmatprep.subr.bf16.mxu0 0
  %258 = vmatpush1.bf16.msra.mxu0 %v175
  %259 = vmatprep.subr.bf16.mxu0 0
  %260 = vmatpush1.bf16.msra.mxu0 0
  %261 = vmatprep.subr.bf16.mxu0 0
  %262 = vmatpush1.bf16.msra.mxu0 0
  %263 = vmatprep.subr.bf16.mxu0 0
  %264 = vmatpush1.bf16.msra.mxu0 0
  %265 = vmatprep.subr.bf16.mxu0 0
  %266 = vmatpush1.bf16.msra.mxu0 0
  %267 = vmatprep.subr.bf16.mxu0 0
  %268 = vmatpush1.bf16.msra.mxu0 0
  %269 = vmatprep.subr.bf16.mxu0 0
  %270 = vmatpush1.bf16.msra.mxu0 0
  %271 = vmatprep.subr.bf16.mxu0 0
  %272 = vmatpush1.bf16.msra.mxu0 0
  %273 = vmatprep.subr.bf16.mxu0 0
  %274 = vmatpush1.bf16.msra.mxu0 0
  %275 = vmatprep.mubr.bf16.mxu0 0
  %276 = vmatmul.mubr.bf16.gmra.mrb[0].mxu0 %v70
  %v277 = vpop.f32.mrb[0].mxu0
  %v278 = vadd.f32 %v62, %v277
  %v279 = vpop.f32.mrb[0].mxu0
  %v280 = vpop.f32.mrb[0].mxu0
  %v281 = vadd.f32 %v62, %v280
  %v282 = vpop.f32.mrb[0].mxu0
  %283 = vdwg.mxu0
  %v284 = vpack.c.bf16 %v239, %v235
  %v285 = vpack.c.bf16 %v241, %v237
  %v286 = vpack.c.bf16 %v281, %v278
  %v290 = vunpack.c.l.b16 %v284
  %v291 = vunpack.c.l.b16 %v285
  %v292 = vunpack.c.l.b16 %v286
  %v293 = vunpack.c.h.b16 %v284
  %v294 = vunpack.c.h.b16 %v285
  %v295 = vunpack.c.h.b16 %v286
  %v296 = vpack.c.b16 %v291, %v290
  %v297 = vpack.c.b16 %v292, %v292
  %v298 = vpack.c.b16 %v294, %v293
  %v299 = vpack.c.b16 %v295, %v295
  %304 = vst [vmem:[%s3] sm:$0xff] %v296
  %305 = vst [vmem:[%s3 + $0x8] sm:$0xf] %v297
  %306 = vst [vmem:[%s3 + $0xc] sm:$0xff] %v298
  %307 = vst [vmem:[%s3 + $0x14] sm:$0xf] %v299
  // Predicated region
  $region14: #{dnabert2_conservation_forward.13} parent=0 // pred_check
    _
  $region15: #{dnabert2_conservation_forward.13} parent=0 // pred_check_branch
    %309 = sbr.rel (0) target = $region17
  $region16: #{dnabert2_conservation_forward.13} parent=0 // pred_region
    _
  $region17: #{dnabert2_conservation_forward.13} parent=0 // pred_fallthru
    _
  // Predicated region
  $region18: #{dnabert2_conservation_forward.13} parent=0 // pred_check
    _
  $region19: #{dnabert2_conservation_forward.13} parent=0 // pred_check_branch
    %311 = sbr.rel (0) target = $region21
  $region20: #{dnabert2_conservation_forward.13} parent=0 // pred_region
    _
  $region21: #{dnabert2_conservation_forward.13} parent=0 // pred_fallthru
    _

// kernel: dnabert2_conservation_forward.14
$region0: #{dnabert2_conservation_forward.14}
  #allocation0 [shape = 'u32[]', space=smem, size = 0x4, offset = 0x4, fixed_abs, tag = 'smem constant byte address 0x4 - core index']
  #allocation1 [shape = 'u32[144,128]{1,0:T(1,128)}', space=vmem, size = 0x12000, scoped, tag = 'internal scratch']
  %s0 = inlined_call_operand.vmem [shape: bf16[2,8,384], index: 0, kind: input, shape index: {}, may-alias: {0,1,2}]
  %s1 = inlined_call_operand.vmem [shape: bf16[2,8,384], index: 1, kind: input, shape index: {}, may-alias: {0,1,2}]
  %s2 = inlined_call_operand.vmem [shape: bf16[2,8,384], index: 2, kind: input, shape index: {}, may-alias: {0,1,2}]
  %s3 = inlined_call_operand.vmem [shape: f32[2,1,8], index: 3, kind: input, shape index: {}]
  %s4 = inlined_call_operand.vmem [shape: bf16[2,8,128], index: 4, kind: output, shape index: {}]
  %s5 = sld [smem:[#allocation0]]
  $region49: #{dnabert2_conservation_forward.14} parent=0
    _
  %s7 = ssub.s32 1, %s5
  %s8 = scalar_select 0, %s7, %s5
  loop: start=0, step=1, limit=4
  $region2: #{dnabert2_conservation_forward.14} parent=0 // loop_pre_header
    _
  $region3: #{dnabert2_conservation_forward.14} parent=0 // loop_header
    %s10 = sphi 0, %s14
    %p11 = scmp.ge.s32.totalorder %s10, 4
    %s20 = sphi 0, %s22
    %s23 = sphi 0, %s20
    %s24 = sphi 0, %s23
    %s40 = sphi 0, %s24
    %s46 = sphi 0, %s48
    %s49 = sphi 0, %s46
    %s50 = sphi 0, %s49
    %s66 = sphi 0, %s50
    %s72 = sphi 0, %s74
    %s75 = sphi 0, %s72
    %s76 = sphi 0, %s75
    %s92 = sphi 0, %s76
    %s98 = sphi 0, %s100
    %s101 = sphi 0, %s98
    %s102 = sphi 0, %s101
    %s118 = sphi 0, %s102
    %s124 = sphi 0, %s126
    %s127 = sphi 0, %s124
    %s128 = sphi 0, %s127
    %s144 = sphi 0, %s128
  $region4: #{dnabert2_conservation_forward.14} parent=0 // loop_header_branch
    %13 = sbr.rel (%p11) target = $region8
  $region5: #{dnabert2_conservation_forward.14} parent=0 // loop_body
    %s15 = ssub.s32 %s10, 1
    %s16 = ssub.s32 %s10, 2
    %s17 = sadd.s32 %s10, 1
    %s18 = ssub.s32 %s10, %s17
    %p19 = scmp.eq.s32.totalorder %s18, 0
    %s21 = sadd.s32 %s20, 1
    %s22 = scalar_select %p19, %s20, %s21
    %p25 = pneg %p19
    %p26 = scmp.eq.s32.totalorder %s10, 1
    %p27 = por %p25, %p26
    %p28 = scmp.ne.s32.totalorder %s20, %s23
    %p29 = scmp.eq.s32.totalorder %s10, 0
    %p30 = por %p28, %p29
    %p31 = scmp.ne.s32.totalorder %s20, %s23
    %p32 = scmp.eq.s32.totalorder %s15, 1
    %p33 = por %p31, %p32
    %p34 = scmp.ne.s32.totalorder %s23, %s24
    %p35 = scmp.eq.s32.totalorder %s15, 0
    %p36 = por %p34, %p35
    %p37 = scmp.ne.s32.totalorder %s23, %s24
    %p38 = scmp.eq.s32.totalorder %s16, 1
    %p39 = por %p37, %p38
    %p41 = scmp.ne.s32.totalorder %s24, %s40
    %p42 = scmp.eq.s32.totalorder %s16, 0
    %p43 = por %p41, %p42
    %s44 = ssub.s32 %s10, %s17
    %p45 = scmp.eq.s32.totalorder %s44, 0
    %s47 = sadd.s32 %s46, 1
    %s48 = scalar_select %p45, %s46, %s47
    %p51 = pneg %p45
    %p52 = scmp.eq.s32.totalorder %s10, 1
    %p53 = por %p51, %p52
    %p54 = scmp.ne.s32.totalorder %s46, %s49
    %p55 = scmp.eq.s32.totalorder %s10, 0
    %p56 = por %p54, %p55
    %p57 = scmp.ne.s32.totalorder %s46, %s49
    %p58 = scmp.eq.s32.totalorder %s15, 1
    %p59 = por %p57, %p58
    %p60 = scmp.ne.s32.totalorder %s49, %s50
    %p61 = scmp.eq.s32.totalorder %s15, 0
    %p62 = por %p60, %p61
    %p63 = scmp.ne.s32.totalorder %s49, %s50
    %p64 = scmp.eq.s32.totalorder %s16, 1
    %p65 = por %p63, %p64
    %p67 = scmp.ne.s32.totalorder %s50, %s66
    %p68 = scmp.eq.s32.totalorder %s16, 0
    %p69 = por %p67, %p68
    %s70 = ssub.s32 %s10, %s17
    %p71 = scmp.eq.s32.totalorder %s70, 0
    %s73 = sadd.s32 %s72, 1
    %s74 = scalar_select %p71, %s72, %s73
    %p77 = pneg %p71
    %p78 = scmp.eq.s32.totalorder %s10, 1
    %p79 = por %p77, %p78
    %p80 = scmp.ne.s32.totalorder %s72, %s75
    %p81 = scmp.eq.s32.totalorder %s10, 0
    %p82 = por %p80, %p81
    %p83 = scmp.ne.s32.totalorder %s72, %s75
    %p84 = scmp.eq.s32.totalorder %s15, 1
    %p85 = por %p83, %p84
    %p86 = scmp.ne.s32.totalorder %s75, %s76
    %p87 = scmp.eq.s32.totalorder %s15, 0
    %p88 = por %p86, %p87
    %p89 = scmp.ne.s32.totalorder %s75, %s76
    %p90 = scmp.eq.s32.totalorder %s16, 1
    %p91 = por %p89, %p90
    %p93 = scmp.ne.s32.totalorder %s76, %s92
    %p94 = scmp.eq.s32.totalorder %s16, 0
    %p95 = por %p93, %p94
    %s96 = ssub.s32 %s10, %s17
    %p97 = scmp.eq.s32.totalorder %s96, 0
    %s99 = sadd.s32 %s98, 1
    %s100 = scalar_select %p97, %s98, %s99
    %p103 = pneg %p97
    %p104 = scmp.eq.s32.totalorder %s10, 1
    %p105 = por %p103, %p104
    %p106 = scmp.ne.s32.totalorder %s98, %s101
    %p107 = scmp.eq.s32.totalorder %s10, 0
    %p108 = por %p106, %p107
    %p109 = scmp.ne.s32.totalorder %s98, %s101
    %p110 = scmp.eq.s32.totalorder %s15, 1
    %p111 = por %p109, %p110
    %p112 = scmp.ne.s32.totalorder %s101, %s102
    %p113 = scmp.eq.s32.totalorder %s15, 0
    %p114 = por %p112, %p113
    %p115 = scmp.ne.s32.totalorder %s101, %s102
    %p116 = scmp.eq.s32.totalorder %s16, 1
    %p117 = por %p115, %p116
    %p119 = scmp.ne.s32.totalorder %s102, %s118
    %p120 = scmp.eq.s32.totalorder %s16, 0
    %p121 = por %p119, %p120
    %s122 = ssub.s32 %s10, %s17
    %p123 = scmp.eq.s32.totalorder %s122, 0
    %s125 = sadd.s32 %s124, 1
    %s126 = scalar_select %p123, %s124, %s125
    %p129 = pneg %p123
    %p130 = scmp.eq.s32.totalorder %s10, 1
    %p131 = por %p129, %p130
    %p132 = scmp.ne.s32.totalorder %s124, %s127
    %p133 = scmp.eq.s32.totalorder %s10, 0
    %p134 = por %p132, %p133
    %p135 = scmp.ne.s32.totalorder %s124, %s127
    %p136 = scmp.eq.s32.totalorder %s15, 1
    %p137 = por %p135, %p136
    %p138 = scmp.ne.s32.totalorder %s127, %s128
    %p139 = scmp.eq.s32.totalorder %s15, 0
    %p140 = por %p138, %p139
    %p141 = scmp.ne.s32.totalorder %s127, %s128
    %p142 = scmp.eq.s32.totalorder %s16, 1
    %p143 = por %p141, %p142
    %p145 = scmp.ne.s32.totalorder %s128, %s144
    %p146 = scmp.eq.s32.totalorder %s16, 0
    %p147 = por %p145, %p146
    %p148 = scmp.le.s32.totalorder 1, %s10
    %p149 = scmp.lt.s32.totalorder %s10, 3
    %p150 = pnand %p148, %p149
    %p151 = pneg %p150
    // Predicated region
    $region9: #{dnabert2_conservation_forward.14} parent=5 // pred_check
      _
    $region10: #{dnabert2_conservation_forward.14} parent=5 // pred_check_branch
      %153 = sbr.rel (%p150) target = $region12
    $region11: #{dnabert2_conservation_forward.14} parent=5 // pred_region
      %s154 = ssub.s32 %s10, 1
    $region12: #{dnabert2_conservation_forward.14} parent=5 // pred_fallthru
      _
    %p155 = scmp.lt.s32.totalorder %s10, 2
    // Predicated region
    $region13: #{dnabert2_conservation_forward.14} parent=5 // pred_check
      %p156 = pneg %p155
    $region14: #{dnabert2_conservation_forward.14} parent=5 // pred_check_branch
      %158 = sbr.rel (%p156) target = $region16
    $region15: #{dnabert2_conservation_forward.14} parent=5 // pred_region
      // Predicated region
      $region17: #{dnabert2_conservation_forward.14} parent=15 // pred_check
        %p159 = pneg %p30
      $region18: #{dnabert2_conservation_forward.14} parent=15 // pred_check_branch
        %161 = sbr.rel (%p159) target = $region20
      $region19: #{dnabert2_conservation_forward.14} parent=15 // pred_region
        %p162 = scmp.lt.s32.totalorder %s10, 1
        %s163 = scalar_select %p162, %s10, 1
        %s164 = smul.addr %s163, 3
        %s165 = smul.addr %s164, 4
        %s166 = scalar_lea.vmem %s0, %s165
      $region20: #{dnabert2_conservation_forward.14} parent=15 // pred_fallthru
        _
      // Predicated region
      $region21: #{dnabert2_conservation_forward.14} parent=15 // pred_check
        %p167 = pneg %p56
      $region22: #{dnabert2_conservation_forward.14} parent=15 // pred_check_branch
        %169 = sbr.rel (%p167) target = $region24
      $region23: #{dnabert2_conservation_forward.14} parent=15 // pred_region
        %p170 = scmp.lt.s32.totalorder %s10, 1
        %s171 = scalar_select %p170, %s10, 1
        %s172 = smul.addr %s171, 3
        %s173 = sadd.s32 1, %s172
        %s174 = smul.addr %s173, 4
        %s175 = scalar_lea.vmem %s1, %s174
      $region24: #{dnabert2_conservation_forward.14} parent=15 // pred_fallthru
        _
      // Predicated region
      $region25: #{dnabert2_conservation_forward.14} parent=15 // pred_check
        %p176 = pneg %p82
      $region26: #{dnabert2_conservation_forward.14} parent=15 // pred_check_branch
        %178 = sbr.rel (%p176) target = $region28
      $region27: #{dnabert2_conservation_forward.14} parent=15 // pred_region
        %p179 = scmp.lt.s32.totalorder %s10, 1
        %s180 = scalar_select %p179, %s10, 1
        %s181 = smul.addr %s180, 3
        %s182 = sadd.s32 2, %s181
        %s183 = smul.addr %s182, 4
        %s184 = scalar_lea.vmem %s2, %s183
      $region28: #{dnabert2_conservation_forward.14} parent=15 // pred_fallthru
        _
      // Predicated region
      $region29: #{dnabert2_conservation_forward.14} parent=15 // pred_check
        %p185 = pneg %p108
      $region30: #{dnabert2_conservation_forward.14} parent=15 // pred_check_branch
        %187 = sbr.rel (%p185) target = $region32
      $region31: #{dnabert2_conservation_forward.14} parent=15 // pred_region
        %p188 = scmp.lt.s32.totalorder %s10, 1
        %s189 = scalar_select %p188, %s10, 1
        %s190 = scalar_lea.vmem %s3, %s189
      $region32: #{dnabert2_conservation_forward.14} parent=15 // pred_fallthru
        _
    $region16: #{dnabert2_conservation_forward.14} parent=5 // pred_fallthru
      _
    %p191 = scmp.le.s32.totalorder 1, %s10
    %p192 = scmp.lt.s32.totalorder %s10, 3
    %p193 = pnand %p191, %p192
    %p194 = pneg %p193
    // Predicated region
    $region33: #{dnabert2_conservation_forward.14} parent=5 // pred_check
      _
    $region34: #{dnabert2_conservation_forward.14} parent=5 // pred_check_branch
      %196 = sbr.rel (%p193) target = $region36
    $region35: #{dnabert2_conservation_forward.14} parent=5 // pred_region
      %s197 = ssub.s32 %s10, 1
      %p198 = scmp.lt.s32.totalorder %s15, 1
      %s199 = scalar_select %p198, %s15, 1
      %s200 = smul.addr %s199, 3
      %s201 = smul.addr %s200, 4
      %s202 = scalar_lea.vmem %s0, %s201
      %p203 = pneg %p36
      %p204 = pneg %p33
      %p205 = scmp.lt.s32.totalorder %s15, 1
      %s206 = scalar_select %p205, %s15, 1
      %s207 = smul.addr %s206, 3
      %s208 = sadd.s32 1, %s207
      %s209 = smul.addr %s208, 4
      %s210 = scalar_lea.vmem %s1, %s209
      %p211 = pneg %p62
      %p212 = pneg %p59
      %p213 = scmp.lt.s32.totalorder %s15, 1
      %s214 = scalar_select %p213, %s15, 1
      %s215 = smul.addr %s214, 3
      %s216 = sadd.s32 2, %s215
      %s217 = smul.addr %s216, 4
      %s218 = scalar_lea.vmem %s2, %s217
      %p219 = pneg %p88
      %p220 = pneg %p85
      %p221 = scmp.lt.s32.totalorder %s15, 1
      %s222 = scalar_select %p221, %s15, 1
      %s223 = scalar_lea.vmem %s3, %s222
      %p224 = pneg %p114
      %p225 = pneg %p111
      %p226 = pneg %p140
      %p227 = pneg %p137
      %p228 = scmp.lt.s32.totalorder %s15, 1
      %s229 = scalar_select %p228, %s15, 1
      %s230 = smul.addr %s229, 4
      %s231 = scalar_lea.vmem %s4, %s230
      %p232 = scmp.lt.s32.totalorder %s15, 1
      %s233 = scalar_select %p232, %s15, 1
      %s234 = smul.addr %s233, 3
      %s235 = smul.addr %s234, 4
      %s236 = scalar_lea.vmem %s0, %s235
      %p237 = scmp.lt.s32.totalorder %s15, 1
      %s238 = scalar_select %p237, %s15, 1
      %s239 = smul.addr %s238, 3
      %s240 = sadd.s32 1, %s239
      %s241 = smul.addr %s240, 4
      %s242 = scalar_lea.vmem %s1, %s241
      %p243 = scmp.lt.s32.totalorder %s15, 1
      %s244 = scalar_select %p243, %s15, 1
      %s245 = smul.addr %s244, 3
      %s246 = sadd.s32 2, %s245
      %s247 = smul.addr %s246, 4
      %s248 = scalar_lea.vmem %s2, %s247
      %p249 = scmp.lt.s32.totalorder %s15, 1
      %s250 = scalar_select %p249, %s15, 1
      %s251 = scalar_lea.vmem %s3, %s250
      %p252 = scmp.lt.s32.totalorder %s15, 1
      %s253 = scalar_select %p252, %s15, 1
      %s254 = smul.addr %s253, 4
      %s255 = scalar_lea.vmem %s4, %s254
      %v258 = vld [vmem:[%s236] sm:$0xf]
      %v259 = vmul.bf16 %v258, 1040203264
      %v260 = vld [vmem:[%s242] sm:$0xf]
      %v261 = vld [vmem:[%s248] sm:$0xf]
      %v262 = vld [vmem:[%s251] sm:$0x1]
      %v263 = vsub.f32 1.0, %v262
      %v264 = vmul.f32 %v263, -10000.0
      %v266 = vlaneseq
      %v267 = vshrl.u32 %v266, 7
      %v268 = vsub.s32 0, %v267
      %v269 = vrot.slane %v264, %v268
      %vm271 = vcmask 523264
      %v273 = vsel %vm271, %v259, 0
      %v276 = vsel %vm271, %v260, 0
      %278 = vmatprep.subr.bf16.mxu0 0
      %279 = vmatpush1.bf16.xpose.msra.mxu0 %v276
      %280 = vmatprep.subr.bf16.mxu0 0
      %281 = vmatpush1.bf16.xpose.msra.mxu0 0
      %282 = vmatprep.subr.bf16.mxu0 0
      %283 = vmatpush1.bf16.xpose.msra.mxu0 0
      %284 = vmatprep.subr.bf16.mxu0 0
      %285 = vmatpush1.bf16.xpose.msra.mxu0 0
      %286 = vmatprep.subr.bf16.mxu0 0
      %287 = vmatpush1.bf16.xpose.msra.mxu0 0
      %288 = vmatprep.subr.bf16.mxu0 0
      %289 = vmatpush1.bf16.xpose.msra.mxu0 0
      %290 = vmatprep.subr.bf16.mxu0 0
      %291 = vmatpush1.bf16.xpose.msra.mxu0 0
      %292 = vmatprep.subr.bf16.mxu0 0
      %293 = vmatpush1.bf16.xpose.msra.mxu0 0
      %294 = vmatprep.subr.bf16.mxu0 0
      %295 = vmatpush1.bf16.xpose.msra.mxu0 0
      %296 = vmatprep.subr.bf16.mxu0 0
      %297 = vmatpush1.bf16.xpose.msra.mxu0 0
      %298 = vmatprep.subr.bf16.mxu0 0
      %299 = vmatpush1.bf16.xpose.msra.mxu0 0
      %300 = vmatprep.subr.bf16.mxu0 0
      %301 = vmatpush1.bf16.xpose.msra.mxu0 0
      %302 = vmatprep.subr.bf16.mxu0 0
      %303 = vmatpush1.bf16.xpose.msra.mxu0 0
      %304 = vmatprep.subr.bf16.mxu0 0
      %305 = vmatpush1.bf16.xpose.msra.mxu0 0
      %306 = vmatprep.subr.bf16.mxu0 0
      %307 = vmatpush1.bf16.xpose.msra.mxu0 0
      %308 = vmatprep.subr.bf16.mxu0 0
      %309 = vmatpush1.bf16.xpose.msra.mxu0 0
      %310 = vmatprep.mubr.bf16.mxu0 0
      %311 = vmatmul.mubr.bf16.gmra.mrb[0].mxu0 %v273
      %v312 = vpop.f32.mrb[0].mxu0
      %v313 = vadd.f32 %v269, %v312
      %v314 = vpop.f32.mrb[0].mxu0
      %v315 = vpop.f32.mrb[0].mxu0
      %v316 = vpop.f32.mrb[0].mxu0
      %317 = vdwg.mxu0
      %vm318 = vcmask 64512
      %v319 = vsel %vm318, %v313, -inf
      %320 = vmax.xlane.f32.xlu0 %v319
      %v321 = vpop.xlane.xlu0 %320
      %v322 = vsub.f32 %v313, %v321
      %v323 = vmul.f32 %v322, 1.442695
      %v324 = vpow.pop %v323
      %v325 = vsel %vm318, %v324, 0.0
      %326 = vadd.xlane.f32.xlu0 %v325
      %v327 = vpop.xlane.xlu0 %326
      %v328 = vpack.c.bf16 %v324, %v324
      %v330 = vsel %vm318, %v328, 0
      %vm332 = vcmask 1043456
      %v334 = vsel %vm332, %v261, 0
      %336 = vmatprep.subr.bf16.mxu0 0
      %337 = vmatpush1.bf16.msra.mxu0 %v334
      %338 = vmatprep.subr.bf16.mxu0 0
      %339 = vmatpush1.bf16.msra.mxu0 0
      %340 = vmatprep.subr.bf16.mxu0 0
      %341 = vmatpush1.bf16.msra.mxu0 0
      %342 = vmatprep.subr.bf16.mxu0 0
      %343 = vmatpush1.bf16.msra.mxu0 0
      %344 = vmatprep.subr.bf16.mxu0 0
      %345 = vmatpush1.bf16.msra.mxu0 0
      %346 = vmatprep.subr.bf16.mxu0 0
      %347 = vmatpush1.bf16.msra.mxu0 0
      %348 = vmatprep.subr.bf16.mxu0 0
      %349 = vmatpush1.bf16.msra.mxu0 0
      %350 = vmatprep.subr.bf16.mxu0 0
      %351 = vmatpush1.bf16.msra.mxu0 0
      %352 = vmatprep.subr.bf16.mxu0 0
      %353 = vmatpush1.bf16.msra.mxu0 0
      %354 = vmatprep.subr.bf16.mxu0 0
      %355 = vmatpush1.bf16.msra.mxu0 0
      %356 = vmatprep.subr.bf16.mxu0 0
      %357 = vmatpush1.bf16.msra.mxu0 0
      %358 = vmatprep.subr.bf16.mxu0 0
      %359 = vmatpush1.bf16.msra.mxu0 0
      %360 = vmatprep.subr.bf16.mxu0 0
      %361 = vmatpush1.bf16.msra.mxu0 0
      %362 = vmatprep.subr.bf16.mxu0 0
      %363 = vmatpush1.bf16.msra.mxu0 0
      %364 = vmatprep.subr.bf16.mxu0 0
      %365 = vmatpush1.bf16.msra.mxu0 0
      %366 = vmatprep.subr.bf16.mxu0 0
      %367 = vmatpush1.bf16.msra.mxu0 0
      %368 = vmatprep.mubr.bf16.mxu0 0
      %369 = vmatmul.mubr.bf16.gmra.mrb[0].mxu0 %v330
      %v370 = vpop.f32.mrb[0].mxu0
      %v371 = vadd.f32 0.0, %v370
      %v372 = vpop.f32.mrb[0].mxu0
      %v373 = vpop.f32.mrb[0].mxu0
      %v374 = vpop.f32.mrb[0].mxu0
      %375 = vdwg.mxu0
      %v376 = vrcp.pop %v327
      %v377 = vmul.f32 %v371, %v376
      %v378 = vpack.c.bf16 %v377, %v377
      %vm379 = vcmask 519168
      %380 = vst.msk [vmem:[%s255] sm:$0xf] %vm379, %v378
      %v382 = vunpack.c.l.b16 %v259
      %v383 = vpack.c.b16 %v382, %v382
      %384 = vrot.lane.b32.xlu0 %v383, 64
      %v385 = vpop.permute.xlu0 %384
      %v387 = vunpack.c.l.b16 %v260
      %v388 = vpack.c.b16 %v387, %v387
      %389 = vrot.lane.b32.xlu0 %v388, 64
      %v390 = vpop.permute.xlu0 %389
      %v392 = vsel %vm271, %v385, 0
      %v395 = vsel %vm271, %v390, 0
      %397 = vmatprep.subr.bf16.mxu0 0
      %398 = vmatpush1.bf16.xpose.msra.mxu0 %v395
      %399 = vmatprep.subr.bf16.mxu0 0
      %400 = vmatpush1.bf16.xpose.msra.mxu0 0
      %401 = vmatprep.subr.bf16.mxu0 0
      %402 = vmatpush1.bf16.xpose.msra.mxu0 0
      %403 = vmatprep.subr.bf16.mxu0 0
      %404 = vmatpush1.bf16.xpose.msra.mxu0 0
      %405 = vmatprep.subr.bf16.mxu0 0
      %406 = vmatpush1.bf16.xpose.msra.mxu0 0
      %407 = vmatprep.subr.bf16.mxu0 0
      %408 = vmatpush1.bf16.xpose.msra.mxu0 0
      %409 = vmatprep.subr.bf16.mxu0 0
      %410 = vmatpush1.bf16.xpose.msra.mxu0 0
      %411 = vmatprep.subr.bf16.mxu0 0
      %412 = vmatpush1.bf16.xpose.msra.mxu0 0
      %413 = vmatprep.subr.bf16.mxu0 0
      %414 = vmatpush1.bf16.xpose.msra.mxu0 0
      %415 = vmatprep.subr.bf16.mxu0 0
      %416 = vmatpush1.bf16.xpose.msra.mxu0 0
      %417 = vmatprep.subr.bf16.mxu0 0
      %418 = vmatpush1.bf16.xpose.msra.mxu0 0
      %419 = vmatprep.subr.bf16.mxu0 0
      %420 = vmatpush1.bf16.xpose.msra.mxu0 0
      %421 = vmatprep.subr.bf16.mxu0 0
      %422 = vmatpush1.bf16.xpose.msra.mxu0 0
      %423 = vmatprep.subr.bf16.mxu0 0
      %424 = vmatpush1.bf16.xpose.msra.mxu0 0
      %425 = vmatprep.subr.bf16.mxu0 0
      %426 = vmatpush1.bf16.xpose.msra.mxu0 0
      %427 = vmatprep.subr.bf16.mxu0 0
      %428 = vmatpush1.bf16.xpose.msra.mxu0 0
      %429 = vmatprep.mubr.bf16.mxu0 0
      %430 = vmatmul.mubr.bf16.gmra.mrb[0].mxu0 %v392
      %v431 = vpop.f32.mrb[0].mxu0
      %v432 = vadd.f32 %v269, %v431
      %v433 = vpop.f32.mrb[0].mxu0
      %v434 = vpop.f32.mrb[0].mxu0
      %v435 = vpop.f32.mrb[0].mxu0
      %436 = vdwg.mxu0
      %v437 = vsel %vm318, %v432, -inf
      %438 = vmax.xlane.f32.xlu0 %v437
      %v439 = vpop.xlane.xlu0 %438
      %v440 = vsub.f32 %v432, %v439
      %v441 = vmul.f32 %v440, 1.442695
      %v442 = vpow.pop %v441
      %v443 = vsel %vm318, %v442, 0.0
      %444 = vadd.xlane.f32.xlu0 %v443
      %v445 = vpop.xlane.xlu0 %444
      %v446 = vpack.c.bf16 %v442, %v442
      %v448 = vunpack.c.l.b16 %v261
      %v449 = vpack.c.b16 %v448, %v448
      %450 = vrot.lane.b32.xlu0 %v449, 64
      %v451 = vpop.permute.xlu0 %450
      %v453 = vsel %vm318, %v446, 0
      %v456 = vsel %vm332, %v451, 0
      %458 = vmatprep.subr.bf16.mxu0 0
      %459 = vmatpush1.bf16.msra.mxu0 %v456
      %460 = vmatprep.subr.bf16.mxu0 0
      %461 = vmatpush1.bf16.msra.mxu0 0
      %462 = vmatprep.subr.bf16.mxu0 0
      %463 = vmatpush1.bf16.msra.mxu0 0
      %464 = vmatprep.subr.bf16.mxu0 0
      %465 = vmatpush1.bf16.msra.mxu0 0
      %466 = vmatprep.subr.bf16.mxu0 0
      %467 = vmatpush1.bf16.msra.mxu0 0
      %468 = vmatprep.subr.bf16.mxu0 0
      %469 = vmatpush1.bf16.msra.mxu0 0
      %470 = vmatprep.subr.bf16.mxu0 0
      %471 = vmatpush1.bf16.msra.mxu0 0
      %472 = vmatprep.subr.bf16.mxu0 0
      %473 = vmatpush1.bf16.msra.mxu0 0
      %474 = vmatprep.subr.bf16.mxu0 0
      %475 = vmatpush1.bf16.msra.mxu0 0
      %476 = vmatprep.subr.bf16.mxu0 0
      %477 = vmatpush1.bf16.msra.mxu0 0
      %478 = vmatprep.subr.bf16.mxu0 0
      %479 = vmatpush1.bf16.msra.mxu0 0
      %480 = vmatprep.subr.bf16.mxu0 0
      %481 = vmatpush1.bf16.msra.mxu0 0
      %482 = vmatprep.subr.bf16.mxu0 0
      %483 = vmatpush1.bf16.msra.mxu0 0
      %484 = vmatprep.subr.bf16.mxu0 0
      %485 = vmatpush1.bf16.msra.mxu0 0
      %486 = vmatprep.subr.bf16.mxu0 0
      %487 = vmatpush1.bf16.msra.mxu0 0
      %488 = vmatprep.subr.bf16.mxu0 0
      %489 = vmatpush1.bf16.msra.mxu0 0
      %490 = vmatprep.mubr.bf16.mxu0 0
      %491 = vmatmul.mubr.bf16.gmra.mrb[0].mxu0 %v453
      %v492 = vpop.f32.mrb[0].mxu0
      %v493 = vadd.f32 0.0, %v492
      %v494 = vpop.f32.mrb[0].mxu0
      %v495 = vpop.f32.mrb[0].mxu0
      %v496 = vpop.f32.mrb[0].mxu0
      %497 = vdwg.mxu0
      %v498 = vrcp.pop %v445
      %v499 = vmul.f32 %v493, %v498
      %v500 = vpack.c.bf16 %v499, %v499
      %v502 = vunpack.c.l.b16 %v500
      %v503 = vpack.c.b16 %v502, %v502
      %504 = vrot.lane.b32.xlu0 %v503, 64
      %v505 = vpop.permute.xlu0 %504
      %vm507 = vcmask 1043968
      %508 = vst.msk [vmem:[%s255] sm:$0xf] %vm507, %v505
      %p509 = scmp.lt.s32.totalorder %s15, 1
      %s510 = scalar_select %p509, %s15, 1
      %s511 = smul.addr %s510, 4
      %s512 = scalar_lea.vmem %s4, %s511
      // Predicated region
      $region37: #{dnabert2_conservation_forward.14} parent=35 // pred_check
        %p513 = pneg %p137
      $region38: #{dnabert2_conservation_forward.14} parent=35 // pred_check_branch
        %515 = sbr.rel (%p513) target = $region40
      $region39: #{dnabert2_conservation_forward.14} parent=35 // pred_region
        _
      $region40: #{dnabert2_conservation_forward.14} parent=35 // pred_fallthru
        _
    $region36: #{dnabert2_conservation_forward.14} parent=5 // pred_fallthru
      _
    %p516 = scmp.le.s32.totalorder 2, %s10
    // Predicated region
    $region41: #{dnabert2_conservation_forward.14} parent=5 // pred_check
      %p517 = pneg %p516
    $region42: #{dnabert2_conservation_forward.14} parent=5 // pred_check_branch
      %519 = sbr.rel (%p517) target = $region44
    $region43: #{dnabert2_conservation_forward.14} parent=5 // pred_region
      %s520 = ssub.s32 %s10, 2
      // Predicated region
      $region45: #{dnabert2_conservation_forward.14} parent=43 // pred_check
        %p521 = pneg %p143
      $region46: #{dnabert2_conservation_forward.14} parent=43 // pred_check_branch
        %523 = sbr.rel (%p521) target = $region48
      $region47: #{dnabert2_conservation_forward.14} parent=43 // pred_region
        %p524 = scmp.lt.s32.totalorder %s16, 1
        %s525 = scalar_select %p524, %s16, 1
        %s526 = smul.addr %s525, 4
        %s527 = scalar_lea.vmem %s4, %s526
      $region48: #{dnabert2_conservation_forward.14} parent=43 // pred_fallthru
        _
    $region44: #{dnabert2_conservation_forward.14} parent=5 // pred_fallthru
      _
  $region6: #{dnabert2_conservation_forward.14} parent=0 // loop_footer
    %s14 = sadd.s32 1, %s10
  $region7: #{dnabert2_conservation_forward.14} parent=0 // loop_footer_branch
    %9 = sbr.rel target = $region3
  $region8: #{dnabert2_conservation_forward.14} parent=0 // loop_exit
    _

// kernel: dnabert2_conservation_forward.15
$region0: #{dnabert2_conservation_forward.15}
  #allocation0 [shape = 'u32[]', space=smem, size = 0x4, offset = 0x4, fixed_abs, tag = 'smem constant byte address 0x4 - core index']
  #allocation1 [shape = 'u32[144,128]{1,0:T(1,128)}', space=vmem, size = 0x12000, scoped, tag = 'internal scratch']
  %s0 = inlined_call_operand.vmem [shape: bf16[16,128], index: 0, kind: input, shape index: {}]
  %s1 = inlined_call_operand.vmem [shape: bf16[128,128], index: 1, kind: input, shape index: {}]
  %s2 = inlined_call_operand.vmem [shape: f32[1,128], index: 2, kind: input, shape index: {}]
  %s3 = inlined_call_operand.vmem [shape: bf16[16,128], index: 3, kind: input, shape index: {}, may-alias: {3,6}]
  %s4 = inlined_call_operand.vmem [shape: f32[1,128], index: 4, kind: input, shape index: {}]
  %s5 = inlined_call_operand.vmem [shape: f32[1,128], index: 5, kind: input, shape index: {}]
  %s6 = inlined_call_operand.vmem [shape: bf16[16,128], index: 6, kind: output, shape index: {}, may-alias: {3,6}]
  %s7 = sld [smem:[#allocation0]]
  $region34: #{dnabert2_conservation_forward.15} parent=0
    _
  %s9 = ssub.s32 1, %s7
  %s10 = scalar_select 0, %s9, %s7
  // Predicated region
  $region2: #{dnabert2_conservation_forward.15} parent=0 // pred_check
    _
  $region3: #{dnabert2_conservation_forward.15} parent=0 // pred_check_branch
    %12 = sbr.rel (0) target = $region5
  $region4: #{dnabert2_conservation_forward.15} parent=0 // pred_region
    _
  $region5: #{dnabert2_conservation_forward.15} parent=0 // pred_fallthru
    _
  // Predicated region
  $region6: #{dnabert2_conservation_forward.15} parent=0 // pred_check
    _
  $region7: #{dnabert2_conservation_forward.15} parent=0 // pred_check_branch
    %14 = sbr.rel (0) target = $region9
  $region8: #{dnabert2_conservation_forward.15} parent=0 // pred_region
    _
  $region9: #{dnabert2_conservation_forward.15} parent=0 // pred_fallthru
    _
  // Predicated region
  $region10: #{dnabert2_conservation_forward.15} parent=0 // pred_check
    _
  $region11: #{dnabert2_conservation_forward.15} parent=0 // pred_check_branch
    %16 = sbr.rel (0) target = $region13
  $region12: #{dnabert2_conservation_forward.15} parent=0 // pred_region
    _
  $region13: #{dnabert2_conservation_forward.15} parent=0 // pred_fallthru
    _
  // Predicated region
  $region14: #{dnabert2_conservation_forward.15} parent=0 // pred_check
    _
  $region15: #{dnabert2_conservation_forward.15} parent=0 // pred_check_branch
    %18 = sbr.rel (0) target = $region17
  $region16: #{dnabert2_conservation_forward.15} parent=0 // pred_region
    _
  $region17: #{dnabert2_conservation_forward.15} parent=0 // pred_fallthru
    _
  // Predicated region
  $region18: #{dnabert2_conservation_forward.15} parent=0 // pred_check
    _
  $region19: #{dnabert2_conservation_forward.15} parent=0 // pred_check_branch
    %20 = sbr.rel (0) target = $region21
  $region20: #{dnabert2_conservation_forward.15} parent=0 // pred_region
    _
  $region21: #{dnabert2_conservation_forward.15} parent=0 // pred_fallthru
    _
  // Predicated region
  $region22: #{dnabert2_conservation_forward.15} parent=0 // pred_check
    _
  $region23: #{dnabert2_conservation_forward.15} parent=0 // pred_check_branch
    %22 = sbr.rel (0) target = $region25
  $region24: #{dnabert2_conservation_forward.15} parent=0 // pred_region
    _
  $region25: #{dnabert2_conservation_forward.15} parent=0 // pred_fallthru
    _
  %v24 = vld [vmem:[%s0] sm:$0xf]
  %v25 = vld [vmem:[%s0 + $0x4] sm:$0xf]
  %v26 = vld [vmem:[%s1] sm:$0xf]
  %v27 = vld [vmem:[%s1 + $0x4] sm:$0xf]
  %v28 = vld [vmem:[%s1 + $0x8] sm:$0xf]
  %v29 = vld [vmem:[%s1 + $0xc] sm:$0xf]
  %v30 = vld [vmem:[%s1 + $0x10] sm:$0xf]
  %v31 = vld [vmem:[%s1 + $0x14] sm:$0xf]
  %v32 = vld [vmem:[%s1 + $0x18] sm:$0xf]
  %v33 = vld [vmem:[%s1 + $0x1c] sm:$0xf]
  %v34 = vld [vmem:[%s1 + $0x20] sm:$0xf]
  %v35 = vld [vmem:[%s1 + $0x24] sm:$0xf]
  %v36 = vld [vmem:[%s1 + $0x28] sm:$0xf]
  %v37 = vld [vmem:[%s1 + $0x2c] sm:$0xf]
  %v38 = vld [vmem:[%s1 + $0x30] sm:$0xf]
  %v39 = vld [vmem:[%s1 + $0x34] sm:$0xf]
  %v40 = vld [vmem:[%s1 + $0x38] sm:$0xf]
  %v41 = vld [vmem:[%s1 + $0x3c] sm:$0xf]
  %v42 = vld [vmem:[%s2] sm:$0x1]
  %v44 = vlaneseq
  %v45 = vshrl.u32 %v44, 7
  %v46 = vsub.s32 0, %v45
  %v47 = vrot.slane %v42, %v46
  %v51 = vunpack.c.l.b16 %v24
  %v52 = vunpack.c.l.b16 %v25
  %v53 = vpack.c.b16 %v52, %v51
  %v71 = vunpack.c.l.b16 %v26
  %v72 = vunpack.c.l.b16 %v27
  %v73 = vunpack.c.l.b16 %v28
  %v74 = vunpack.c.l.b16 %v29
  %v75 = vunpack.c.l.b16 %v30
  %v76 = vunpack.c.l.b16 %v31
  %v77 = vunpack.c.l.b16 %v32
  %v78 = vunpack.c.l.b16 %v33
  %v79 = vunpack.c.l.b16 %v34
  %v80 = vunpack.c.l.b16 %v35
  %v81 = vunpack.c.l.b16 %v36
  %v82 = vunpack.c.l.b16 %v37
  %v83 = vunpack.c.l.b16 %v38
  %v84 = vunpack.c.l.b16 %v39
  %v85 = vunpack.c.l.b16 %v40
  %v86 = vunpack.c.l.b16 %v41
  %v87 = vpack.c.b16 %v72, %v71
  %v88 = vpack.c.b16 %v74, %v73
  %v89 = vpack.c.b16 %v76, %v75
  %v90 = vpack.c.b16 %v78, %v77
  %v91 = vpack.c.b16 %v80, %v79
  %v92 = vpack.c.b16 %v82, %v81
  %v93 = vpack.c.b16 %v84, %v83
  %v94 = vpack.c.b16 %v86, %v85
  %103 = vmatprep.subr.bf16.mxu0 0
  %104 = vmatpush1.bf16.msra.mxu0 %v87
  %105 = vmatprep.subr.bf16.mxu0 0
  %106 = vmatpush1.bf16.msra.mxu0 %v88
  %107 = vmatprep.subr.bf16.mxu0 0
  %108 = vmatpush1.bf16.msra.mxu0 %v89
  %109 = vmatprep.subr.bf16.mxu0 0
  %110 = vmatpush1.bf16.msra.mxu0 %v90
  %111 = vmatprep.subr.bf16.mxu0 0
  %112 = vmatpush1.bf16.msra.mxu0 %v91
  %113 = vmatprep.subr.bf16.mxu0 0
  %114 = vmatpush1.bf16.msra.mxu0 %v92
  %115 = vmatprep.subr.bf16.mxu0 0
  %116 = vmatpush1.bf16.msra.mxu0 %v93
  %117 = vmatprep.subr.bf16.mxu0 0
  %118 = vmatpush1.bf16.msra.mxu0 %v94
  %119 = vmatprep.subr.bf16.mxu0 0
  %120 = vmatpush1.bf16.msra.mxu0 0
  %121 = vmatprep.subr.bf16.mxu0 0
  %122 = vmatpush1.bf16.msra.mxu0 0
  %123 = vmatprep.subr.bf16.mxu0 0
  %124 = vmatpush1.bf16.msra.mxu0 0
  %125 = vmatprep.subr.bf16.mxu0 0
  %126 = vmatpush1.bf16.msra.mxu0 0
  %127 = vmatprep.subr.bf16.mxu0 0
  %128 = vmatpush1.bf16.msra.mxu0 0
  %129 = vmatprep.subr.bf16.mxu0 0
  %130 = vmatpush1.bf16.msra.mxu0 0
  %131 = vmatprep.subr.bf16.mxu0 0
  %132 = vmatpush1.bf16.msra.mxu0 0
  %133 = vmatprep.subr.bf16.mxu0 0
  %134 = vmatpush1.bf16.msra.mxu0 0
  %135 = vmatprep.mubr.bf16.mxu0 0
  %136 = vmatmul.mubr.bf16.gmra.mrb[0].mxu0 %v53
  %v137 = vpop.f32.mrb[0].mxu0
  %v138 = vadd.f32 %v47, %v137
  %v139 = vpop.f32.mrb[0].mxu0
  %v140 = vpop.f32.mrb[0].mxu0
  %v141 = vadd.f32 %v47, %v140
  %v142 = vpop.f32.mrb[0].mxu0
  %143 = vdwg.mxu0
  %v144 = vld [vmem:[%s3] sm:$0xf]
  %v145 = vld [vmem:[%s3 + $0x4] sm:$0xf]
  %v146 = vunpack.c.l.bf16 %v144
  %v147 = vunpack.c.l.bf16 %v145
  %v148 = vadd.f32 %v138, %v146
  %v149 = vadd.f32 %v141, %v147
  %150 = vadd.xlane.f32.xlu0 %v148
  %v151 = vpop.xlane.xlu0 %150
  %152 = vadd.xlane.f32.xlu0 %v149
  %v153 = vpop.xlane.xlu0 %152
  %v154 = vrcp.pop 128.0
  %v155 = vmul.f32 %v151, %v154
  %v156 = vmul.f32 %v153, %v154
  %v157 = vsub.f32 %v148, %v155
  %v158 = vsub.f32 %v149, %v156
  %v159 = vmul.f32 %v157, %v157
  %v160 = vmul.f32 %v158, %v158
  %161 = vadd.xlane.f32.xlu0 %v159
  %v162 = vpop.xlane.xlu0 %161
  %163 = vadd.xlane.f32.xlu0 %v160
  %v164 = vpop.xlane.xlu0 %163
  %v165 = vmul.f32 %v162, %v154
  %v166 = vmul.f32 %v164, %v154
  %v167 = vadd.f32 %v165, 1e-12
  %v168 = vadd.f32 %v166, 1e-12
  %v169 = vrsqrt.pop %v167
  %v170 = vrsqrt.pop %v168
  %v171 = vmul.f32 %v157, %v169
  %v172 = vmul.f32 %v158, %v170
  %v173 = vld [vmem:[%s4] sm:$0x1]
  %v175 = vlaneseq
  %v176 = vshrl.u32 %v175, 7
  %v177 = vsub.s32 0, %v176
  %v178 = vrot.slane %v173, %v177
  %v180 = vmul.f32 %v171, %v178
  %v181 = vmul.f32 %v172, %v178
  %v182 = vld [vmem:[%s5] sm:$0x1]
  %v184 = vlaneseq
  %v185 = vshrl.u32 %v184, 7
  %v186 = vsub.s32 0, %v185
  %v187 = vrot.slane %v182, %v186
  %v189 = vadd.f32 %v180, %v187
  %v190 = vadd.f32 %v181, %v187
  %v191 = vpack.c.bf16 %v190, %v189
  %v193 = vunpack.c.l.b16 %v191
  %v194 = vunpack.c.h.b16 %v191
  %v195 = vpack.c.b16 %v193, %v193
  %v196 = vpack.c.b16 %v194, %v194
  %199 = vst [vmem:[%s6] sm:$0xf] %v195
  %200 = vst [vmem:[%s6 + $0x4] sm:$0xf] %v196
  // Predicated region
  $region26: #{dnabert2_conservation_forward.15} parent=0 // pred_check
    _
  $region27: #{dnabert2_conservation_forward.15} parent=0 // pred_check_branch
    %202 = sbr.rel (0) target = $region29
  $region28: #{dnabert2_conservation_forward.15} parent=0 // pred_region
    _
  $region29: #{dnabert2_conservation_forward.15} parent=0 // pred_fallthru
    _
  // Predicated region
  $region30: #{dnabert2_conservation_forward.15} parent=0 // pred_check
    _
  $region31: #{dnabert2_conservation_forward.15} parent=0 // pred_check_branch
    %204 = sbr.rel (0) target = $region33
  $region32: #{dnabert2_conservation_forward.15} parent=0 // pred_region
    _
  $region33: #{dnabert2_conservation_forward.15} parent=0 // pred_fallthru
    _

// kernel: dnabert2_conservation_forward.16
$region0: #{dnabert2_conservation_forward.16}
  #allocation0 [shape = 'u32[]', space=smem, size = 0x4, offset = 0x4, fixed_abs, tag = 'smem constant byte address 0x4 - core index']
  #allocation1 [shape = 'u32[144,128]{1,0:T(1,128)}', space=vmem, size = 0x12000, scoped, tag = 'internal scratch']
  %s0 = inlined_call_operand.vmem [shape: bf16[16,128], index: 0, kind: input, shape index: {}]
  %s1 = inlined_call_operand.vmem [shape: bf16[128,256], index: 1, kind: input, shape index: {}]
  %s2 = inlined_call_operand.vmem [shape: f32[1,256], index: 2, kind: input, shape index: {}]
  %s3 = inlined_call_operand.vmem [shape: bf16[16,256], index: 3, kind: output, shape index: {}]
  %s4 = sld [smem:[#allocation0]]
  $region22: #{dnabert2_conservation_forward.16} parent=0
    _
  %s6 = ssub.s32 1, %s4
  %s7 = scalar_select 0, %s6, %s4
  // Predicated region
  $region2: #{dnabert2_conservation_forward.16} parent=0 // pred_check
    _
  $region3: #{dnabert2_conservation_forward.16} parent=0 // pred_check_branch
    %9 = sbr.rel (0) target = $region5
  $region4: #{dnabert2_conservation_forward.16} parent=0 // pred_region
    _
  $region5: #{dnabert2_conservation_forward.16} parent=0 // pred_fallthru
    _
  // Predicated region
  $region6: #{dnabert2_conservation_forward.16} parent=0 // pred_check
    _
  $region7: #{dnabert2_conservation_forward.16} parent=0 // pred_check_branch
    %11 = sbr.rel (0) target = $region9
  $region8: #{dnabert2_conservation_forward.16} parent=0 // pred_region
    _
  $region9: #{dnabert2_conservation_forward.16} parent=0 // pred_fallthru
    _
  // Predicated region
  $region10: #{dnabert2_conservation_forward.16} parent=0 // pred_check
    _
  $region11: #{dnabert2_conservation_forward.16} parent=0 // pred_check_branch
    %13 = sbr.rel (0) target = $region13
  $region12: #{dnabert2_conservation_forward.16} parent=0 // pred_region
    _
  $region13: #{dnabert2_conservation_forward.16} parent=0 // pred_fallthru
    _
  %v15 = vld [vmem:[%s0] sm:$0xf]
  %v16 = vld [vmem:[%s0 + $0x4] sm:$0xf]
  %v17 = vld [vmem:[%s1] sm:$0xff]
  %v18 = vld [vmem:[%s1 + $0x8] sm:$0xff]
  %v19 = vld [vmem:[%s1 + $0x10] sm:$0xff]
  %v20 = vld [vmem:[%s1 + $0x18] sm:$0xff]
  %v21 = vld [vmem:[%s1 + $0x20] sm:$0xff]
  %v22 = vld [vmem:[%s1 + $0x28] sm:$0xff]
  %v23 = vld [vmem:[%s1 + $0x30] sm:$0xff]
  %v24 = vld [vmem:[%s1 + $0x38] sm:$0xff]
  %v25 = vld [vmem:[%s1 + $0x40] sm:$0xff]
  %v26 = vld [vmem:[%s1 + $0x48] sm:$0xff]
  %v27 = vld [vmem:[%s1 + $0x50] sm:$0xff]
  %v28 = vld [vmem:[%s1 + $0x58] sm:$0xff]
  %v29 = vld [vmem:[%s1 + $0x60] sm:$0xff]
  %v30 = vld [vmem:[%s1 + $0x68] sm:$0xff]
  %v31 = vld [vmem:[%s1 + $0x70] sm:$0xff]
  %v32 = vld [vmem:[%s1 + $0x78] sm:$0xff]
  %v33 = vld [vmem:[%s2] sm:$0x3]
  %v35 = vlaneseq
  %v36 = vshrl.u32 %v35, 7
  %v37 = vsub.s32 0, %v36
  %v38 = vrot.slane %v33, %v37
  %v39 = vlaneseq
  %v40 = vshrl.u32 %v39, 7
  %v41 = vsub.s32 1, %v40
  %v42 = vrot.slane %v33, %v41
  %v47 = vunpack.c.l.b16 %v15
  %v48 = vunpack.c.l.b16 %v16
  %v49 = vpack.c.b16 %v48, %v47
  %v67 = vunpack.c.l.b16 %v17
  %v68 = vunpack.c.h.b16 %v17
  %v69 = vunpack.c.l.b16 %v18
  %v70 = vunpack.c.h.b16 %v18
  %v71 = vunpack.c.l.b16 %v19
  %v72 = vunpack.c.h.b16 %v19
  %v73 = vunpack.c.l.b16 %v20
  %v74 = vunpack.c.h.b16 %v20
  %v75 = vunpack.c.l.b16 %v21
  %v76 = vunpack.c.h.b16 %v21
  %v77 = vunpack.c.l.b16 %v22
  %v78 = vunpack.c.h.b16 %v22
  %v79 = vunpack.c.l.b16 %v23
  %v80 = vunpack.c.h.b16 %v23
  %v81 = vunpack.c.l.b16 %v24
  %v82 = vunpack.c.h.b16 %v24
  %v83 = vunpack.c.l.b16 %v25
  %v84 = vunpack.c.h.b16 %v25
  %v85 = vunpack.c.l.b16 %v26
  %v86 = vunpack.c.h.b16 %v26
  %v87 = vunpack.c.l.b16 %v27
  %v88 = vunpack.c.h.b16 %v27
  %v89 = vunpack.c.l.b16 %v28
  %v90 = vunpack.c.h.b16 %v28
  %v91 = vunpack.c.l.b16 %v29
  %v92 = vunpack.c.h.b16 %v29
  %v93 = vunpack.c.l.b16 %v30
  %v94 = vunpack.c.h.b16 %v30
  %v95 = vunpack.c.l.b16 %v31
  %v96 = vunpack.c.h.b16 %v31
  %v97 = vunpack.c.l.b16 %v32
  %v98 = vunpack.c.h.b16 %v32
  %v99 = vpack.c.b16 %v69, %v67
  %v100 = vpack.c.b16 %v70, %v68
  %v101 = vpack.c.b16 %v73, %v71
  %v102 = vpack.c.b16 %v74, %v72
  %v103 = vpack.c.b16 %v77, %v75
  %v104 = vpack.c.b16 %v78, %v76
  %v105 = vpack.c.b16 %v81, %v79
  %v106 = vpack.c.b16 %v82, %v80
  %v107 = vpack.c.b16 %v85, %v83
  %v108 = vpack.c.b16 %v86, %v84
  %v109 = vpack.c.b16 %v89, %v87
  %v110 = vpack.c.b16 %v90, %v88
  %v111 = vpack.c.b16 %v93, %v91
  %v112 = vpack.c.b16 %v94, %v92
  %v113 = vpack.c.b16 %v97, %v95
  %v114 = vpack.c.b16 %v98, %v96
  %131 = vmatprep.subr.bf16.mxu0 %v100
  %132 = vmatpush1.bf16.msra.mxu0 %v99
  %133 = vmatprep.subr.bf16.mxu0 %v102
  %134 = vmatpush1.bf16.msra.mxu0 %v101
  %135 = vmatprep.subr.bf16.mxu0 %v104
  %136 = vmatpush1.bf16.msra.mxu0 %v103
  %137 = vmatprep.subr.bf16.mxu0 %v106
  %138 = vmatpush1.bf16.msra.mxu0 %v105
  %139 = vmatprep.subr.bf16.mxu0 %v108
  %140 = vmatpush1.bf16.msra.mxu0 %v107
  %141 = vmatprep.subr.bf16.mxu0 %v110
  %142 = vmatpush1.bf16.msra.mxu0 %v109
  %143 = vmatprep.subr.bf16.mxu0 %v112
  %144 = vmatpush1.bf16.msra.mxu0 %v111
  %145 = vmatprep.subr.bf16.mxu0 %v114
  %146 = vmatpush1.bf16.msra.mxu0 %v113
  %147 = vmatprep.subr.bf16.mxu0 0
  %148 = vmatpush1.bf16.msra.mxu0 0
  %149 = vmatprep.subr.bf16.mxu0 0
  %150 = vmatpush1.bf16.msra.mxu0 0
  %151 = vmatprep.subr.bf16.mxu0 0
  %152 = vmatpush1.bf16.msra.mxu0 0
  %153 = vmatprep.subr.bf16.mxu0 0
  %154 = vmatpush1.bf16.msra.mxu0 0
  %155 = vmatprep.subr.bf16.mxu0 0
  %156 = vmatpush1.bf16.msra.mxu0 0
  %157 = vmatprep.subr.bf16.mxu0 0
  %158 = vmatpush1.bf16.msra.mxu0 0
  %159 = vmatprep.subr.bf16.mxu0 0
  %160 = vmatpush1.bf16.msra.mxu0 0
  %161 = vmatprep.subr.bf16.mxu0 0
  %162 = vmatpush1.bf16.msra.mxu0 0
  %163 = vmatprep.mubr.bf16.mxu0 0
  %164 = vmatmul.mubr.bf16.gmra.mrb[0].mxu0 %v49
  %v165 = vpop.f32.mrb[0].mxu0
  %v166 = vadd.f32 %v38, %v165
  %v167 = vpop.f32.mrb[0].mxu0
  %v168 = vadd.f32 %v42, %v167
  %v169 = vpop.f32.mrb[0].mxu0
  %v170 = vadd.f32 %v38, %v169
  %v171 = vpop.f32.mrb[0].mxu0
  %v172 = vadd.f32 %v42, %v171
  %173 = vdwg.mxu0
  %v174 = vmul.f32 %v166, 0.5
  %v175 = vmul.f32 %v168, 0.5
  %v176 = vmul.f32 %v170, 0.5
  %v177 = vmul.f32 %v172, 0.5
  %v178 = vmul.f32 %v166, 0.70710677
  %v179 = vmul.f32 %v168, 0.70710677
  %v180 = vmul.f32 %v170, 0.70710677
  %v181 = vmul.f32 %v172, 0.70710677
  %v182 = verf.f32.pop %v178
  %v183 = verf.f32.pop %v179
  %v184 = verf.f32.pop %v180
  %v185 = verf.f32.pop %v181
  %v186 = vadd.f32 %v182, 1.0
  %v187 = vadd.f32 %v183, 1.0
  %v188 = vadd.f32 %v184, 1.0
  %v189 = vadd.f32 %v185, 1.0
  %v190 = vmul.f32 %v174, %v186
  %v191 = vmul.f32 %v175, %v187
  %v192 = vmul.f32 %v176, %v188
  %v193 = vmul.f32 %v177, %v189
  %v194 = vpack.c.bf16 %v192, %v190
  %v195 = vpack.c.bf16 %v193, %v191
  %v198 = vunpack.c.l.b16 %v194
  %v199 = vunpack.c.l.b16 %v195
  %v200 = vunpack.c.h.b16 %v194
  %v201 = vunpack.c.h.b16 %v195
  %v202 = vpack.c.b16 %v199, %v198
  %v203 = vpack.c.b16 %v201, %v200
  %206 = vst [vmem:[%s3] sm:$0xff] %v202
  %207 = vst [vmem:[%s3 + $0x8] sm:$0xff] %v203
  // Predicated region
  $region14: #{dnabert2_conservation_forward.16} parent=0 // pred_check
    _
  $region15: #{dnabert2_conservation_forward.16} parent=0 // pred_check_branch
    %209 = sbr.rel (0) target = $region17
  $region16: #{dnabert2_conservation_forward.16} parent=0 // pred_region
    _
  $region17: #{dnabert2_conservation_forward.16} parent=0 // pred_fallthru
    _
  // Predicated region
  $region18: #{dnabert2_conservation_forward.16} parent=0 // pred_check
    _
  $region19: #{dnabert2_conservation_forward.16} parent=0 // pred_check_branch
    %211 = sbr.rel (0) target = $region21
  $region20: #{dnabert2_conservation_forward.16} parent=0 // pred_region
    _
  $region21: #{dnabert2_conservation_forward.16} parent=0 // pred_fallthru
    _

// kernel: dnabert2_conservation_forward.17
$region0: #{dnabert2_conservation_forward.17}
  #allocation0 [shape = 'u32[]', space=smem, size = 0x4, offset = 0x4, fixed_abs, tag = 'smem constant byte address 0x4 - core index']
  #allocation1 [shape = 'u32[144,128]{1,0:T(1,128)}', space=vmem, size = 0x12000, scoped, tag = 'internal scratch']
  %s0 = inlined_call_operand.vmem [shape: bf16[16,256], index: 0, kind: input, shape index: {}]
  %s1 = inlined_call_operand.vmem [shape: bf16[256,128], index: 1, kind: input, shape index: {}]
  %s2 = inlined_call_operand.vmem [shape: f32[1,128], index: 2, kind: input, shape index: {}]
  %s3 = inlined_call_operand.vmem [shape: bf16[16,128], index: 3, kind: input, shape index: {}, may-alias: {3,6}]
  %s4 = inlined_call_operand.vmem [shape: f32[1,128], index: 4, kind: input, shape index: {}]
  %s5 = inlined_call_operand.vmem [shape: f32[1,128], index: 5, kind: input, shape index: {}]
  %s6 = inlined_call_operand.vmem [shape: bf16[16,128], index: 6, kind: output, shape index: {}, may-alias: {3,6}]
  %s7 = sld [smem:[#allocation0]]
  $region34: #{dnabert2_conservation_forward.17} parent=0
    _
  %s9 = ssub.s32 1, %s7
  %s10 = scalar_select 0, %s9, %s7
  // Predicated region
  $region2: #{dnabert2_conservation_forward.17} parent=0 // pred_check
    _
  $region3: #{dnabert2_conservation_forward.17} parent=0 // pred_check_branch
    %12 = sbr.rel (0) target = $region5
  $region4: #{dnabert2_conservation_forward.17} parent=0 // pred_region
    _
  $region5: #{dnabert2_conservation_forward.17} parent=0 // pred_fallthru
    _
  // Predicated region
  $region6: #{dnabert2_conservation_forward.17} parent=0 // pred_check
    _
  $region7: #{dnabert2_conservation_forward.17} parent=0 // pred_check_branch
    %14 = sbr.rel (0) target = $region9
  $region8: #{dnabert2_conservation_forward.17} parent=0 // pred_region
    _
  $region9: #{dnabert2_conservation_forward.17} parent=0 // pred_fallthru
    _
  // Predicated region
  $region10: #{dnabert2_conservation_forward.17} parent=0 // pred_check
    _
  $region11: #{dnabert2_conservation_forward.17} parent=0 // pred_check_branch
    %16 = sbr.rel (0) target = $region13
  $region12: #{dnabert2_conservation_forward.17} parent=0 // pred_region
    _
  $region13: #{dnabert2_conservation_forward.17} parent=0 // pred_fallthru
    _
  // Predicated region
  $region14: #{dnabert2_conservation_forward.17} parent=0 // pred_check
    _
  $region15: #{dnabert2_conservation_forward.17} parent=0 // pred_check_branch
    %18 = sbr.rel (0) target = $region17
  $region16: #{dnabert2_conservation_forward.17} parent=0 // pred_region
    _
  $region17: #{dnabert2_conservation_forward.17} parent=0 // pred_fallthru
    _
  // Predicated region
  $region18: #{dnabert2_conservation_forward.17} parent=0 // pred_check
    _
  $region19: #{dnabert2_conservation_forward.17} parent=0 // pred_check_branch
    %20 = sbr.rel (0) target = $region21
  $region20: #{dnabert2_conservation_forward.17} parent=0 // pred_region
    _
  $region21: #{dnabert2_conservation_forward.17} parent=0 // pred_fallthru
    _
  // Predicated region
  $region22: #{dnabert2_conservation_forward.17} parent=0 // pred_check
    _
  $region23: #{dnabert2_conservation_forward.17} parent=0 // pred_check_branch
    %22 = sbr.rel (0) target = $region25
  $region24: #{dnabert2_conservation_forward.17} parent=0 // pred_region
    _
  $region25: #{dnabert2_conservation_forward.17} parent=0 // pred_fallthru
    _
  %v24 = vld [vmem:[%s0] sm:$0xff]
  %v25 = vld [vmem:[%s0 + $0x8] sm:$0xff]
  %v26 = vld [vmem:[%s1] sm:$0xf]
  %v27 = vld [vmem:[%s1 + $0x4] sm:$0xf]
  %v28 = vld [vmem:[%s1 + $0x8] sm:$0xf]
  %v29 = vld [vmem:[%s1 + $0xc] sm:$0xf]
  %v30 = vld [vmem:[%s1 + $0x10] sm:$0xf]
  %v31 = vld [vmem:[%s1 + $0x14] sm:$0xf]
  %v32 = vld [vmem:[%s1 + $0x18] sm:$0xf]
  %v33 = vld [vmem:[%s1 + $0x1c] sm:$0xf]
  %v34 = vld [vmem:[%s1 + $0x20] sm:$0xf]
  %v35 = vld [vmem:[%s1 + $0x24] sm:$0xf]
  %v36 = vld [vmem:[%s1 + $0x28] sm:$0xf]
  %v37 = vld [vmem:[%s1 + $0x2c] sm:$0xf]
  %v38 = vld [vmem:[%s1 + $0x30] sm:$0xf]
  %v39 = vld [vmem:[%s1 + $0x34] sm:$0xf]
  %v40 = vld [vmem:[%s1 + $0x38] sm:$0xf]
  %v41 = vld [vmem:[%s1 + $0x3c] sm:$0xf]
  %v42 = vld [vmem:[%s1 + $0x40] sm:$0xf]
  %v43 = vld [vmem:[%s1 + $0x44] sm:$0xf]
  %v44 = vld [vmem:[%s1 + $0x48] sm:$0xf]
  %v45 = vld [vmem:[%s1 + $0x4c] sm:$0xf]
  %v46 = vld [vmem:[%s1 + $0x50] sm:$0xf]
  %v47 = vld [vmem:[%s1 + $0x54] sm:$0xf]
  %v48 = vld [vmem:[%s1 + $0x58] sm:$0xf]
  %v49 = vld [vmem:[%s1 + $0x5c] sm:$0xf]
  %v50 = vld [vmem:[%s1 + $0x60] sm:$0xf]
  %v51 = vld [vmem:[%s1 + $0x64] sm:$0xf]
  %v52 = vld [vmem:[%s1 + $0x68] sm:$0xf]
  %v53 = vld [vmem:[%s1 + $0x6c] sm:$0xf]
  %v54 = vld [vmem:[%s1 + $0x70] sm:$0xf]
  %v55 = vld [vmem:[%s1 + $0x74] sm:$0xf]
  %v56 = vld [vmem:[%s1 + $0x78] sm:$0xf]
  %v57 = vld [vmem:[%s1 + $0x7c] sm:$0xf]
  %v58 = vld [vmem:[%s2] sm:$0x1]
  %v60 = vlaneseq
  %v61 = vshrl.u32 %v60, 7
  %v62 = vsub.s32 0, %v61
  %v63 = vrot.slane %v58, %v62
  %v67 = vunpack.c.l.b16 %v24
  %v68 = vunpack.c.h.b16 %v24
  %v69 = vunpack.c.l.b16 %v25
  %v70 = vunpack.c.h.b16 %v25
  %v71 = vpack.c.b16 %v69, %v67
  %v72 = vpack.c.b16 %v70, %v68
  %v107 = vunpack.c.l.b16 %v26
  %v108 = vunpack.c.l.b16 %v27
  %v109 = vunpack.c.l.b16 %v28
  %v110 = vunpack.c.l.b16 %v29
  %v111 = vunpack.c.l.b16 %v30
  %v112 = vunpack.c.l.b16 %v31
  %v113 = vunpack.c.l.b16 %v32
  %v114 = vunpack.c.l.b16 %v33
  %v115 = vunpack.c.l.b16 %v34
  %v116 = vunpack.c.l.b16 %v35
  %v117 = vunpack.c.l.b16 %v36
  %v118 = vunpack.c.l.b16 %v37
  %v119 = vunpack.c.l.b16 %v38
  %v120 = vunpack.c.l.b16 %v39
  %v121 = vunpack.c.l.b16 %v40
  %v122 = vunpack.c.l.b16 %v41
  %v123 = vunpack.c.l.b16 %v42
  %v124 = vunpack.c.l.b16 %v43
  %v125 = vunpack.c.l.b16 %v44
  %v126 = vunpack.c.l.b16 %v45
  %v127 = vunpack.c.l.b16 %v46
  %v128 = vunpack.c.l.b16 %v47
  %v129 = vunpack.c.l.b16 %v48
  %v130 = vunpack.c.l.b16 %v49
  %v131 = vunpack.c.l.b16 %v50
  %v132 = vunpack.c.l.b16 %v51
  %v133 = vunpack.c.l.b16 %v52
  %v134 = vunpack.c.l.b16 %v53
  %v135 = vunpack.c.l.b16 %v54
  %v136 = vunpack.c.l.b16 %v55
  %v137 = vunpack.c.l.b16 %v56
  %v138 = vunpack.c.l.b16 %v57
  %v139 = vpack.c.b16 %v108, %v107
  %v140 = vpack.c.b16 %v110, %v109
  %v141 = vpack.c.b16 %v112, %v111
  %v142 = vpack.c.b16 %v114, %v113
  %v143 = vpack.c.b16 %v116, %v115
  %v144 = vpack.c.b16 %v118, %v117
  %v145 = vpack.c.b16 %v120, %v119
  %v146 = vpack.c.b16 %v122, %v121
  %v147 = vpack.c.b16 %v124, %v123
  %v148 = vpack.c.b16 %v126, %v125
  %v149 = vpack.c.b16 %v128, %v127
  %v150 = vpack.c.b16 %v130, %v129
  %v151 = vpack.c.b16 %v132, %v131
  %v152 = vpack.c.b16 %v134, %v133
  %v153 = vpack.c.b16 %v136, %v135
  %v154 = vpack.c.b16 %v138, %v137
  %171 = vmatprep.subr.bf16.mxu0 0
  %172 = vmatpush1.bf16.msra.mxu0 %v139
  %173 = vmatprep.subr.bf16.mxu0 0
  %174 = vmatpush1.bf16.msra.mxu0 %v140
  %175 = vmatprep.subr.bf16.mxu0 0
  %176 = vmatpush1.bf16.msra.mxu0 %v141
  %177 = vmatprep.subr.bf16.mxu0 0
  %178 = vmatpush1.bf16.msra.mxu0 %v142
  %179 = vmatprep.subr.bf16.mxu0 0
  %180 = vmatpush1.bf16.msra.mxu0 %v143
  %181 = vmatprep.subr.bf16.mxu0 0
  %182 = vmatpush1.bf16.msra.mxu0 %v144
  %183 = vmatprep.subr.bf16.mxu0 0
  %184 = vmatpush1.bf16.msra.mxu0 %v145
  %185 = vmatprep.subr.bf16.mxu0 0
  %186 = vmatpush1.bf16.msra.mxu0 %v146
  %187 = vmatprep.subr.bf16.mxu0 0
  %188 = vmatpush1.bf16.msra.mxu0 %v147
  %189 = vmatprep.subr.bf16.mxu0 0
  %190 = vmatpush1.bf16.msra.mxu0 %v148
  %191 = vmatprep.subr.bf16.mxu0 0
  %192 = vmatpush1.bf16.msra.mxu0 %v149
  %193 = vmatprep.subr.bf16.mxu0 0
  %194 = vmatpush1.bf16.msra.mxu0 %v150
  %195 = vmatprep.subr.bf16.mxu0 0
  %196 = vmatpush1.bf16.msra.mxu0 %v151
  %197 = vmatprep.subr.bf16.mxu0 0
  %198 = vmatpush1.bf16.msra.mxu0 %v152
  %199 = vmatprep.subr.bf16.mxu0 0
  %200 = vmatpush1.bf16.msra.mxu0 %v153
  %201 = vmatprep.subr.bf16.mxu0 0
  %202 = vmatpush1.bf16.msra.mxu0 %v154
  %203 = vmatprep.mubr.bf16.mxu0 %v72
  %204 = vmatmul.mubr.bf16.gmra.mrb[0].mxu0 %v71
  %v205 = vpop.f32.mrb[0].mxu0
  %v206 = vadd.f32 %v63, %v205
  %v207 = vpop.f32.mrb[0].mxu0
  %v208 = vpop.f32.mrb[0].mxu0
  %v209 = vadd.f32 %v63, %v208
  %v210 = vpop.f32.mrb[0].mxu0
  %211 = vdwg.mxu0
  %v212 = vld [vmem:[%s3] sm:$0xf]
  %v213 = vld [vmem:[%s3 + $0x4] sm:$0xf]
  %v214 = vunpack.c.l.bf16 %v212
  %v215 = vunpack.c.l.bf16 %v213
  %v216 = vadd.f32 %v206, %v214
  %v217 = vadd.f32 %v209, %v215
  %218 = vadd.xlane.f32.xlu0 %v216
  %v219 = vpop.xlane.xlu0 %218
  %220 = vadd.xlane.f32.xlu0 %v217
  %v221 = vpop.xlane.xlu0 %220
  %v222 = vrcp.pop 128.0
  %v223 = vmul.f32 %v219, %v222
  %v224 = vmul.f32 %v221, %v222
  %v225 = vsub.f32 %v216, %v223
  %v226 = vsub.f32 %v217, %v224
  %v227 = vmul.f32 %v225, %v225
  %v228 = vmul.f32 %v226, %v226
  %229 = vadd.xlane.f32.xlu0 %v227
  %v230 = vpop.xlane.xlu0 %229
  %231 = vadd.xlane.f32.xlu0 %v228
  %v232 = vpop.xlane.xlu0 %231
  %v233 = vmul.f32 %v230, %v222
  %v234 = vmul.f32 %v232, %v222
  %v235 = vadd.f32 %v233, 1e-12
  %v236 = vadd.f32 %v234, 1e-12
  %v237 = vrsqrt.pop %v235
  %v238 = vrsqrt.pop %v236
  %v239 = vmul.f32 %v225, %v237
  %v240 = vmul.f32 %v226, %v238
  %v241 = vld [vmem:[%s4] sm:$0x1]
  %v243 = vlaneseq
  %v244 = vshrl.u32 %v243, 7
  %v245 = vsub.s32 0, %v244
  %v246 = vrot.slane %v241, %v245
  %v248 = vmul.f32 %v239, %v246
  %v249 = vmul.f32 %v240, %v246
  %v250 = vld [vmem:[%s5] sm:$0x1]
  %v252 = vlaneseq
  %v253 = vshrl.u32 %v252, 7
  %v254 = vsub.s32 0, %v253
  %v255 = vrot.slane %v250, %v254
  %v257 = vadd.f32 %v248, %v255
  %v258 = vadd.f32 %v249, %v255
  %v259 = vpack.c.bf16 %v258, %v257
  %v261 = vunpack.c.l.b16 %v259
  %v262 = vunpack.c.h.b16 %v259
  %v263 = vpack.c.b16 %v261, %v261
  %v264 = vpack.c.b16 %v262, %v262
  %267 = vst [vmem:[%s6] sm:$0xf] %v263
  %268 = vst [vmem:[%s6 + $0x4] sm:$0xf] %v264
  // Predicated region
  $region26: #{dnabert2_conservation_forward.17} parent=0 // pred_check
    _
  $region27: #{dnabert2_conservation_forward.17} parent=0 // pred_check_branch
    %270 = sbr.rel (0) target = $region29
  $region28: #{dnabert2_conservation_forward.17} parent=0 // pred_region
    _
  $region29: #{dnabert2_conservation_forward.17} parent=0 // pred_fallthru
    _
  // Predicated region
  $region30: #{dnabert2_conservation_forward.17} parent=0 // pred_check
    _
  $region31: #{dnabert2_conservation_forward.17} parent=0 // pred_check_branch
    %272 = sbr.rel (0) target = $region33
  $region32: #{dnabert2_conservation_forward.17} parent=0 // pred_region
    _
  $region33: #{dnabert2_conservation_forward.17} parent=0 // pred_fallthru
    _

// kernel: dnabert2_conservation_forward.23
$region0: #{dnabert2_conservation_forward.23}
  #allocation0 [shape = 'u32[]', space=smem, size = 0x4, offset = 0x4, fixed_abs, tag = 'smem constant byte address 0x4 - core index']
  #allocation1 [shape = 'u32[144,128]{1,0:T(1,128)}', space=vmem, size = 0x12000, scoped, tag = 'internal scratch']
  %s0 = inlined_call_operand.vmem [shape: bf16[2,128], index: 0, kind: input, shape index: {}]
  %s1 = inlined_call_operand.vmem [shape: bf16[2,4], index: 1, kind: input, shape index: {}]
  %s2 = inlined_call_operand.vmem [shape: bf16[4,64], index: 2, kind: input, shape index: {}]
  %s3 = inlined_call_operand.vmem [shape: f32[1,64], index: 3, kind: input, shape index: {}]
  %s4 = inlined_call_operand.vmem [shape: bf16[64,128], index: 4, kind: input, shape index: {}]
  %s5 = inlined_call_operand.vmem [shape: f32[1,128], index: 5, kind: input, shape index: {}]
  %s6 = inlined_call_operand.vmem [shape: bf16[128,256], index: 6, kind: input, shape index: {}]
  %s7 = inlined_call_operand.vmem [shape: bf16[128,256], index: 7, kind: input, shape index: {}]
  %s8 = inlined_call_operand.vmem [shape: f32[1,256], index: 8, kind: input, shape index: {}]
  %s9 = inlined_call_operand.vmem [shape: bf16[256,128], index: 9, kind: input, shape index: {}]
  %s10 = inlined_call_operand.vmem [shape: f32[1,128], index: 10, kind: input, shape index: {}]
  %s11 = inlined_call_operand.vmem [shape: bf16[128,2], index: 11, kind: input, shape index: {}]
  %s12 = inlined_call_operand.vmem [shape: f32[1,2], index: 12, kind: input, shape index: {}]
  %s13 = inlined_call_operand.hbm [shape: f32[2,2], index: 13, kind: output, shape index: {}]
  %s14 = sld [smem:[#allocation0]]
  $region62: #{dnabert2_conservation_forward.23} parent=0
    _
  %s16 = ssub.s32 1, %s14
  %s17 = scalar_select 0, %s16, %s14
  $region1: #{dnabert2_conservation_forward.23} parent=0
    #allocation2 [shape = 'u8[1024]{0}', space=vmem, size = 0x400, scoped, tag = 'output window, operand 0, single buffered']
    #allocation3 [shape = 's32[1]{0}', space=sflag, size = 0x4, scoped, tag = 'scoped memory for dnabert2_conservation_forward.23']
    %18 = vsyncpa [#allocation3], 0
    // Predicated region
    $region2: #{dnabert2_conservation_forward.23} parent=1 // pred_check
      _
    $region3: #{dnabert2_conservation_forward.23} parent=1 // pred_check_branch
      %20 = sbr.rel (0) target = $region5
    $region4: #{dnabert2_conservation_forward.23} parent=1 // pred_region
      _
    $region5: #{dnabert2_conservation_forward.23} parent=1 // pred_fallthru
      _
    // Predicated region
    $region6: #{dnabert2_conservation_forward.23} parent=1 // pred_check
      _
    $region7: #{dnabert2_conservation_forward.23} parent=1 // pred_check_branch
      %22 = sbr.rel (0) target = $region9
    $region8: #{dnabert2_conservation_forward.23} parent=1 // pred_region
      _
    $region9: #{dnabert2_conservation_forward.23} parent=1 // pred_fallthru
      _
    // Predicated region
    $region10: #{dnabert2_conservation_forward.23} parent=1 // pred_check
      _
    $region11: #{dnabert2_conservation_forward.23} parent=1 // pred_check_branch
      %24 = sbr.rel (0) target = $region13
    $region12: #{dnabert2_conservation_forward.23} parent=1 // pred_region
      _
    $region13: #{dnabert2_conservation_forward.23} parent=1 // pred_fallthru
      _
    // Predicated region
    $region14: #{dnabert2_conservation_forward.23} parent=1 // pred_check
      _
    $region15: #{dnabert2_conservation_forward.23} parent=1 // pred_check_branch
      %26 = sbr.rel (0) target = $region17
    $region16: #{dnabert2_conservation_forward.23} parent=1 // pred_region
      _
    $region17: #{dnabert2_conservation_forward.23} parent=1 // pred_fallthru
      _
    // Predicated region
    $region18: #{dnabert2_conservation_forward.23} parent=1 // pred_check
      _
    $region19: #{dnabert2_conservation_forward.23} parent=1 // pred_check_branch
      %28 = sbr.rel (0) target = $region21
    $region20: #{dnabert2_conservation_forward.23} parent=1 // pred_region
      _
    $region21: #{dnabert2_conservation_forward.23} parent=1 // pred_fallthru
      _
    // Predicated region
    $region22: #{dnabert2_conservation_forward.23} parent=1 // pred_check
      _
    $region23: #{dnabert2_conservation_forward.23} parent=1 // pred_check_branch
      %30 = sbr.rel (0) target = $region25
    $region24: #{dnabert2_conservation_forward.23} parent=1 // pred_region
      _
    $region25: #{dnabert2_conservation_forward.23} parent=1 // pred_fallthru
      _
    // Predicated region
    $region26: #{dnabert2_conservation_forward.23} parent=1 // pred_check
      _
    $region27: #{dnabert2_conservation_forward.23} parent=1 // pred_check_branch
      %32 = sbr.rel (0) target = $region29
    $region28: #{dnabert2_conservation_forward.23} parent=1 // pred_region
      _
    $region29: #{dnabert2_conservation_forward.23} parent=1 // pred_fallthru
      _
    // Predicated region
    $region30: #{dnabert2_conservation_forward.23} parent=1 // pred_check
      _
    $region31: #{dnabert2_conservation_forward.23} parent=1 // pred_check_branch
      %34 = sbr.rel (0) target = $region33
    $region32: #{dnabert2_conservation_forward.23} parent=1 // pred_region
      _
    $region33: #{dnabert2_conservation_forward.23} parent=1 // pred_fallthru
      _
    // Predicated region
    $region34: #{dnabert2_conservation_forward.23} parent=1 // pred_check
      _
    $region35: #{dnabert2_conservation_forward.23} parent=1 // pred_check_branch
      %36 = sbr.rel (0) target = $region37
    $region36: #{dnabert2_conservation_forward.23} parent=1 // pred_region
      _
    $region37: #{dnabert2_conservation_forward.23} parent=1 // pred_fallthru
      _
    // Predicated region
    $region38: #{dnabert2_conservation_forward.23} parent=1 // pred_check
      _
    $region39: #{dnabert2_conservation_forward.23} parent=1 // pred_check_branch
      %38 = sbr.rel (0) target = $region41
    $region40: #{dnabert2_conservation_forward.23} parent=1 // pred_region
      _
    $region41: #{dnabert2_conservation_forward.23} parent=1 // pred_fallthru
      _
    // Predicated region
    $region42: #{dnabert2_conservation_forward.23} parent=1 // pred_check
      _
    $region43: #{dnabert2_conservation_forward.23} parent=1 // pred_check_branch
      %40 = sbr.rel (0) target = $region45
    $region44: #{dnabert2_conservation_forward.23} parent=1 // pred_region
      _
    $region45: #{dnabert2_conservation_forward.23} parent=1 // pred_fallthru
      _
    // Predicated region
    $region46: #{dnabert2_conservation_forward.23} parent=1 // pred_check
      _
    $region47: #{dnabert2_conservation_forward.23} parent=1 // pred_check_branch
      %42 = sbr.rel (0) target = $region49
    $region48: #{dnabert2_conservation_forward.23} parent=1 // pred_region
      _
    $region49: #{dnabert2_conservation_forward.23} parent=1 // pred_fallthru
      _
    // Predicated region
    $region50: #{dnabert2_conservation_forward.23} parent=1 // pred_check
      _
    $region51: #{dnabert2_conservation_forward.23} parent=1 // pred_check_branch
      %44 = sbr.rel (0) target = $region53
    $region52: #{dnabert2_conservation_forward.23} parent=1 // pred_region
      _
    $region53: #{dnabert2_conservation_forward.23} parent=1 // pred_fallthru
      _
    %v46 = vld [vmem:[%s0] sm:$0x1]
    %v47 = vld [vmem:[%s1] sm:$0x1]
    %v48 = vld [vmem:[%s2] sm:$0x3]
    %v49 = vld [vmem:[%s3] sm:$0x1]
    %v51 = vlaneseq
    %v52 = vshrl.u32 %v51, 7
    %v53 = vsub.s32 0, %v52
    %v54 = vrot.slane %v49, %v53
    %vm56 = vcmask 31744
    %v58 = vsel %vm56, %v47, 0
    %vm60 = vcmask 1041408
    %v62 = vsel %vm60, %v48, 0
    %64 = vmatprep.subr.bf16.mxu0 0
    %65 = vmatpush1.bf16.msra.mxu0 %v62
    %66 = vmatprep.subr.bf16.mxu0 0
    %67 = vmatpush1.bf16.msra.mxu0 0
    %68 = vmatprep.subr.bf16.mxu0 0
    %69 = vmatpush1.bf16.msra.mxu0 0
    %70 = vmatprep.subr.bf16.mxu0 0
    %71 = vmatpush1.bf16.msra.mxu0 0
    %72 = vmatprep.subr.bf16.mxu0 0
    %73 = vmatpush1.bf16.msra.mxu0 0
    %74 = vmatprep.subr.bf16.mxu0 0
    %75 = vmatpush1.bf16.msra.mxu0 0
    %76 = vmatprep.subr.bf16.mxu0 0
    %77 = vmatpush1.bf16.msra.mxu0 0
    %78 = vmatprep.subr.bf16.mxu0 0
    %79 = vmatpush1.bf16.msra.mxu0 0
    %80 = vmatprep.subr.bf16.mxu0 0
    %81 = vmatpush1.bf16.msra.mxu0 0
    %82 = vmatprep.subr.bf16.mxu0 0
    %83 = vmatpush1.bf16.msra.mxu0 0
    %84 = vmatprep.subr.bf16.mxu0 0
    %85 = vmatpush1.bf16.msra.mxu0 0
    %86 = vmatprep.subr.bf16.mxu0 0
    %87 = vmatpush1.bf16.msra.mxu0 0
    %88 = vmatprep.subr.bf16.mxu0 0
    %89 = vmatpush1.bf16.msra.mxu0 0
    %90 = vmatprep.subr.bf16.mxu0 0
    %91 = vmatpush1.bf16.msra.mxu0 0
    %92 = vmatprep.subr.bf16.mxu0 0
    %93 = vmatpush1.bf16.msra.mxu0 0
    %94 = vmatprep.subr.bf16.mxu0 0
    %95 = vmatpush1.bf16.msra.mxu0 0
    %96 = vmatprep.mubr.bf16.mxu0 0
    %97 = vmatmul.mubr.bf16.gmra.mrb[0].mxu0 %v58
    %v98 = vpop.f32.mrb[0].mxu0
    %v99 = vadd.f32 %v54, %v98
    %v100 = vpop.f32.mrb[0].mxu0
    %v101 = vpop.f32.mrb[0].mxu0
    %v102 = vpop.f32.mrb[0].mxu0
    %103 = vdwg.mxu0
    %v104 = vmax.f32 %v99, 0.0
    %v105 = vpack.c.bf16 %v104, %v104
    %v106 = vld [vmem:[%s4] sm:$0xf]
    %v107 = vld [vmem:[%s4 + $0x4] sm:$0xf]
    %v108 = vld [vmem:[%s4 + $0x8] sm:$0xf]
    %v109 = vld [vmem:[%s4 + $0xc] sm:$0xf]
    %v110 = vld [vmem:[%s4 + $0x10] sm:$0xf]
    %v111 = vld [vmem:[%s4 + $0x14] sm:$0xf]
    %v112 = vld [vmem:[%s4 + $0x18] sm:$0xf]
    %v113 = vld [vmem:[%s4 + $0x1c] sm:$0xf]
    %v114 = vld [vmem:[%s5] sm:$0x1]
    %v116 = vlaneseq
    %v117 = vshrl.u32 %v116, 7
    %v118 = vsub.s32 0, %v117
    %v119 = vrot.slane %v114, %v118
    %v129 = vunpack.c.l.b16 %v106
    %v130 = vunpack.c.l.b16 %v107
    %v131 = vunpack.c.l.b16 %v108
    %v132 = vunpack.c.l.b16 %v109
    %v133 = vunpack.c.l.b16 %v110
    %v134 = vunpack.c.l.b16 %v111
    %v135 = vunpack.c.l.b16 %v112
    %v136 = vunpack.c.l.b16 %v113
    %v137 = vpack.c.b16 %v130, %v129
    %v138 = vpack.c.b16 %v132, %v131
    %v139 = vpack.c.b16 %v134, %v133
    %v140 = vpack.c.b16 %v136, %v135
    %vm145 = vcmask 523264
    %v147 = vsel %vm145, %v105, 0
    %149 = vmatprep.subr.bf16.mxu0 0
    %150 = vmatpush1.bf16.msra.mxu0 %v137
    %151 = vmatprep.subr.bf16.mxu0 0
    %152 = vmatpush1.bf16.msra.mxu0 %v138
    %153 = vmatprep.subr.bf16.mxu0 0
    %154 = vmatpush1.bf16.msra.mxu0 %v139
    %155 = vmatprep.subr.bf16.mxu0 0
    %156 = vmatpush1.bf16.msra.mxu0 %v140
    %157 = vmatprep.subr.bf16.mxu0 0
    %158 = vmatpush1.bf16.msra.mxu0 0
    %159 = vmatprep.subr.bf16.mxu0 0
    %160 = vmatpush1.bf16.msra.mxu0 0
    %161 = vmatprep.subr.bf16.mxu0 0
    %162 = vmatpush1.bf16.msra.mxu0 0
    %163 = vmatprep.subr.bf16.mxu0 0
    %164 = vmatpush1.bf16.msra.mxu0 0
    %165 = vmatprep.subr.bf16.mxu0 0
    %166 = vmatpush1.bf16.msra.mxu0 0
    %167 = vmatprep.subr.bf16.mxu0 0
    %168 = vmatpush1.bf16.msra.mxu0 0
    %169 = vmatprep.subr.bf16.mxu0 0
    %170 = vmatpush1.bf16.msra.mxu0 0
    %171 = vmatprep.subr.bf16.mxu0 0
    %172 = vmatpush1.bf16.msra.mxu0 0
    %173 = vmatprep.subr.bf16.mxu0 0
    %174 = vmatpush1.bf16.msra.mxu0 0
    %175 = vmatprep.subr.bf16.mxu0 0
    %176 = vmatpush1.bf16.msra.mxu0 0
    %177 = vmatprep.subr.bf16.mxu0 0
    %178 = vmatpush1.bf16.msra.mxu0 0
    %179 = vmatprep.subr.bf16.mxu0 0
    %180 = vmatpush1.bf16.msra.mxu0 0
    %181 = vmatprep.mubr.bf16.mxu0 0
    %182 = vmatmul.mubr.bf16.gmra.mrb[0].mxu0 %v147
    %v183 = vpop.f32.mrb[0].mxu0
    %v184 = vadd.f32 %v119, %v183
    %v185 = vpop.f32.mrb[0].mxu0
    %v186 = vpop.f32.mrb[0].mxu0
    %v187 = vpop.f32.mrb[0].mxu0
    %188 = vdwg.mxu0
    %v189 = vmax.f32 %v184, 0.0
    %v190 = vld [vmem:[%s6] sm:$0xff]
    %v191 = vld [vmem:[%s6 + $0x8] sm:$0xff]
    %v192 = vld [vmem:[%s6 + $0x10] sm:$0xff]
    %v193 = vld [vmem:[%s6 + $0x18] sm:$0xff]
    %v194 = vld [vmem:[%s6 + $0x20] sm:$0xff]
    %v195 = vld [vmem:[%s6 + $0x28] sm:$0xff]
    %v196 = vld [vmem:[%s6 + $0x30] sm:$0xff]
    %v197 = vld [vmem:[%s6 + $0x38] sm:$0xff]
    %v198 = vld [vmem:[%s6 + $0x40] sm:$0xff]
    %v199 = vld [vmem:[%s6 + $0x48] sm:$0xff]
    %v200 = vld [vmem:[%s6 + $0x50] sm:$0xff]
    %v201 = vld [vmem:[%s6 + $0x58] sm:$0xff]
    %v202 = vld [vmem:[%s6 + $0x60] sm:$0xff]
    %v203 = vld [vmem:[%s6 + $0x68] sm:$0xff]
    %v204 = vld [vmem:[%s6 + $0x70] sm:$0xff]
    %v205 = vld [vmem:[%s6 + $0x78] sm:$0xff]
    %v206 = vpack.c.bf16 %v189, %v189
    %v207 = vld [vmem:[%s7] sm:$0xff]
    %v208 = vld [vmem:[%s7 + $0x8] sm:$0xff]
    %v209 = vld [vmem:[%s7 + $0x10] sm:$0xff]
    %v210 = vld [vmem:[%s7 + $0x18] sm:$0xff]
    %v211 = vld [vmem:[%s7 + $0x20] sm:$0xff]
    %v212 = vld [vmem:[%s7 + $0x28] sm:$0xff]
    %v213 = vld [vmem:[%s7 + $0x30] sm:$0xff]
    %v214 = vld [vmem:[%s7 + $0x38] sm:$0xff]
    %v215 = vld [vmem:[%s7 + $0x40] sm:$0xff]
    %v216 = vld [vmem:[%s7 + $0x48] sm:$0xff]
    %v217 = vld [vmem:[%s7 + $0x50] sm:$0xff]
    %v218 = vld [vmem:[%s7 + $0x58] sm:$0xff]
    %v219 = vld [vmem:[%s7 + $0x60] sm:$0xff]
    %v220 = vld [vmem:[%s7 + $0x68] sm:$0xff]
    %v221 = vld [vmem:[%s7 + $0x70] sm:$0xff]
    %v222 = vld [vmem:[%s7 + $0x78] sm:$0xff]
    %v239 = vunpack.c.l.b16 %v207
    %v240 = vunpack.c.h.b16 %v207
    %v241 = vunpack.c.l.b16 %v208
    %v242 = vunpack.c.h.b16 %v208
    %v243 = vunpack.c.l.b16 %v209
    %v244 = vunpack.c.h.b16 %v209
    %v245 = vunpack.c.l.b16 %v210
    %v246 = vunpack.c.h.b16 %v210
    %v247 = vunpack.c.l.b16 %v211
    %v248 = vunpack.c.h.b16 %v211
    %v249 = vunpack.c.l.b16 %v212
    %v250 = vunpack.c.h.b16 %v212
    %v251 = vunpack.c.l.b16 %v213
    %v252 = vunpack.c.h.b16 %v213
    %v253 = vunpack.c.l.b16 %v214
    %v254 = vunpack.c.h.b16 %v214
    %v255 = vunpack.c.l.b16 %v215
    %v256 = vunpack.c.h.b16 %v215
    %v257 = vunpack.c.l.b16 %v216
    %v258 = vunpack.c.h.b16 %v216
    %v259 = vunpack.c.l.b16 %v217
    %v260 = vunpack.c.h.b16 %v217
    %v261 = vunpack.c.l.b16 %v218
    %v262 = vunpack.c.h.b16 %v218
    %v263 = vunpack.c.l.b16 %v219
    %v264 = vunpack.c.h.b16 %v219
    %v265 = vunpack.c.l.b16 %v220
    %v266 = vunpack.c.h.b16 %v220
    %v267 = vunpack.c.l.b16 %v221
    %v268 = vunpack.c.h.b16 %v221
    %v269 = vunpack.c.l.b16 %v222
    %v270 = vunpack.c.h.b16 %v222
    %v271 = vpack.c.b16 %v241, %v239
    %v272 = vpack.c.b16 %v242, %v240
    %v273 = vpack.c.b16 %v245, %v243
    %v274 = vpack.c.b16 %v246, %v244
    %v275 = vpack.c.b16 %v249, %v247
    %v276 = vpack.c.b16 %v250, %v248
    %v277 = vpack.c.b16 %v253, %v251
    %v278 = vpack.c.b16 %v254, %v252
    %v279 = vpack.c.b16 %v257, %v255
    %v280 = vpack.c.b16 %v258, %v256
    %v281 = vpack.c.b16 %v261, %v259
    %v282 = vpack.c.b16 %v262, %v260
    %v283 = vpack.c.b16 %v265, %v263
    %v284 = vpack.c.b16 %v266, %v264
    %v285 = vpack.c.b16 %v269, %v267
    %v286 = vpack.c.b16 %v270, %v268
    %303 = vmatprep.subr.bf16.mxu0 %v272
    %304 = vmatpush1.bf16.msra.mxu0 %v271
    %305 = vmatprep.subr.bf16.mxu0 %v274
    %306 = vmatpush1.bf16.msra.mxu0 %v273
    %307 = vmatprep.subr.bf16.mxu0 %v276
    %308 = vmatpush1.bf16.msra.mxu0 %v275
    %309 = vmatprep.subr.bf16.mxu0 %v278
    %310 = vmatpush1.bf16.msra.mxu0 %v277
    %311 = vmatprep.subr.bf16.mxu0 %v280
    %312 = vmatpush1.bf16.msra.mxu0 %v279
    %313 = vmatprep.subr.bf16.mxu0 %v282
    %314 = vmatpush1.bf16.msra.mxu0 %v281
    %315 = vmatprep.subr.bf16.mxu0 %v284
    %316 = vmatpush1.bf16.msra.mxu0 %v283
    %317 = vmatprep.subr.bf16.mxu0 %v286
    %318 = vmatpush1.bf16.msra.mxu0 %v285
    %319 = vmatprep.subr.bf16.mxu0 0
    %320 = vmatpush1.bf16.msra.mxu0 0
    %321 = vmatprep.subr.bf16.mxu0 0
    %322 = vmatpush1.bf16.msra.mxu0 0
    %323 = vmatprep.subr.bf16.mxu0 0
    %324 = vmatpush1.bf16.msra.mxu0 0
    %325 = vmatprep.subr.bf16.mxu0 0
    %326 = vmatpush1.bf16.msra.mxu0 0
    %327 = vmatprep.subr.bf16.mxu0 0
    %328 = vmatpush1.bf16.msra.mxu0 0
    %329 = vmatprep.subr.bf16.mxu0 0
    %330 = vmatpush1.bf16.msra.mxu0 0
    %331 = vmatprep.subr.bf16.mxu0 0
    %332 = vmatpush1.bf16.msra.mxu0 0
    %333 = vmatprep.subr.bf16.mxu0 0
    %334 = vmatpush1.bf16.msra.mxu0 0
    %335 = vmatprep.mubr.bf16.mxu0 0
    %336 = vmatmul.mubr.bf16.gmra.mrb[0].mxu0 %v206
    %v337 = vpop.f32.mrb[0].mxu0
    %v338 = vadd.f32 0.0, %v337
    %v339 = vpop.f32.mrb[0].mxu0
    %v340 = vadd.f32 0.0, %v339
    %v341 = vpop.f32.mrb[0].mxu0
    %v342 = vpop.f32.mrb[0].mxu0
    %343 = vdwg.mxu0
    %v360 = vunpack.c.l.b16 %v190
    %v361 = vunpack.c.h.b16 %v190
    %v362 = vunpack.c.l.b16 %v191
    %v363 = vunpack.c.h.b16 %v191
    %v364 = vunpack.c.l.b16 %v192
    %v365 = vunpack.c.h.b16 %v192
    %v366 = vunpack.c.l.b16 %v193
    %v367 = vunpack.c.h.b16 %v193
    %v368 = vunpack.c.l.b16 %v194
    %v369 = vunpack.c.h.b16 %v194
    %v370 = vunpack.c.l.b16 %v195
    %v371 = vunpack.c.h.b16 %v195
    %v372 = vunpack.c.l.b16 %v196
    %v373 = vunpack.c.h.b16 %v196
    %v374 = vunpack.c.l.b16 %v197
    %v375 = vunpack.c.h.b16 %v197
    %v376 = vunpack.c.l.b16 %v198
    %v377 = vunpack.c.h.b16 %v198
    %v378 = vunpack.c.l.b16 %v199
    %v379 = vunpack.c.h.b16 %v199
    %v380 = vunpack.c.l.b16 %v200
    %v381 = vunpack.c.h.b16 %v200
    %v382 = vunpack.c.l.b16 %v201
    %v383 = vunpack.c.h.b16 %v201
    %v384 = vunpack.c.l.b16 %v202
    %v385 = vunpack.c.h.b16 %v202
    %v386 = vunpack.c.l.b16 %v203
    %v387 = vunpack.c.h.b16 %v203
    %v388 = vunpack.c.l.b16 %v204
    %v389 = vunpack.c.h.b16 %v204
    %v390 = vunpack.c.l.b16 %v205
    %v391 = vunpack.c.h.b16 %v205
    %v392 = vpack.c.b16 %v362, %v360
    %v393 = vpack.c.b16 %v363, %v361
    %v394 = vpack.c.b16 %v366, %v364
    %v395 = vpack.c.b16 %v367, %v365
    %v396 = vpack.c.b16 %v370, %v368
    %v397 = vpack.c.b16 %v371, %v369
    %v398 = vpack.c.b16 %v374, %v372
    %v399 = vpack.c.b16 %v375, %v373
    %v400 = vpack.c.b16 %v378, %v376
    %v401 = vpack.c.b16 %v379, %v377
    %v402 = vpack.c.b16 %v382, %v380
    %v403 = vpack.c.b16 %v383, %v381
    %v404 = vpack.c.b16 %v386, %v384
    %v405 = vpack.c.b16 %v387, %v385
    %v406 = vpack.c.b16 %v390, %v388
    %v407 = vpack.c.b16 %v391, %v389
    %424 = vmatprep.subr.bf16.mxu0 %v393
    %425 = vmatpush1.bf16.msra.mxu0 %v392
    %426 = vmatprep.subr.bf16.mxu0 %v395
    %427 = vmatpush1.bf16.msra.mxu0 %v394
    %428 = vmatprep.subr.bf16.mxu0 %v397
    %429 = vmatpush1.bf16.msra.mxu0 %v396
    %430 = vmatprep.subr.bf16.mxu0 %v399
    %431 = vmatpush1.bf16.msra.mxu0 %v398
    %432 = vmatprep.subr.bf16.mxu0 %v401
    %433 = vmatpush1.bf16.msra.mxu0 %v400
    %434 = vmatprep.subr.bf16.mxu0 %v403
    %435 = vmatpush1.bf16.msra.mxu0 %v402
    %436 = vmatprep.subr.bf16.mxu0 %v405
    %437 = vmatpush1.bf16.msra.mxu0 %v404
    %438 = vmatprep.subr.bf16.mxu0 %v407
    %439 = vmatpush1.bf16.msra.mxu0 %v406
    %440 = vmatprep.subr.bf16.mxu0 0
    %441 = vmatpush1.bf16.msra.mxu0 0
    %442 = vmatprep.subr.bf16.mxu0 0
    %443 = vmatpush1.bf16.msra.mxu0 0
    %444 = vmatprep.subr.bf16.mxu0 0
    %445 = vmatpush1.bf16.msra.mxu0 0
    %446 = vmatprep.subr.bf16.mxu0 0
    %447 = vmatpush1.bf16.msra.mxu0 0
    %448 = vmatprep.subr.bf16.mxu0 0
    %449 = vmatpush1.bf16.msra.mxu0 0
    %450 = vmatprep.subr.bf16.mxu0 0
    %451 = vmatpush1.bf16.msra.mxu0 0
    %452 = vmatprep.subr.bf16.mxu0 0
    %453 = vmatpush1.bf16.msra.mxu0 0
    %454 = vmatprep.subr.bf16.mxu0 0
    %455 = vmatpush1.bf16.msra.mxu0 0
    %456 = vmatprep.mubr.bf16.mxu0 0
    %457 = vmatmul.mubr.bf16.gmra.mrb[0].mxu0 %v46
    %v458 = vpop.f32.mrb[0].mxu0
    %v459 = vadd.f32 %v338, %v458
    %v460 = vpop.f32.mrb[0].mxu0
    %v461 = vadd.f32 %v340, %v460
    %v462 = vpop.f32.mrb[0].mxu0
    %v463 = vpop.f32.mrb[0].mxu0
    %464 = vdwg.mxu0
    %v465 = vld [vmem:[%s8] sm:$0x3]
    %v467 = vlaneseq
    %v468 = vshrl.u32 %v467, 7
    %v469 = vsub.s32 0, %v468
    %v470 = vrot.slane %v465, %v469
    %v471 = vlaneseq
    %v472 = vshrl.u32 %v471, 7
    %v473 = vsub.s32 1, %v472
    %v474 = vrot.slane %v465, %v473
    %v477 = vadd.f32 %v459, %v470
    %v478 = vadd.f32 %v461, %v474
    %v479 = vmax.f32 %v477, 0.0
    %v480 = vmax.f32 %v478, 0.0
    %v481 = vpack.c.bf16 %v479, %v479
    %v482 = vpack.c.bf16 %v480, %v480
    %v483 = vld [vmem:[%s9] sm:$0xf]
    %v484 = vld [vmem:[%s9 + $0x4] sm:$0xf]
    %v485 = vld [vmem:[%s9 + $0x8] sm:$0xf]
    %v486 = vld [vmem:[%s9 + $0xc] sm:$0xf]
    %v487 = vld [vmem:[%s9 + $0x10] sm:$0xf]
    %v488 = vld [vmem:[%s9 + $0x14] sm:$0xf]
    %v489 = vld [vmem:[%s9 + $0x18] sm:$0xf]
    %v490 = vld [vmem:[%s9 + $0x1c] sm:$0xf]
    %v491 = vld [vmem:[%s9 + $0x20] sm:$0xf]
    %v492 = vld [vmem:[%s9 + $0x24] sm:$0xf]
    %v493 = vld [vmem:[%s9 + $0x28] sm:$0xf]
    %v494 = vld [vmem:[%s9 + $0x2c] sm:$0xf]
    %v495 = vld [vmem:[%s9 + $0x30] sm:$0xf]
    %v496 = vld [vmem:[%s9 + $0x34] sm:$0xf]
    %v497 = vld [vmem:[%s9 + $0x38] sm:$0xf]
    %v498 = vld [vmem:[%s9 + $0x3c] sm:$0xf]
    %v499 = vld [vmem:[%s9 + $0x40] sm:$0xf]
    %v500 = vld [vmem:[%s9 + $0x44] sm:$0xf]
    %v501 = vld [vmem:[%s9 + $0x48] sm:$0xf]
    %v502 = vld [vmem:[%s9 + $0x4c] sm:$0xf]
    %v503 = vld [vmem:[%s9 + $0x50] sm:$0xf]
    %v504 = vld [vmem:[%s9 + $0x54] sm:$0xf]
    %v505 = vld [vmem:[%s9 + $0x58] sm:$0xf]
    %v506 = vld [vmem:[%s9 + $0x5c] sm:$0xf]
    %v507 = vld [vmem:[%s9 + $0x60] sm:$0xf]
    %v508 = vld [vmem:[%s9 + $0x64] sm:$0xf]
    %v509 = vld [vmem:[%s9 + $0x68] sm:$0xf]
    %v510 = vld [vmem:[%s9 + $0x6c] sm:$0xf]
    %v511 = vld [vmem:[%s9 + $0x70] sm:$0xf]
    %v512 = vld [vmem:[%s9 + $0x74] sm:$0xf]
    %v513 = vld [vmem:[%s9 + $0x78] sm:$0xf]
    %v514 = vld [vmem:[%s9 + $0x7c] sm:$0xf]
    %v515 = vld [vmem:[%s10] sm:$0x1]
    %v517 = vlaneseq
    %v518 = vshrl.u32 %v517, 7
    %v519 = vsub.s32 0, %v518
    %v520 = vrot.slane %v515, %v519
    %v554 = vunpack.c.l.b16 %v483
    %v555 = vunpack.c.l.b16 %v484
    %v556 = vunpack.c.l.b16 %v485
    %v557 = vunpack.c.l.b16 %v486
    %v558 = vunpack.c.l.b16 %v487
    %v559 = vunpack.c.l.b16 %v488
    %v560 = vunpack.c.l.b16 %v489
    %v561 = vunpack.c.l.b16 %v490
    %v562 = vunpack.c.l.b16 %v491
    %v563 = vunpack.c.l.b16 %v492
    %v564 = vunpack.c.l.b16 %v493
    %v565 = vunpack.c.l.b16 %v494
    %v566 = vunpack.c.l.b16 %v495
    %v567 = vunpack.c.l.b16 %v496
    %v568 = vunpack.c.l.b16 %v497
    %v569 = vunpack.c.l.b16 %v498
    %v570 = vunpack.c.l.b16 %v499
    %v571 = vunpack.c.l.b16 %v500
    %v572 = vunpack.c.l.b16 %v501
    %v573 = vunpack.c.l.b16 %v502
    %v574 = vunpack.c.l.b16 %v503
    %v575 = vunpack.c.l.b16 %v504
    %v576 = vunpack.c.l.b16 %v505
    %v577 = vunpack.c.l.b16 %v506
    %v578 = vunpack.c.l.b16 %v507
    %v579 = vunpack.c.l.b16 %v508
    %v580 = vunpack.c.l.b16 %v509
    %v581 = vunpack.c.l.b16 %v510
    %v582 = vunpack.c.l.b16 %v511
    %v583 = vunpack.c.l.b16 %v512
    %v584 = vunpack.c.l.b16 %v513
    %v585 = vunpack.c.l.b16 %v514
    %v586 = vpack.c.b16 %v555, %v554
    %v587 = vpack.c.b16 %v557, %v556
    %v588 = vpack.c.b16 %v559, %v558
    %v589 = vpack.c.b16 %v561, %v560
    %v590 = vpack.c.b16 %v563, %v562
    %v591 = vpack.c.b16 %v565, %v564
    %v592 = vpack.c.b16 %v567, %v566
    %v593 = vpack.c.b16 %v569, %v568
    %v594 = vpack.c.b16 %v571, %v570
    %v595 = vpack.c.b16 %v573, %v572
    %v596 = vpack.c.b16 %v575, %v574
    %v597 = vpack.c.b16 %v577, %v576
    %v598 = vpack.c.b16 %v579, %v578
    %v599 = vpack.c.b16 %v581, %v580
    %v600 = vpack.c.b16 %v583, %v582
    %v601 = vpack.c.b16 %v585, %v584
    %618 = vmatprep.subr.bf16.mxu0 0
    %619 = vmatpush1.bf16.msra.mxu0 %v586
    %620 = vmatprep.subr.bf16.mxu0 0
    %621 = vmatpush1.bf16.msra.mxu0 %v587
    %622 = vmatprep.subr.bf16.mxu0 0
    %623 = vmatpush1.bf16.msra.mxu0 %v588
    %624 = vmatprep.subr.bf16.mxu0 0
    %625 = vmatpush1.bf16.msra.mxu0 %v589
    %626 = vmatprep.subr.bf16.mxu0 0
    %627 = vmatpush1.bf16.msra.mxu0 %v590
    %628 = vmatprep.subr.bf16.mxu0 0
    %629 = vmatpush1.bf16.msra.mxu0 %v591
    %630 = vmatprep.subr.bf16.mxu0 0
    %631 = vmatpush1.bf16.msra.mxu0 %v592
    %632 = vmatprep.subr.bf16.mxu0 0
    %633 = vmatpush1.bf16.msra.mxu0 %v593
    %634 = vmatprep.subr.bf16.mxu0 0
    %635 = vmatpush1.bf16.msra.mxu0 %v594
    %636 = vmatprep.subr.bf16.mxu0 0
    %637 = vmatpush1.bf16.msra.mxu0 %v595
    %638 = vmatprep.subr.bf16.mxu0 0
    %639 = vmatpush1.bf16.msra.mxu0 %v596
    %640 = vmatprep.subr.bf16.mxu0 0
    %641 = vmatpush1.bf16.msra.mxu0 %v597
    %642 = vmatprep.subr.bf16.mxu0 0
    %643 = vmatpush1.bf16.msra.mxu0 %v598
    %644 = vmatprep.subr.bf16.mxu0 0
    %645 = vmatpush1.bf16.msra.mxu0 %v599
    %646 = vmatprep.subr.bf16.mxu0 0
    %647 = vmatpush1.bf16.msra.mxu0 %v600
    %648 = vmatprep.subr.bf16.mxu0 0
    %649 = vmatpush1.bf16.msra.mxu0 %v601
    %650 = vmatprep.mubr.bf16.mxu0 %v482
    %651 = vmatmul.mubr.bf16.gmra.mrb[0].mxu0 %v481
    %v652 = vpop.f32.mrb[0].mxu0
    %v653 = vadd.f32 %v520, %v652
    %v654 = vpop.f32.mrb[0].mxu0
    %v655 = vpop.f32.mrb[0].mxu0
    %v656 = vpop.f32.mrb[0].mxu0
    %657 = vdwg.mxu0
    %v658 = vmax.f32 %v653, 0.0
    %v659 = vpack.c.bf16 %v658, %v658
    %v660 = vld [vmem:[%s11] sm:$0xf]
    %v661 = vld [vmem:[%s11 + $0x4] sm:$0xf]
    %v662 = vld [vmem:[%s11 + $0x8] sm:$0xf]
    %v663 = vld [vmem:[%s11 + $0xc] sm:$0xf]
    %v664 = vld [vmem:[%s11 + $0x10] sm:$0xf]
    %v665 = vld [vmem:[%s11 + $0x14] sm:$0xf]
    %v666 = vld [vmem:[%s11 + $0x18] sm:$0xf]
    %v667 = vld [vmem:[%s11 + $0x1c] sm:$0xf]
    %v668 = vld [vmem:[%s11 + $0x20] sm:$0xf]
    %v669 = vld [vmem:[%s11 + $0x24] sm:$0xf]
    %v670 = vld [vmem:[%s11 + $0x28] sm:$0xf]
    %v671 = vld [vmem:[%s11 + $0x2c] sm:$0xf]
    %v672 = vld [vmem:[%s11 + $0x30] sm:$0xf]
    %v673 = vld [vmem:[%s11 + $0x34] sm:$0xf]
    %v674 = vld [vmem:[%s11 + $0x38] sm:$0xf]
    %v675 = vld [vmem:[%s11 + $0x3c] sm:$0xf]
    %v676 = vld [vmem:[%s12] sm:$0x1]
    %v678 = vlaneseq
    %v679 = vshrl.u32 %v678, 7
    %v680 = vsub.s32 0, %v679
    %v681 = vrot.slane %v676, %v680
    %v699 = vunpack.c.l.b16 %v660
    %v700 = vunpack.c.l.b16 %v661
    %v701 = vunpack.c.l.b16 %v662
    %v702 = vunpack.c.l.b16 %v663
    %v703 = vunpack.c.l.b16 %v664
    %v704 = vunpack.c.l.b16 %v665
    %v705 = vunpack.c.l.b16 %v666
    %v706 = vunpack.c.l.b16 %v667
    %v707 = vunpack.c.l.b16 %v668
    %v708 = vunpack.c.l.b16 %v669
    %v709 = vunpack.c.l.b16 %v670
    %v710 = vunpack.c.l.b16 %v671
    %v711 = vunpack.c.l.b16 %v672
    %v712 = vunpack.c.l.b16 %v673
    %v713 = vunpack.c.l.b16 %v674
    %v714 = vunpack.c.l.b16 %v675
    %v715 = vpack.c.b16 %v700, %v699
    %v716 = vpack.c.b16 %v702, %v701
    %v717 = vpack.c.b16 %v704, %v703
    %v718 = vpack.c.b16 %v706, %v705
    %v719 = vpack.c.b16 %v708, %v707
    %v720 = vpack.c.b16 %v710, %v709
    %v721 = vpack.c.b16 %v712, %v711
    %v722 = vpack.c.b16 %v714, %v713
    %731 = vmatprep.subr.bf16.mxu0 0
    %732 = vmatpush1.bf16.msra.mxu0 %v715
    %733 = vmatprep.subr.bf16.mxu0 0
    %734 = vmatpush1.bf16.msra.mxu0 %v716
    %735 = vmatprep.subr.bf16.mxu0 0
    %736 = vmatpush1.bf16.msra.mxu0 %v717
    %737 = vmatprep.subr.bf16.mxu0 0
    %738 = vmatpush1.bf16.msra.mxu0 %v718
    %739 = vmatprep.subr.bf16.mxu0 0
    %740 = vmatpush1.bf16.msra.mxu0 %v719
    %741 = vmatprep.subr.bf16.mxu0 0
    %742 = vmatpush1.bf16.msra.mxu0 %v720
    %743 = vmatprep.subr.bf16.mxu0 0
    %744 = vmatpush1.bf16.msra.mxu0 %v721
    %745 = vmatprep.subr.bf16.mxu0 0
    %746 = vmatpush1.bf16.msra.mxu0 %v722
    %747 = vmatprep.subr.bf16.mxu0 0
    %748 = vmatpush1.bf16.msra.mxu0 0
    %749 = vmatprep.subr.bf16.mxu0 0
    %750 = vmatpush1.bf16.msra.mxu0 0
    %751 = vmatprep.subr.bf16.mxu0 0
    %752 = vmatpush1.bf16.msra.mxu0 0
    %753 = vmatprep.subr.bf16.mxu0 0
    %754 = vmatpush1.bf16.msra.mxu0 0
    %755 = vmatprep.subr.bf16.mxu0 0
    %756 = vmatpush1.bf16.msra.mxu0 0
    %757 = vmatprep.subr.bf16.mxu0 0
    %758 = vmatpush1.bf16.msra.mxu0 0
    %759 = vmatprep.subr.bf16.mxu0 0
    %760 = vmatpush1.bf16.msra.mxu0 0
    %761 = vmatprep.subr.bf16.mxu0 0
    %762 = vmatpush1.bf16.msra.mxu0 0
    %763 = vmatprep.mubr.bf16.mxu0 0
    %764 = vmatmul.mubr.bf16.gmra.mrb[0].mxu0 %v659
    %v765 = vpop.f32.mrb[0].mxu0
    %v766 = vadd.f32 %v681, %v765
    %v767 = vpop.f32.mrb[0].mxu0
    %v768 = vpop.f32.mrb[0].mxu0
    %v769 = vpop.f32.mrb[0].mxu0
    %770 = vdwg.mxu0
    %vm771 = vcmask 9216
    %772 = vst.msk [vmem:[#allocation2] sm:$0x3] %vm771, %v766
    // Predicated region
    $region54: #{dnabert2_conservation_forward.23} parent=1 // pred_check
      _
    $region55: #{dnabert2_conservation_forward.23} parent=1 // pred_check_branch
      %774 = sbr.rel (0) target = $region57
    $region56: #{dnabert2_conservation_forward.23} parent=1 // pred_region
      %s776 = ssub.s32 32, 32
      %777 = vsyncadd [#allocation3], %s776
      %s779 = sshll.u32 [#allocation2], 4
      %s780 = int_to_ptr.vmem [resolvable:$true] %s779
      %782 = dma.vmem_to_hbm [thread:$0]  %s780, 32, %s13, [#allocation3]
    $region57: #{dnabert2_conservation_forward.23} parent=1 // pred_fallthru
      _
    // Predicated region
    $region58: #{dnabert2_conservation_forward.23} parent=1 // pred_check
      _
    $region59: #{dnabert2_conservation_forward.23} parent=1 // pred_check_branch
      %784 = sbr.rel (0) target = $region61
    $region60: #{dnabert2_conservation_forward.23} parent=1 // pred_region
      %785 = dma.done [#allocation3], 32
    $region61: #{dnabert2_conservation_forward.23} parent=1 // pred_fallthru
      _
    %786 = vsyncpa [#allocation3], 1

</llo_original>
